<compile_context>
chip_gen: v7x
topology: tpu7x:2x2x1
jax: 0.10.0
libtpu: 0.0.40
codegen_flags: <defaults>
</compile_context>

<pallas_src>
import numpy as np

import jax
import jax.numpy as jnp
from jax.experimental import pallas as pl
from jax.experimental.pallas import tpu as pltpu


_LANE = 128
_N_LAYERS = 7
_IN_FEATURES = 28 * 28


def _rup(n, m=_LANE):
    return ((n + m - 1) // m) * m


# ----------------------------------------------------------------------------
# Single fused Pallas kernel: 7 x (GEMM + bias [+ ReLU]), everything in VMEM.
# ----------------------------------------------------------------------------
def _fused_classifier_kernel(*refs):
    # refs = (x_ref, w1, b1, w2, b2, ..., w7, b7, o_ref)
    x_ref = refs[0]
    o_ref = refs[-1]

    a = x_ref[...]                                     # (B, 896) f32
    for layer in range(_N_LAYERS):
        w_ref = refs[1 + 2 * layer]                    # (K_pad, N_pad) bf16
        b_ref = refs[2 + 2 * layer]                    # (1, N_pad)     f32
        # bf16 MXU operands, f32 accumulate, f32 bias/ReLU epilogue.
        y = jnp.dot(a.astype(jnp.bfloat16), w_ref[...],
                    preferred_element_type=jnp.float32)
        y = y + b_ref[...]
        a = jnp.maximum(y, 0.0) if layer < _N_LAYERS - 1 else y
    o_ref[...] = a                                     # (B, 128) f32, lane-dense


def classifier_forward(fused, x_nchw, final_d):
    """fused: list of 7 (weight_bf16, bias_f32) padded GEMM layers."""
    B = x_nchw.shape[0]
    # NCHW with C == 1: flatten to (B, H*W) is a pure reshape (no transpose)
    # and matches the (h, w, c) row ordering used by the dense conv matrices.
    x_flat = x_nchw.reshape(B, _IN_FEATURES).astype(jnp.float32)

    # Zero-pad the contraction dim to the first layer's padded K (lane-dense).
    k_pad = fused[0][0].shape[0]
    if k_pad != _IN_FEATURES:
        x_flat = jnp.pad(x_flat, ((0, 0), (0, k_pad - _IN_FEATURES)))

    args = [x_flat]
    for w, b in fused:
        args.append(w)
        args.append(b)

    n_out_pad = fused[-1][0].shape[1]
    out_pad = pl.pallas_call(
        _fused_classifier_kernel,
        out_shape=jax.ShapeDtypeStruct((B, n_out_pad), jnp.float32),
        in_specs=[pl.BlockSpec(memory_space=pltpu.MemorySpace.VMEM)] * len(args),
        out_specs=pl.BlockSpec(memory_space=pltpu.MemorySpace.VMEM),
        compiler_params=pltpu.CompilerParams(vmem_limit_bytes=32 * 1024 * 1024),
    )(*args)
    return out_pad[:, :final_d]


# ----------------------------------------------------------------------------
# Init-time packing: conv -> dense matrix, flatten permutation, 128-padding.
# ----------------------------------------------------------------------------
def _conv_dense(w, H, W, stride):
    """Dense (H*W*Cin, oh*ow*Cout) matrix of a VALID conv; rows/cols in
    (h, w, c) / (y, x, o) row-major order."""
    kh, kw, cin, cout = w.shape
    oh = (H - kh) // stride + 1
    ow = (W - kw) // stride + 1
    D = np.zeros((H * W * cin, oh * ow * cout), np.float32)
    w = np.asarray(w, np.float32)
    for i in range(kh):
        for j in range(kw):
            for y in range(oh):
                for x in range(ow):
                    r0 = ((y * stride + i) * W + (x * stride + j)) * cin
                    c0 = (y * ow + x) * cout
                    D[r0:r0 + cin, c0:c0 + cout] = w[i, j]
    return D, oh, ow


def _pad2(a, rows, cols):
    out = np.zeros((rows, cols), np.float32)
    out[:a.shape[0], :a.shape[1]] = a
    return out


def _pad1(a, n):
    out = np.zeros((n,), np.float32)
    out[:a.shape[0]] = a
    return out


def build_fused_params(params, final_d):
    assert final_d <= _LANE
    layers = []

    # Conv layers -> equivalent dense GEMMs (bias tiled over output positions).
    conv_cfg = [("c1", 28, 28, 2), ("c2", 12, 12, 1), ("c3", 10, 10, 2), ("c4", 4, 4, 1)]
    for name, H, W, s in conv_cfg:
        wt = np.asarray(params[name + "w"], np.float32)
        bt = np.asarray(params[name + "b"], np.float32)
        D, oh, ow = _conv_dense(wt, H, W, s)
        layers.append((D, np.tile(bt, oh * ow)))

    # Encoder Linear: permute rows from PyTorch (C,H,W) flatten order to our
    # (H,W,C) activation order (folds nn.Flatten + the layout transpose away).
    efw = np.asarray(params["efw"], np.float32)        # (128, 12), rows in (c, y, x)
    efb = np.asarray(params["efb"], np.float32)
    perm = np.zeros(128, np.int32)
    for c in range(32):
        for y in range(2):
            for x in range(2):
                perm[(y * 2 + x) * 32 + c] = c * 4 + y * 2 + x
    layers.append((efw[perm, :], efb))

    # MLP.
    layers.append((np.asarray(params["m1w"], np.float32), np.asarray(params["m1b"], np.float32)))
    layers.append((np.asarray(params["m2w"], np.float32), np.asarray(params["m2b"], np.float32)))

    # Zero-pad: N of each layer -> multiple of 128 (lane-dense); K of each
    # layer -> previous layer's padded N (first layer: K = rup(784) = 896).
    fused = []
    prev_n_pad = _rup(layers[0][0].shape[0])
    for D, b in layers:
        n_pad = _rup(D.shape[1])
        w_pad = _pad2(D, prev_n_pad, n_pad)
        b_pad = _pad1(b, n_pad).reshape(1, n_pad)
        fused.append((jnp.asarray(w_pad, jnp.bfloat16), jnp.asarray(b_pad, jnp.float32)))
        prev_n_pad = n_pad
    return fused


# ----------------------------------------------------------------------------
# Deterministic parameter init (PyTorch-style uniform(-1/sqrt(fan_in), +)).
# ----------------------------------------------------------------------------
def _uniform(key, shape, fan_in):
    bound = 1.0 / float(fan_in) ** 0.5
    return jax.random.uniform(key, shape, jnp.float32, -bound, bound)


def init_params(key, final_d):
    ks = jax.random.split(key, 14)

    def conv_p(kw_, kb_, kh, kww, cin, cout):
        fan_in = cin * kh * kww
        return _uniform(kw_, (kh, kww, cin, cout), fan_in), _uniform(kb_, (cout,), fan_in)

    def lin_p(kw_, kb_, din, dout):
        return _uniform(kw_, (din, dout), din), _uniform(kb_, (dout,), din)

    p = {}
    p["c1w"], p["c1b"] = conv_p(ks[0], ks[1], 5, 5, 1, 4)     # Conv2d(1, 4, 5, stride=2)
    p["c2w"], p["c2b"] = conv_p(ks[2], ks[3], 3, 3, 4, 8)     # Conv2d(4, 8, 3)
    p["c3w"], p["c3b"] = conv_p(ks[4], ks[5], 3, 3, 8, 16)    # Conv2d(8, 16, 3, stride=2)
    p["c4w"], p["c4b"] = conv_p(ks[6], ks[7], 3, 3, 16, 32)   # Conv2d(16, 32, 3)
    p["efw"], p["efb"] = lin_p(ks[8], ks[9], 32 * 4, 12)      # Linear(128, 12)
    p["m1w"], p["m1b"] = lin_p(ks[10], ks[11], 12, 20)        # Linear(12, 20)
    p["m2w"], p["m2b"] = lin_p(ks[12], ks[13], 20, final_d)   # Linear(20, final_d)
    return p


# ----------------------------------------------------------------------------
# Pure-JAX reference (exact PyTorch semantics) for a numerical self-check.
# ----------------------------------------------------------------------------
def _reference_forward(params, x_nchw):
    x = jnp.transpose(x_nchw, (0, 2, 3, 1))                   # NCHW -> NHWC

    def conv(h, w, b, s):
        y = jax.lax.conv_general_dilated(
            h, w, window_strides=(s, s), padding="VALID",
            dimension_numbers=("NHWC", "HWIO", "NHWC"))
        return jnp.maximum(y + b, 0.0)

    x = conv(x, params["c1w"], params["c1b"], 2)
    x = conv(x, params["c2w"], params["c2b"], 1)
    x = conv(x, params["c3w"], params["c3b"], 2)
    x = conv(x, params["c4w"], params["c4b"], 1)
    B = x.shape[0]
    x = jnp.transpose(x, (0, 3, 1, 2)).reshape(B, -1)         # PyTorch (C,H,W) flatten
    x = jnp.maximum(x @ params["efw"] + params["efb"], 0.0)
    x = jnp.maximum(x @ params["m1w"] + params["m1b"], 0.0)
    return x @ params["m2w"] + params["m2b"]


if __name__ == "__main__":
    final_d = 10
    key = jax.random.PRNGKey(0)
    k_param, k_x = jax.random.split(key)

    params = init_params(k_param, final_d)
    fused = build_fused_params(params, final_d)
    x = jax.random.normal(k_x, (2, 1, 28, 28), dtype=jnp.float32)   # NCHW

    fwd = jax.jit(lambda fp, xx: classifier_forward(fp, xx, final_d))
    out = jax.block_until_ready(fwd(fused, x))
    assert out.shape == (2, final_d), out.shape

    # Self-check against the exact XLA reference (bf16-operand tolerance).
    ref = jax.block_until_ready(_reference_forward(params, x))
    np.testing.assert_allclose(np.asarray(out), np.asarray(ref), rtol=5e-2, atol=2e-2)

    print("KERNEL_OK")
</pallas_src>

<mosaic_0001>
module attributes {stable_mosaic.version = 11 : i64} {
  func.func @_fused_classifier_kernel(%arg0: memref<2x896xf32, #tpu.memory_space<vmem>>, %arg1: memref<896x640xbf16, #tpu.memory_space<vmem>>, %arg2: memref<1x640xf32, #tpu.memory_space<vmem>>, %arg3: memref<640x896xbf16, #tpu.memory_space<vmem>>, %arg4: memref<1x896xf32, #tpu.memory_space<vmem>>, %arg5: memref<896x256xbf16, #tpu.memory_space<vmem>>, %arg6: memref<1x256xf32, #tpu.memory_space<vmem>>, %arg7: memref<256x128xbf16, #tpu.memory_space<vmem>>, %arg8: memref<1x128xf32, #tpu.memory_space<vmem>>, %arg9: memref<128x128xbf16, #tpu.memory_space<vmem>>, %arg10: memref<1x128xf32, #tpu.memory_space<vmem>>, %arg11: memref<128x128xbf16, #tpu.memory_space<vmem>>, %arg12: memref<1x128xf32, #tpu.memory_space<vmem>>, %arg13: memref<128x128xbf16, #tpu.memory_space<vmem>>, %arg14: memref<1x128xf32, #tpu.memory_space<vmem>>, %arg15: memref<2x128xf32, #tpu.memory_space<vmem>>) attributes {dimension_semantics = [], scalar_prefetch = 0 : i64, scratch_operands = 0 : i64, tpu.core_type = #tpu.core_type<tc>} {
    %c0 = arith.constant 0 : index
    %c0_0 = arith.constant 0 : index
    %0 = vector.load %arg0[%c0, %c0_0] : memref<2x896xf32, #tpu.memory_space<vmem>>, vector<2x896xf32>
    %1 = arith.truncf %0 : vector<2x896xf32> to vector<2x896xbf16>
    %c0_1 = arith.constant 0 : index
    %c0_2 = arith.constant 0 : index
    %2 = vector.load %arg1[%c0_1, %c0_2] : memref<896x640xbf16, #tpu.memory_space<vmem>>, vector<896x640xbf16>
    %cst = arith.constant dense<0.000000e+00> : vector<2x640xf32>
    %3 = tpu.matmul %1, %2, %cst {dimension_numbers = #tpu.dot_dimension_numbers<[1], [0], [0], [1], [0, 0, 1, 1], [], []>} : vector<2x896xbf16>, vector<896x640xbf16>, vector<2x640xf32> -> vector<2x640xf32>
    %c0_3 = arith.constant 0 : index
    %c0_4 = arith.constant 0 : index
    %4 = vector.load %arg2[%c0_3, %c0_4] : memref<1x640xf32, #tpu.memory_space<vmem>>, vector<1x640xf32>
    %5 = vector.broadcast %4 : vector<1x640xf32> to vector<2x640xf32>
    %6 = arith.addf %3, %5 : vector<2x640xf32>
    %cst_5 = arith.constant 0.000000e+00 : f32
    %7 = vector.broadcast %cst_5 : f32 to vector<2x640xf32>
    %8 = arith.maximumf %6, %7 : vector<2x640xf32>
    %9 = arith.truncf %8 : vector<2x640xf32> to vector<2x640xbf16>
    %c0_6 = arith.constant 0 : index
    %c0_7 = arith.constant 0 : index
    %10 = vector.load %arg3[%c0_6, %c0_7] : memref<640x896xbf16, #tpu.memory_space<vmem>>, vector<640x896xbf16>
    %cst_8 = arith.constant dense<0.000000e+00> : vector<2x896xf32>
    %11 = tpu.matmul %9, %10, %cst_8 {dimension_numbers = #tpu.dot_dimension_numbers<[1], [0], [0], [1], [0, 0, 1, 1], [], []>} : vector<2x640xbf16>, vector<640x896xbf16>, vector<2x896xf32> -> vector<2x896xf32>
    %c0_9 = arith.constant 0 : index
    %c0_10 = arith.constant 0 : index
    %12 = vector.load %arg4[%c0_9, %c0_10] : memref<1x896xf32, #tpu.memory_space<vmem>>, vector<1x896xf32>
    %13 = vector.broadcast %12 : vector<1x896xf32> to vector<2x896xf32>
    %14 = arith.addf %11, %13 : vector<2x896xf32>
    %cst_11 = arith.constant 0.000000e+00 : f32
    %15 = vector.broadcast %cst_11 : f32 to vector<2x896xf32>
    %16 = arith.maximumf %14, %15 : vector<2x896xf32>
    %17 = arith.truncf %16 : vector<2x896xf32> to vector<2x896xbf16>
    %c0_12 = arith.constant 0 : index
    %c0_13 = arith.constant 0 : index
    %18 = vector.load %arg5[%c0_12, %c0_13] : memref<896x256xbf16, #tpu.memory_space<vmem>>, vector<896x256xbf16>
    %cst_14 = arith.constant dense<0.000000e+00> : vector<2x256xf32>
    %19 = tpu.matmul %17, %18, %cst_14 {dimension_numbers = #tpu.dot_dimension_numbers<[1], [0], [0], [1], [0, 0, 1, 1], [], []>} : vector<2x896xbf16>, vector<896x256xbf16>, vector<2x256xf32> -> vector<2x256xf32>
    %c0_15 = arith.constant 0 : index
    %c0_16 = arith.constant 0 : index
    %20 = vector.load %arg6[%c0_15, %c0_16] : memref<1x256xf32, #tpu.memory_space<vmem>>, vector<1x256xf32>
    %21 = vector.broadcast %20 : vector<1x256xf32> to vector<2x256xf32>
    %22 = arith.addf %19, %21 : vector<2x256xf32>
    %cst_17 = arith.constant 0.000000e+00 : f32
    %23 = vector.broadcast %cst_17 : f32 to vector<2x256xf32>
    %24 = arith.maximumf %22, %23 : vector<2x256xf32>
    %25 = arith.truncf %24 : vector<2x256xf32> to vector<2x256xbf16>
    %c0_18 = arith.constant 0 : index
    %c0_19 = arith.constant 0 : index
    %26 = vector.load %arg7[%c0_18, %c0_19] : memref<256x128xbf16, #tpu.memory_space<vmem>>, vector<256x128xbf16>
    %cst_20 = arith.constant dense<0.000000e+00> : vector<2x128xf32>
    %27 = tpu.matmul %25, %26, %cst_20 {dimension_numbers = #tpu.dot_dimension_numbers<[1], [0], [0], [1], [0, 0, 1, 1], [], []>} : vector<2x256xbf16>, vector<256x128xbf16>, vector<2x128xf32> -> vector<2x128xf32>
    %c0_21 = arith.constant 0 : index
    %c0_22 = arith.constant 0 : index
    %28 = vector.load %arg8[%c0_21, %c0_22] : memref<1x128xf32, #tpu.memory_space<vmem>>, vector<1x128xf32>
    %29 = vector.broadcast %28 : vector<1x128xf32> to vector<2x128xf32>
    %30 = arith.addf %27, %29 : vector<2x128xf32>
    %cst_23 = arith.constant 0.000000e+00 : f32
    %31 = vector.broadcast %cst_23 : f32 to vector<2x128xf32>
    %32 = arith.maximumf %30, %31 : vector<2x128xf32>
    %33 = arith.truncf %32 : vector<2x128xf32> to vector<2x128xbf16>
    %c0_24 = arith.constant 0 : index
    %c0_25 = arith.constant 0 : index
    %34 = vector.load %arg9[%c0_24, %c0_25] : memref<128x128xbf16, #tpu.memory_space<vmem>>, vector<128x128xbf16>
    %cst_26 = arith.constant dense<0.000000e+00> : vector<2x128xf32>
    %35 = tpu.matmul %33, %34, %cst_26 {dimension_numbers = #tpu.dot_dimension_numbers<[1], [0], [0], [1], [0, 0, 1, 1], [], []>} : vector<2x128xbf16>, vector<128x128xbf16>, vector<2x128xf32> -> vector<2x128xf32>
    %c0_27 = arith.constant 0 : index
    %c0_28 = arith.constant 0 : index
    %36 = vector.load %arg10[%c0_27, %c0_28] : memref<1x128xf32, #tpu.memory_space<vmem>>, vector<1x128xf32>
    %37 = vector.broadcast %36 : vector<1x128xf32> to vector<2x128xf32>
    %38 = arith.addf %35, %37 : vector<2x128xf32>
    %cst_29 = arith.constant 0.000000e+00 : f32
    %39 = vector.broadcast %cst_29 : f32 to vector<2x128xf32>
    %40 = arith.maximumf %38, %39 : vector<2x128xf32>
    %41 = arith.truncf %40 : vector<2x128xf32> to vector<2x128xbf16>
    %c0_30 = arith.constant 0 : index
    %c0_31 = arith.constant 0 : index
    %42 = vector.load %arg11[%c0_30, %c0_31] : memref<128x128xbf16, #tpu.memory_space<vmem>>, vector<128x128xbf16>
    %cst_32 = arith.constant dense<0.000000e+00> : vector<2x128xf32>
    %43 = tpu.matmul %41, %42, %cst_32 {dimension_numbers = #tpu.dot_dimension_numbers<[1], [0], [0], [1], [0, 0, 1, 1], [], []>} : vector<2x128xbf16>, vector<128x128xbf16>, vector<2x128xf32> -> vector<2x128xf32>
    %c0_33 = arith.constant 0 : index
    %c0_34 = arith.constant 0 : index
    %44 = vector.load %arg12[%c0_33, %c0_34] : memref<1x128xf32, #tpu.memory_space<vmem>>, vector<1x128xf32>
    %45 = vector.broadcast %44 : vector<1x128xf32> to vector<2x128xf32>
    %46 = arith.addf %43, %45 : vector<2x128xf32>
    %cst_35 = arith.constant 0.000000e+00 : f32
    %47 = vector.broadcast %cst_35 : f32 to vector<2x128xf32>
    %48 = arith.maximumf %46, %47 : vector<2x128xf32>
    %49 = arith.truncf %48 : vector<2x128xf32> to vector<2x128xbf16>
    %c0_36 = arith.constant 0 : index
    %c0_37 = arith.constant 0 : index
    %50 = vector.load %arg13[%c0_36, %c0_37] : memref<128x128xbf16, #tpu.memory_space<vmem>>, vector<128x128xbf16>
    %cst_38 = arith.constant dense<0.000000e+00> : vector<2x128xf32>
    %51 = tpu.matmul %49, %50, %cst_38 {dimension_numbers = #tpu.dot_dimension_numbers<[1], [0], [0], [1], [0, 0, 1, 1], [], []>} : vector<2x128xbf16>, vector<128x128xbf16>, vector<2x128xf32> -> vector<2x128xf32>
    %c0_39 = arith.constant 0 : index
    %c0_40 = arith.constant 0 : index
    %52 = vector.load %arg14[%c0_39, %c0_40] : memref<1x128xf32, #tpu.memory_space<vmem>>, vector<1x128xf32>
    %53 = vector.broadcast %52 : vector<1x128xf32> to vector<2x128xf32>
    %54 = arith.addf %51, %53 : vector<2x128xf32>
    %c0_41 = arith.constant 0 : index
    %c0_42 = arith.constant 0 : index
    %55 = vector.load %arg15[%c0_41, %c0_42] : memref<2x128xf32, #tpu.memory_space<vmem>>, vector<2x128xf32>
    tpu.vector_store %arg15[%c0_41, %c0_42], %54 {strides = array<i32>} : memref<2x128xf32, #tpu.memory_space<vmem>>, vector<2x128xf32>,
    return
  }
}

</mosaic_0001>

<llo_original>
// kernel: _lambda_.1
$region0: #{_lambda_.1}
  #allocation0 [shape = 'u32[]', space=smem, size = 0x4, offset = 0x4, fixed_abs, tag = 'smem constant byte address 0x4 - core index']
  #allocation1 [shape = 'u32[144,128]{1,0:T(1,128)}', space=vmem, size = 0x12000, scoped, tag = 'internal scratch']
  %s0 = inlined_call_operand.vmem [shape: f32[2,896], index: 0, kind: input, shape index: {}]
  %s1 = inlined_call_operand.hbm [shape: bf16[896,640], index: 1, kind: input, shape index: {}]
  %s2 = inlined_call_operand.hbm [shape: f32[1,640], index: 2, kind: input, shape index: {}]
  %s3 = inlined_call_operand.hbm [shape: bf16[640,896], index: 3, kind: input, shape index: {}]
  %s4 = inlined_call_operand.hbm [shape: f32[1,896], index: 4, kind: input, shape index: {}]
  %s5 = inlined_call_operand.hbm [shape: bf16[896,256], index: 5, kind: input, shape index: {}]
  %s6 = inlined_call_operand.hbm [shape: f32[1,256], index: 6, kind: input, shape index: {}]
  %s7 = inlined_call_operand.hbm [shape: bf16[256,128], index: 7, kind: input, shape index: {}]
  %s8 = inlined_call_operand.hbm [shape: f32[1,128], index: 8, kind: input, shape index: {}]
  %s9 = inlined_call_operand.hbm [shape: bf16[128,128], index: 9, kind: input, shape index: {}]
  %s10 = inlined_call_operand.hbm [shape: f32[1,128], index: 10, kind: input, shape index: {}]
  %s11 = inlined_call_operand.hbm [shape: bf16[128,128], index: 11, kind: input, shape index: {}]
  %s12 = inlined_call_operand.hbm [shape: f32[1,128], index: 12, kind: input, shape index: {}]
  %s13 = inlined_call_operand.hbm [shape: bf16[128,128], index: 13, kind: input, shape index: {}]
  %s14 = inlined_call_operand.hbm [shape: f32[1,128], index: 14, kind: input, shape index: {}]
  %s15 = inlined_call_operand.hbm [shape: f32[2,128], index: 15, kind: output, shape index: {}]
  %s16 = sld [smem:[#allocation0]]
  $region126: #{_lambda_.1} parent=0
    _
  %s18 = ssub.s32 1, %s16
  %s19 = scalar_select 0, %s18, %s16
  $region1: #{_lambda_.1} parent=0
    #allocation2 [shape = 'u8[1146880]{0}', space=vmem, size = 0x118000, scoped, tag = 'input window, operand 1, single buffered']
    #allocation3 [shape = 's32[1]{0}', space=sflag, size = 0x4, scoped, tag = 'scoped memory for _lambda_.1']
    #allocation4 [shape = 's32[1]{0}', space=sflag, size = 0x4, scoped, tag = 'scoped memory for _lambda_.1']
    #allocation5 [shape = 'u8[2560]{0}', space=vmem, size = 0xc00, scoped, tag = 'input window, operand 2, single buffered']
    #allocation6 [shape = 's32[1]{0}', space=sflag, size = 0x4, scoped, tag = 'scoped memory for _lambda_.1']
    #allocation7 [shape = 'u8[1146880]{0}', space=vmem, size = 0x118000, scoped, tag = 'input window, operand 3, single buffered']
    #allocation8 [shape = 'u8[3584]{0}', space=vmem, size = 0x1000, scoped, tag = 'input window, operand 4, single buffered']
    #allocation9 [shape = 's32[1]{0}', space=sflag, size = 0x4, scoped, tag = 'scoped memory for _lambda_.1']
    #allocation10 [shape = 'u8[458752]{0}', space=vmem, size = 0x70000, scoped, tag = 'input window, operand 5, single buffered']
    #allocation11 [shape = 'u8[1024]{0}', space=vmem, size = 0x400, scoped, tag = 'input window, operand 6, single buffered']
    #allocation12 [shape = 's32[1]{0}', space=sflag, size = 0x4, scoped, tag = 'scoped memory for _lambda_.1']
    #allocation13 [shape = 'u8[65536]{0}', space=vmem, size = 0x10000, scoped, tag = 'input window, operand 7, single buffered']
    #allocation14 [shape = 'u8[512]{0}', space=vmem, size = 0x400, scoped, tag = 'input window, operand 8, single buffered']
    #allocation15 [shape = 's32[1]{0}', space=sflag, size = 0x4, scoped, tag = 'scoped memory for _lambda_.1']
    #allocation16 [shape = 'u8[32768]{0}', space=vmem, size = 0x8000, scoped, tag = 'input window, operand 9, single buffered']
    #allocation17 [shape = 'u8[512]{0}', space=vmem, size = 0x400, scoped, tag = 'input window, operand 10, single buffered']
    #allocation18 [shape = 's32[1]{0}', space=sflag, size = 0x4, scoped, tag = 'scoped memory for _lambda_.1']
    #allocation19 [shape = 'u8[32768]{0}', space=vmem, size = 0x8000, scoped, tag = 'input window, operand 11, single buffered']
    #allocation20 [shape = 'u8[512]{0}', space=vmem, size = 0x400, scoped, tag = 'input window, operand 12, single buffered']
    #allocation21 [shape = 's32[1]{0}', space=sflag, size = 0x4, scoped, tag = 'scoped memory for _lambda_.1']
    #allocation22 [shape = 'u8[32768]{0}', space=vmem, size = 0x8000, scoped, tag = 'input window, operand 13, single buffered']
    #allocation23 [shape = 'u8[512]{0}', space=vmem, size = 0x400, scoped, tag = 'input window, operand 14, single buffered']
    #allocation24 [shape = 's32[1]{0}', space=sflag, size = 0x4, scoped, tag = 'scoped memory for _lambda_.1']
    #allocation25 [shape = 'u8[1024]{0}', space=vmem, size = 0x400, scoped, tag = 'output window, operand 0, single buffered']
    %20 = vsyncpa [#allocation3], 0
    %21 = vsyncpa [#allocation6], 0
    %22 = vsyncpa [#allocation9], 0
    %23 = vsyncpa [#allocation12], 0
    %24 = vsyncpa [#allocation15], 0
    %25 = vsyncpa [#allocation18], 0
    %26 = vsyncpa [#allocation21], 0
    %27 = vsyncpa [#allocation24], 0
    %28 = vsyncpa [#allocation4], 0
    // Predicated region
    $region2: #{_lambda_.1} parent=1 // pred_check
      _
    $region3: #{_lambda_.1} parent=1 // pred_check_branch
      %30 = sbr.rel (0) target = $region5
    $region4: #{_lambda_.1} parent=1 // pred_region
      _
    $region5: #{_lambda_.1} parent=1 // pred_fallthru
      _
    // Predicated region
    $region6: #{_lambda_.1} parent=1 // pred_check
      _
    $region7: #{_lambda_.1} parent=1 // pred_check_branch
      %32 = sbr.rel (0) target = $region9
    $region8: #{_lambda_.1} parent=1 // pred_region
      %s34 = ssub.s32 35840, 35840
      %35 = vsyncadd [#allocation3], %s34
      %s36 = sshll.u32 [#allocation2], 4
      %s37 = int_to_ptr.vmem [resolvable:$true] %s36
      %42 = dma.hbm_to_vmem [thread:$0]  %s1, 35840, %s37, [#allocation3], 320, 320, 20
    $region9: #{_lambda_.1} parent=1 // pred_fallthru
      _
    // Predicated region
    $region10: #{_lambda_.1} parent=1 // pred_check
      _
    $region11: #{_lambda_.1} parent=1 // pred_check_branch
      %44 = sbr.rel (0) target = $region13
    $region12: #{_lambda_.1} parent=1 // pred_region
      %s46 = ssub.s32 80, 80
      %47 = vsyncadd [#allocation6], %s46
      %s49 = sshll.u32 [#allocation5], 4
      %s50 = int_to_ptr.vmem [resolvable:$true] %s49
      %52 = dma.hbm_to_vmem [thread:$0]  %s2, 80, %s50, [#allocation6]
    $region13: #{_lambda_.1} parent=1 // pred_fallthru
      _
    // Predicated region
    $region14: #{_lambda_.1} parent=1 // pred_check
      _
    $region15: #{_lambda_.1} parent=1 // pred_check_branch
      %54 = sbr.rel (0) target = $region17
    $region16: #{_lambda_.1} parent=1 // pred_region
      %s56 = ssub.s32 35840, 35840
      %57 = vsyncadd [#allocation6], %s56
      %s58 = sshll.u32 [#allocation7], 4
      %s59 = int_to_ptr.vmem [resolvable:$true] %s58
      %64 = dma.hbm_to_vmem [thread:$0]  %s3, 35840, %s59, [#allocation6], 448, 448, 28
    $region17: #{_lambda_.1} parent=1 // pred_fallthru
      _
    // Predicated region
    $region18: #{_lambda_.1} parent=1 // pred_check
      _
    $region19: #{_lambda_.1} parent=1 // pred_check_branch
      %66 = sbr.rel (0) target = $region21
    $region20: #{_lambda_.1} parent=1 // pred_region
      %s68 = ssub.s32 112, 112
      %69 = vsyncadd [#allocation9], %s68
      %s71 = sshll.u32 [#allocation8], 4
      %s72 = int_to_ptr.vmem [resolvable:$true] %s71
      %74 = dma.hbm_to_vmem [thread:$0]  %s4, 112, %s72, [#allocation9]
    $region21: #{_lambda_.1} parent=1 // pred_fallthru
      _
    // Predicated region
    $region22: #{_lambda_.1} parent=1 // pred_check
      _
    $region23: #{_lambda_.1} parent=1 // pred_check_branch
      %76 = sbr.rel (0) target = $region25
    $region24: #{_lambda_.1} parent=1 // pred_region
      %s78 = ssub.s32 14336, 14336
      %79 = vsyncadd [#allocation9], %s78
      %s80 = sshll.u32 [#allocation10], 4
      %s81 = int_to_ptr.vmem [resolvable:$true] %s80
      %86 = dma.hbm_to_vmem [thread:$0]  %s5, 14336, %s81, [#allocation9], 128, 128, 8
    $region25: #{_lambda_.1} parent=1 // pred_fallthru
      _
    // Predicated region
    $region26: #{_lambda_.1} parent=1 // pred_check
      _
    $region27: #{_lambda_.1} parent=1 // pred_check_branch
      %88 = sbr.rel (0) target = $region29
    $region28: #{_lambda_.1} parent=1 // pred_region
      %s90 = ssub.s32 32, 32
      %91 = vsyncadd [#allocation12], %s90
      %s93 = sshll.u32 [#allocation11], 4
      %s94 = int_to_ptr.vmem [resolvable:$true] %s93
      %96 = dma.hbm_to_vmem [thread:$0]  %s6, 32, %s94, [#allocation12]
    $region29: #{_lambda_.1} parent=1 // pred_fallthru
      _
    // Predicated region
    $region30: #{_lambda_.1} parent=1 // pred_check
      _
    $region31: #{_lambda_.1} parent=1 // pred_check_branch
      %98 = sbr.rel (0) target = $region33
    $region32: #{_lambda_.1} parent=1 // pred_region
      %s100 = ssub.s32 2048, 2048
      %101 = vsyncadd [#allocation12], %s100
      %s102 = sshll.u32 [#allocation13], 4
      %s103 = int_to_ptr.vmem [resolvable:$true] %s102
      %108 = dma.hbm_to_vmem [thread:$0]  %s7, 2048, %s103, [#allocation12], 64, 64, 4
    $region33: #{_lambda_.1} parent=1 // pred_fallthru
      _
    // Predicated region
    $region34: #{_lambda_.1} parent=1 // pred_check
      _
    $region35: #{_lambda_.1} parent=1 // pred_check_branch
      %110 = sbr.rel (0) target = $region37
    $region36: #{_lambda_.1} parent=1 // pred_region
      %s112 = ssub.s32 16, 16
      %113 = vsyncadd [#allocation15], %s112
      %s115 = sshll.u32 [#allocation14], 4
      %s116 = int_to_ptr.vmem [resolvable:$true] %s115
      %118 = dma.hbm_to_vmem [thread:$0]  %s8, 16, %s116, [#allocation15]
    $region37: #{_lambda_.1} parent=1 // pred_fallthru
      _
    // Predicated region
    $region38: #{_lambda_.1} parent=1 // pred_check
      _
    $region39: #{_lambda_.1} parent=1 // pred_check_branch
      %120 = sbr.rel (0) target = $region41
    $region40: #{_lambda_.1} parent=1 // pred_region
      %s122 = ssub.s32 1024, 1024
      %123 = vsyncadd [#allocation15], %s122
      %s124 = sshll.u32 [#allocation16], 4
      %s125 = int_to_ptr.vmem [resolvable:$true] %s124
      %130 = dma.hbm_to_vmem [thread:$0]  %s9, 1024, %s125, [#allocation15], 64, 64, 4
    $region41: #{_lambda_.1} parent=1 // pred_fallthru
      _
    // Predicated region
    $region42: #{_lambda_.1} parent=1 // pred_check
      _
    $region43: #{_lambda_.1} parent=1 // pred_check_branch
      %132 = sbr.rel (0) target = $region45
    $region44: #{_lambda_.1} parent=1 // pred_region
      %s134 = ssub.s32 16, 16
      %135 = vsyncadd [#allocation18], %s134
      %s137 = sshll.u32 [#allocation17], 4
      %s138 = int_to_ptr.vmem [resolvable:$true] %s137
      %140 = dma.hbm_to_vmem [thread:$0]  %s10, 16, %s138, [#allocation18]
    $region45: #{_lambda_.1} parent=1 // pred_fallthru
      _
    // Predicated region
    $region46: #{_lambda_.1} parent=1 // pred_check
      _
    $region47: #{_lambda_.1} parent=1 // pred_check_branch
      %142 = sbr.rel (0) target = $region49
    $region48: #{_lambda_.1} parent=1 // pred_region
      %s144 = ssub.s32 1024, 1024
      %145 = vsyncadd [#allocation18], %s144
      %s146 = sshll.u32 [#allocation19], 4
      %s147 = int_to_ptr.vmem [resolvable:$true] %s146
      %152 = dma.hbm_to_vmem [thread:$0]  %s11, 1024, %s147, [#allocation18], 64, 64, 4
    $region49: #{_lambda_.1} parent=1 // pred_fallthru
      _
    // Predicated region
    $region50: #{_lambda_.1} parent=1 // pred_check
      _
    $region51: #{_lambda_.1} parent=1 // pred_check_branch
      %154 = sbr.rel (0) target = $region53
    $region52: #{_lambda_.1} parent=1 // pred_region
      %s156 = ssub.s32 16, 16
      %157 = vsyncadd [#allocation21], %s156
      %s159 = sshll.u32 [#allocation20], 4
      %s160 = int_to_ptr.vmem [resolvable:$true] %s159
      %162 = dma.hbm_to_vmem [thread:$0]  %s12, 16, %s160, [#allocation21]
    $region53: #{_lambda_.1} parent=1 // pred_fallthru
      _
    // Predicated region
    $region54: #{_lambda_.1} parent=1 // pred_check
      _
    $region55: #{_lambda_.1} parent=1 // pred_check_branch
      %164 = sbr.rel (0) target = $region57
    $region56: #{_lambda_.1} parent=1 // pred_region
      %s166 = ssub.s32 1024, 1024
      %167 = vsyncadd [#allocation21], %s166
      %s168 = sshll.u32 [#allocation22], 4
      %s169 = int_to_ptr.vmem [resolvable:$true] %s168
      %174 = dma.hbm_to_vmem [thread:$0]  %s13, 1024, %s169, [#allocation21], 64, 64, 4
    $region57: #{_lambda_.1} parent=1 // pred_fallthru
      _
    // Predicated region
    $region58: #{_lambda_.1} parent=1 // pred_check
      _
    $region59: #{_lambda_.1} parent=1 // pred_check_branch
      %176 = sbr.rel (0) target = $region61
    $region60: #{_lambda_.1} parent=1 // pred_region
      %s178 = ssub.s32 16, 16
      %179 = vsyncadd [#allocation24], %s178
      %s181 = sshll.u32 [#allocation23], 4
      %s182 = int_to_ptr.vmem [resolvable:$true] %s181
      %184 = dma.hbm_to_vmem [thread:$0]  %s14, 16, %s182, [#allocation24]
    $region61: #{_lambda_.1} parent=1 // pred_fallthru
      _
    // Predicated region
    $region62: #{_lambda_.1} parent=1 // pred_check
      _
    $region63: #{_lambda_.1} parent=1 // pred_check_branch
      %186 = sbr.rel (0) target = $region65
    $region64: #{_lambda_.1} parent=1 // pred_region
      %187 = dma.done [#allocation3], 35840
    $region65: #{_lambda_.1} parent=1 // pred_fallthru
      _
    // Predicated region
    $region66: #{_lambda_.1} parent=1 // pred_check
      _
    $region67: #{_lambda_.1} parent=1 // pred_check_branch
      %189 = sbr.rel (0) target = $region69
    $region68: #{_lambda_.1} parent=1 // pred_region
      %190 = dma.done [#allocation6], 80
    $region69: #{_lambda_.1} parent=1 // pred_fallthru
      _
    // Predicated region
    $region70: #{_lambda_.1} parent=1 // pred_check
      _
    $region71: #{_lambda_.1} parent=1 // pred_check_branch
      %192 = sbr.rel (0) target = $region73
    $region72: #{_lambda_.1} parent=1 // pred_region
      %193 = dma.done [#allocation6], 35840
    $region73: #{_lambda_.1} parent=1 // pred_fallthru
      _
    // Predicated region
    $region74: #{_lambda_.1} parent=1 // pred_check
      _
    $region75: #{_lambda_.1} parent=1 // pred_check_branch
      %195 = sbr.rel (0) target = $region77
    $region76: #{_lambda_.1} parent=1 // pred_region
      %196 = dma.done [#allocation9], 112
    $region77: #{_lambda_.1} parent=1 // pred_fallthru
      _
    // Predicated region
    $region78: #{_lambda_.1} parent=1 // pred_check
      _
    $region79: #{_lambda_.1} parent=1 // pred_check_branch
      %198 = sbr.rel (0) target = $region81
    $region80: #{_lambda_.1} parent=1 // pred_region
      %199 = dma.done [#allocation9], 14336
    $region81: #{_lambda_.1} parent=1 // pred_fallthru
      _
    // Predicated region
    $region82: #{_lambda_.1} parent=1 // pred_check
      _
    $region83: #{_lambda_.1} parent=1 // pred_check_branch
      %201 = sbr.rel (0) target = $region85
    $region84: #{_lambda_.1} parent=1 // pred_region
      %202 = dma.done [#allocation12], 32
    $region85: #{_lambda_.1} parent=1 // pred_fallthru
      _
    // Predicated region
    $region86: #{_lambda_.1} parent=1 // pred_check
      _
    $region87: #{_lambda_.1} parent=1 // pred_check_branch
      %204 = sbr.rel (0) target = $region89
    $region88: #{_lambda_.1} parent=1 // pred_region
      %205 = dma.done [#allocation12], 2048
    $region89: #{_lambda_.1} parent=1 // pred_fallthru
      _
    // Predicated region
    $region90: #{_lambda_.1} parent=1 // pred_check
      _
    $region91: #{_lambda_.1} parent=1 // pred_check_branch
      %207 = sbr.rel (0) target = $region93
    $region92: #{_lambda_.1} parent=1 // pred_region
      %208 = dma.done [#allocation15], 16
    $region93: #{_lambda_.1} parent=1 // pred_fallthru
      _
    // Predicated region
    $region94: #{_lambda_.1} parent=1 // pred_check
      _
    $region95: #{_lambda_.1} parent=1 // pred_check_branch
      %210 = sbr.rel (0) target = $region97
    $region96: #{_lambda_.1} parent=1 // pred_region
      %211 = dma.done [#allocation15], 1024
    $region97: #{_lambda_.1} parent=1 // pred_fallthru
      _
    // Predicated region
    $region98: #{_lambda_.1} parent=1 // pred_check
      _
    $region99: #{_lambda_.1} parent=1 // pred_check_branch
      %213 = sbr.rel (0) target = $region101
    $region100: #{_lambda_.1} parent=1 // pred_region
      %214 = dma.done [#allocation18], 16
    $region101: #{_lambda_.1} parent=1 // pred_fallthru
      _
    // Predicated region
    $region102: #{_lambda_.1} parent=1 // pred_check
      _
    $region103: #{_lambda_.1} parent=1 // pred_check_branch
      %216 = sbr.rel (0) target = $region105
    $region104: #{_lambda_.1} parent=1 // pred_region
      %217 = dma.done [#allocation18], 1024
    $region105: #{_lambda_.1} parent=1 // pred_fallthru
      _
    // Predicated region
    $region106: #{_lambda_.1} parent=1 // pred_check
      _
    $region107: #{_lambda_.1} parent=1 // pred_check_branch
      %219 = sbr.rel (0) target = $region109
    $region108: #{_lambda_.1} parent=1 // pred_region
      %220 = dma.done [#allocation21], 16
    $region109: #{_lambda_.1} parent=1 // pred_fallthru
      _
    // Predicated region
    $region110: #{_lambda_.1} parent=1 // pred_check
      _
    $region111: #{_lambda_.1} parent=1 // pred_check_branch
      %222 = sbr.rel (0) target = $region113
    $region112: #{_lambda_.1} parent=1 // pred_region
      %223 = dma.done [#allocation21], 1024
    $region113: #{_lambda_.1} parent=1 // pred_fallthru
      _
    // Predicated region
    $region114: #{_lambda_.1} parent=1 // pred_check
      _
    $region115: #{_lambda_.1} parent=1 // pred_check_branch
      %225 = sbr.rel (0) target = $region117
    $region116: #{_lambda_.1} parent=1 // pred_region
      %226 = dma.done [#allocation24], 16
    $region117: #{_lambda_.1} parent=1 // pred_fallthru
      _
    %v228 = vld [vmem:[%s0] sm:$0xff]
    %v229 = vld [vmem:[%s0 + $0x8] sm:$0x3f]
    %v232 = vcombine.high %v228, %v228
    %v234 = vunpack.c.l.s4 1983009808
    %v235 = vunpack.c.0.s8 %v234
    %v236 = vlaneseq
    %v237 = vshrl.u32 %v236, 7
    %v238 = vsub.s32 %v235, %v237
    %v239 = vrot.slane %v228, %v238
    %v241 = vunpack.c.l.s4 1983009808
    %v242 = vunpack.c.0.s8 %v241
    %v243 = vlaneseq
    %v244 = vshrl.u32 %v243, 7
    %v245 = vsub.s32 %v242, %v244
    %v246 = vrot.slane %v232, %v245
    %v247 = vcombine.high %v239, %v239
    %v248 = vcombine.high %v246, %v246
    %v249 = vcombine.high %v229, %v229
    %v251 = vunpack.c.l.s4 1983009808
    %v252 = vunpack.c.0.s8 %v251
    %v253 = vlaneseq
    %v254 = vshrl.u32 %v253, 7
    %v255 = vsub.s32 %v252, %v254
    %v256 = vrot.slane %v229, %v255
    %v258 = vunpack.c.l.s4 1983009808
    %v259 = vunpack.c.0.s8 %v258
    %v260 = vlaneseq
    %v261 = vshrl.u32 %v260, 7
    %v262 = vsub.s32 %v259, %v261
    %v263 = vrot.slane %v249, %v262
    %v264 = vcombine.high %v256, %v256
    %v272 = vpack.c.bf16 %v239, %v239
    %v273 = vpack.c.bf16 %v247, %v247
    %v274 = vpack.c.bf16 %v246, %v246
    %v275 = vpack.c.bf16 %v248, %v248
    %v276 = vpack.c.bf16 %v256, %v256
    %v277 = vpack.c.bf16 %v264, %v264
    %v278 = vpack.c.bf16 %v263, %v263
    %v279 = vld [vmem:[#allocation2] sm:$0xff]
    %v280 = vld [vmem:[#allocation2 + $0x8] sm:$0xff]
    %v281 = vld [vmem:[#allocation2 + $0x10] sm:$0xf]
    %v282 = vld [vmem:[#allocation2 + $0x14] sm:$0xff]
    %v283 = vld [vmem:[#allocation2 + $0x1c] sm:$0xff]
    %v284 = vld [vmem:[#allocation2 + $0x24] sm:$0xf]
    %v285 = vld [vmem:[#allocation2 + $0x28] sm:$0xff]
    %v286 = vld [vmem:[#allocation2 + $0x30] sm:$0xff]
    %v287 = vld [vmem:[#allocation2 + $0x38] sm:$0xf]
    %v288 = vld [vmem:[#allocation2 + $0x3c] sm:$0xff]
    %v289 = vld [vmem:[#allocation2 + $0x44] sm:$0xff]
    %v290 = vld [vmem:[#allocation2 + $0x4c] sm:$0xf]
    %v291 = vld [vmem:[#allocation2 + $0x50] sm:$0xff]
    %v292 = vld [vmem:[#allocation2 + $0x58] sm:$0xff]
    %v293 = vld [vmem:[#allocation2 + $0x60] sm:$0xf]
    %v294 = vld [vmem:[#allocation2 + $0x64] sm:$0xff]
    %v295 = vld [vmem:[#allocation2 + $0x6c] sm:$0xff]
    %v296 = vld [vmem:[#allocation2 + $0x74] sm:$0xf]
    %v297 = vld [vmem:[#allocation2 + $0x78] sm:$0xff]
    %v298 = vld [vmem:[#allocation2 + $0x80] sm:$0xff]
    %v299 = vld [vmem:[#allocation2 + $0x88] sm:$0xf]
    %v300 = vld [vmem:[#allocation2 + $0x8c] sm:$0xff]
    %v301 = vld [vmem:[#allocation2 + $0x94] sm:$0xff]
    %v302 = vld [vmem:[#allocation2 + $0x9c] sm:$0xf]
    %v303 = vld [vmem:[#allocation2 + $0xa0] sm:$0xff]
    %v304 = vld [vmem:[#allocation2 + $0xa8] sm:$0xff]
    %v305 = vld [vmem:[#allocation2 + $0xb0] sm:$0xf]
    %v306 = vld [vmem:[#allocation2 + $0xb4] sm:$0xff]
    %v307 = vld [vmem:[#allocation2 + $0xbc] sm:$0xff]
    %v308 = vld [vmem:[#allocation2 + $0xc4] sm:$0xf]
    %v309 = vld [vmem:[#allocation2 + $0xc8] sm:$0xff]
    %v310 = vld [vmem:[#allocation2 + $0xd0] sm:$0xff]
    %v311 = vld [vmem:[#allocation2 + $0xd8] sm:$0xf]
    %v312 = vld [vmem:[#allocation2 + $0xdc] sm:$0xff]
    %v313 = vld [vmem:[#allocation2 + $0xe4] sm:$0xff]
    %v314 = vld [vmem:[#allocation2 + $0xec] sm:$0xf]
    %v315 = vld [vmem:[#allocation2 + $0xf0] sm:$0xff]
    %v316 = vld [vmem:[#allocation2 + $0xf8] sm:$0xff]
    %v317 = vld [vmem:[#allocation2 + $0x100] sm:$0xf]
    %v318 = vld [vmem:[#allocation2 + $0x104] sm:$0xff]
    %v319 = vld [vmem:[#allocation2 + $0x10c] sm:$0xff]
    %v320 = vld [vmem:[#allocation2 + $0x114] sm:$0xf]
    %v321 = vld [vmem:[#allocation2 + $0x118] sm:$0xff]
    %v322 = vld [vmem:[#allocation2 + $0x120] sm:$0xff]
    %v323 = vld [vmem:[#allocation2 + $0x128] sm:$0xf]
    %v324 = vld [vmem:[#allocation2 + $0x12c] sm:$0xff]
    %v325 = vld [vmem:[#allocation2 + $0x134] sm:$0xff]
    %v326 = vld [vmem:[#allocation2 + $0x13c] sm:$0xf]
    %v327 = vld [vmem:[#allocation2 + $0x140] sm:$0xff]
    %v328 = vld [vmem:[#allocation2 + $0x148] sm:$0xff]
    %v329 = vld [vmem:[#allocation2 + $0x150] sm:$0xf]
    %v330 = vld [vmem:[#allocation2 + $0x154] sm:$0xff]
    %v331 = vld [vmem:[#allocation2 + $0x15c] sm:$0xff]
    %v332 = vld [vmem:[#allocation2 + $0x164] sm:$0xf]
    %v333 = vld [vmem:[#allocation2 + $0x168] sm:$0xff]
    %v334 = vld [vmem:[#allocation2 + $0x170] sm:$0xff]
    %v335 = vld [vmem:[#allocation2 + $0x178] sm:$0xf]
    %v336 = vld [vmem:[#allocation2 + $0x17c] sm:$0xff]
    %v337 = vld [vmem:[#allocation2 + $0x184] sm:$0xff]
    %v338 = vld [vmem:[#allocation2 + $0x18c] sm:$0xf]
    %v339 = vld [vmem:[#allocation2 + $0x190] sm:$0xff]
    %v340 = vld [vmem:[#allocation2 + $0x198] sm:$0xff]
    %v341 = vld [vmem:[#allocation2 + $0x1a0] sm:$0xf]
    %v342 = vld [vmem:[#allocation2 + $0x1a4] sm:$0xff]
    %v343 = vld [vmem:[#allocation2 + $0x1ac] sm:$0xff]
    %v344 = vld [vmem:[#allocation2 + $0x1b4] sm:$0xf]
    %v345 = vld [vmem:[#allocation2 + $0x1b8] sm:$0xff]
    %v346 = vld [vmem:[#allocation2 + $0x1c0] sm:$0xff]
    %v347 = vld [vmem:[#allocation2 + $0x1c8] sm:$0xf]
    %v348 = vld [vmem:[#allocation2 + $0x1cc] sm:$0xff]
    %v349 = vld [vmem:[#allocation2 + $0x1d4] sm:$0xff]
    %v350 = vld [vmem:[#allocation2 + $0x1dc] sm:$0xf]
    %v351 = vld [vmem:[#allocation2 + $0x1e0] sm:$0xff]
    %v352 = vld [vmem:[#allocation2 + $0x1e8] sm:$0xff]
    %v353 = vld [vmem:[#allocation2 + $0x1f0] sm:$0xf]
    %v354 = vld [vmem:[#allocation2 + $0x1f4] sm:$0xff]
    %v355 = vld [vmem:[#allocation2 + $0x1fc] sm:$0xff]
    %v356 = vld [vmem:[#allocation2 + $0x204] sm:$0xf]
    %v357 = vld [vmem:[#allocation2 + $0x208] sm:$0xff]
    %v358 = vld [vmem:[#allocation2 + $0x210] sm:$0xff]
    %v359 = vld [vmem:[#allocation2 + $0x218] sm:$0xf]
    %v360 = vld [vmem:[#allocation2 + $0x21c] sm:$0xff]
    %v361 = vld [vmem:[#allocation2 + $0x224] sm:$0xff]
    %v362 = vld [vmem:[#allocation2 + $0x22c] sm:$0xf]
    %v363 = vld [vmem:[#allocation2 + $0x230] sm:$0xff]
    %v364 = vld [vmem:[#allocation2 + $0x238] sm:$0xff]
    %v365 = vld [vmem:[#allocation2 + $0x240] sm:$0xf]
    %v366 = vld [vmem:[#allocation2 + $0x244] sm:$0xff]
    %v367 = vld [vmem:[#allocation2 + $0x24c] sm:$0xff]
    %v368 = vld [vmem:[#allocation2 + $0x254] sm:$0xf]
    %v369 = vld [vmem:[#allocation2 + $0x258] sm:$0xff]
    %v370 = vld [vmem:[#allocation2 + $0x260] sm:$0xff]
    %v371 = vld [vmem:[#allocation2 + $0x268] sm:$0xf]
    %v372 = vld [vmem:[#allocation2 + $0x26c] sm:$0xff]
    %v373 = vld [vmem:[#allocation2 + $0x274] sm:$0xff]
    %v374 = vld [vmem:[#allocation2 + $0x27c] sm:$0xf]
    %v375 = vld [vmem:[#allocation2 + $0x280] sm:$0xff]
    %v376 = vld [vmem:[#allocation2 + $0x288] sm:$0xff]
    %v377 = vld [vmem:[#allocation2 + $0x290] sm:$0xf]
    %v378 = vld [vmem:[#allocation2 + $0x294] sm:$0xff]
    %v379 = vld [vmem:[#allocation2 + $0x29c] sm:$0xff]
    %v380 = vld [vmem:[#allocation2 + $0x2a4] sm:$0xf]
    %v381 = vld [vmem:[#allocation2 + $0x2a8] sm:$0xff]
    %v382 = vld [vmem:[#allocation2 + $0x2b0] sm:$0xff]
    %v383 = vld [vmem:[#allocation2 + $0x2b8] sm:$0xf]
    %v384 = vld [vmem:[#allocation2 + $0x2bc] sm:$0xff]
    %v385 = vld [vmem:[#allocation2 + $0x2c4] sm:$0xff]
    %v386 = vld [vmem:[#allocation2 + $0x2cc] sm:$0xf]
    %v387 = vld [vmem:[#allocation2 + $0x2d0] sm:$0xff]
    %v388 = vld [vmem:[#allocation2 + $0x2d8] sm:$0xff]
    %v389 = vld [vmem:[#allocation2 + $0x2e0] sm:$0xf]
    %v390 = vld [vmem:[#allocation2 + $0x2e4] sm:$0xff]
    %v391 = vld [vmem:[#allocation2 + $0x2ec] sm:$0xff]
    %v392 = vld [vmem:[#allocation2 + $0x2f4] sm:$0xf]
    %v393 = vld [vmem:[#allocation2 + $0x2f8] sm:$0xff]
    %v394 = vld [vmem:[#allocation2 + $0x300] sm:$0xff]
    %v395 = vld [vmem:[#allocation2 + $0x308] sm:$0xf]
    %v396 = vld [vmem:[#allocation2 + $0x30c] sm:$0xff]
    %v397 = vld [vmem:[#allocation2 + $0x314] sm:$0xff]
    %v398 = vld [vmem:[#allocation2 + $0x31c] sm:$0xf]
    %v399 = vld [vmem:[#allocation2 + $0x320] sm:$0xff]
    %v400 = vld [vmem:[#allocation2 + $0x328] sm:$0xff]
    %v401 = vld [vmem:[#allocation2 + $0x330] sm:$0xf]
    %v402 = vld [vmem:[#allocation2 + $0x334] sm:$0xff]
    %v403 = vld [vmem:[#allocation2 + $0x33c] sm:$0xff]
    %v404 = vld [vmem:[#allocation2 + $0x344] sm:$0xf]
    %v405 = vld [vmem:[#allocation2 + $0x348] sm:$0xff]
    %v406 = vld [vmem:[#allocation2 + $0x350] sm:$0xff]
    %v407 = vld [vmem:[#allocation2 + $0x358] sm:$0xf]
    %v408 = vld [vmem:[#allocation2 + $0x35c] sm:$0xff]
    %v409 = vld [vmem:[#allocation2 + $0x364] sm:$0xff]
    %v410 = vld [vmem:[#allocation2 + $0x36c] sm:$0xf]
    %v411 = vld [vmem:[#allocation2 + $0x370] sm:$0xff]
    %v412 = vld [vmem:[#allocation2 + $0x378] sm:$0xff]
    %v413 = vld [vmem:[#allocation2 + $0x380] sm:$0xf]
    %v414 = vld [vmem:[#allocation2 + $0x384] sm:$0xff]
    %v415 = vld [vmem:[#allocation2 + $0x38c] sm:$0xff]
    %v416 = vld [vmem:[#allocation2 + $0x394] sm:$0xf]
    %v417 = vld [vmem:[#allocation2 + $0x398] sm:$0xff]
    %v418 = vld [vmem:[#allocation2 + $0x3a0] sm:$0xff]
    %v419 = vld [vmem:[#allocation2 + $0x3a8] sm:$0xf]
    %v420 = vld [vmem:[#allocation2 + $0x3ac] sm:$0xff]
    %v421 = vld [vmem:[#allocation2 + $0x3b4] sm:$0xff]
    %v422 = vld [vmem:[#allocation2 + $0x3bc] sm:$0xf]
    %v423 = vld [vmem:[#allocation2 + $0x3c0] sm:$0xff]
    %v424 = vld [vmem:[#allocation2 + $0x3c8] sm:$0xff]
    %v425 = vld [vmem:[#allocation2 + $0x3d0] sm:$0xf]
    %v426 = vld [vmem:[#allocation2 + $0x3d4] sm:$0xff]
    %v427 = vld [vmem:[#allocation2 + $0x3dc] sm:$0xff]
    %v428 = vld [vmem:[#allocation2 + $0x3e4] sm:$0xf]
    %v429 = vld [vmem:[#allocation2 + $0x3e8] sm:$0xff]
    %v430 = vld [vmem:[#allocation2 + $0x3f0] sm:$0xff]
    %v431 = vld [vmem:[#allocation2 + $0x3f8] sm:$0xf]
    %v432 = vld [vmem:[#allocation2 + $0x3fc] sm:$0xff]
    %v433 = vld [vmem:[#allocation2 + $0x404] sm:$0xff]
    %v434 = vld [vmem:[#allocation2 + $0x40c] sm:$0xf]
    %v435 = vld [vmem:[#allocation2 + $0x410] sm:$0xff]
    %v436 = vld [vmem:[#allocation2 + $0x418] sm:$0xff]
    %v437 = vld [vmem:[#allocation2 + $0x420] sm:$0xf]
    %v438 = vld [vmem:[#allocation2 + $0x424] sm:$0xff]
    %v439 = vld [vmem:[#allocation2 + $0x42c] sm:$0xff]
    %v440 = vld [vmem:[#allocation2 + $0x434] sm:$0xf]
    %v441 = vld [vmem:[#allocation2 + $0x438] sm:$0xff]
    %v442 = vld [vmem:[#allocation2 + $0x440] sm:$0xff]
    %v443 = vld [vmem:[#allocation2 + $0x448] sm:$0xf]
    %v444 = vld [vmem:[#allocation2 + $0x44c] sm:$0xff]
    %v445 = vld [vmem:[#allocation2 + $0x454] sm:$0xff]
    %v446 = vld [vmem:[#allocation2 + $0x45c] sm:$0xf]
    %v447 = vld [vmem:[#allocation2 + $0x460] sm:$0xff]
    %v448 = vld [vmem:[#allocation2 + $0x468] sm:$0xff]
    %v449 = vld [vmem:[#allocation2 + $0x470] sm:$0xf]
    %v450 = vld [vmem:[#allocation2 + $0x474] sm:$0xff]
    %v451 = vld [vmem:[#allocation2 + $0x47c] sm:$0xff]
    %v452 = vld [vmem:[#allocation2 + $0x484] sm:$0xf]
    %v453 = vld [vmem:[#allocation2 + $0x488] sm:$0xff]
    %v454 = vld [vmem:[#allocation2 + $0x490] sm:$0xff]
    %v455 = vld [vmem:[#allocation2 + $0x498] sm:$0xf]
    %v456 = vld [vmem:[#allocation2 + $0x49c] sm:$0xff]
    %v457 = vld [vmem:[#allocation2 + $0x4a4] sm:$0xff]
    %v458 = vld [vmem:[#allocation2 + $0x4ac] sm:$0xf]
    %v459 = vld [vmem:[#allocation2 + $0x4b0] sm:$0xff]
    %v460 = vld [vmem:[#allocation2 + $0x4b8] sm:$0xff]
    %v461 = vld [vmem:[#allocation2 + $0x4c0] sm:$0xf]
    %v462 = vld [vmem:[#allocation2 + $0x4c4] sm:$0xff]
    %v463 = vld [vmem:[#allocation2 + $0x4cc] sm:$0xff]
    %v464 = vld [vmem:[#allocation2 + $0x4d4] sm:$0xf]
    %v465 = vld [vmem:[#allocation2 + $0x4d8] sm:$0xff]
    %v466 = vld [vmem:[#allocation2 + $0x4e0] sm:$0xff]
    %v467 = vld [vmem:[#allocation2 + $0x4e8] sm:$0xf]
    %v468 = vld [vmem:[#allocation2 + $0x4ec] sm:$0xff]
    %v469 = vld [vmem:[#allocation2 + $0x4f4] sm:$0xff]
    %v470 = vld [vmem:[#allocation2 + $0x4fc] sm:$0xf]
    %v471 = vld [vmem:[#allocation2 + $0x500] sm:$0xff]
    %v472 = vld [vmem:[#allocation2 + $0x508] sm:$0xff]
    %v473 = vld [vmem:[#allocation2 + $0x510] sm:$0xf]
    %v474 = vld [vmem:[#allocation2 + $0x514] sm:$0xff]
    %v475 = vld [vmem:[#allocation2 + $0x51c] sm:$0xff]
    %v476 = vld [vmem:[#allocation2 + $0x524] sm:$0xf]
    %v477 = vld [vmem:[#allocation2 + $0x528] sm:$0xff]
    %v478 = vld [vmem:[#allocation2 + $0x530] sm:$0xff]
    %v479 = vld [vmem:[#allocation2 + $0x538] sm:$0xf]
    %v480 = vld [vmem:[#allocation2 + $0x53c] sm:$0xff]
    %v481 = vld [vmem:[#allocation2 + $0x544] sm:$0xff]
    %v482 = vld [vmem:[#allocation2 + $0x54c] sm:$0xf]
    %v483 = vld [vmem:[#allocation2 + $0x550] sm:$0xff]
    %v484 = vld [vmem:[#allocation2 + $0x558] sm:$0xff]
    %v485 = vld [vmem:[#allocation2 + $0x560] sm:$0xf]
    %v486 = vld [vmem:[#allocation2 + $0x564] sm:$0xff]
    %v487 = vld [vmem:[#allocation2 + $0x56c] sm:$0xff]
    %v488 = vld [vmem:[#allocation2 + $0x574] sm:$0xf]
    %v489 = vld [vmem:[#allocation2 + $0x578] sm:$0xff]
    %v490 = vld [vmem:[#allocation2 + $0x580] sm:$0xff]
    %v491 = vld [vmem:[#allocation2 + $0x588] sm:$0xf]
    %v492 = vld [vmem:[#allocation2 + $0x58c] sm:$0xff]
    %v493 = vld [vmem:[#allocation2 + $0x594] sm:$0xff]
    %v494 = vld [vmem:[#allocation2 + $0x59c] sm:$0xf]
    %v495 = vld [vmem:[#allocation2 + $0x5a0] sm:$0xff]
    %v496 = vld [vmem:[#allocation2 + $0x5a8] sm:$0xff]
    %v497 = vld [vmem:[#allocation2 + $0x5b0] sm:$0xf]
    %v498 = vld [vmem:[#allocation2 + $0x5b4] sm:$0xff]
    %v499 = vld [vmem:[#allocation2 + $0x5bc] sm:$0xff]
    %v500 = vld [vmem:[#allocation2 + $0x5c4] sm:$0xf]
    %v501 = vld [vmem:[#allocation2 + $0x5c8] sm:$0xff]
    %v502 = vld [vmem:[#allocation2 + $0x5d0] sm:$0xff]
    %v503 = vld [vmem:[#allocation2 + $0x5d8] sm:$0xf]
    %v504 = vld [vmem:[#allocation2 + $0x5dc] sm:$0xff]
    %v505 = vld [vmem:[#allocation2 + $0x5e4] sm:$0xff]
    %v506 = vld [vmem:[#allocation2 + $0x5ec] sm:$0xf]
    %v507 = vld [vmem:[#allocation2 + $0x5f0] sm:$0xff]
    %v508 = vld [vmem:[#allocation2 + $0x5f8] sm:$0xff]
    %v509 = vld [vmem:[#allocation2 + $0x600] sm:$0xf]
    %v510 = vld [vmem:[#allocation2 + $0x604] sm:$0xff]
    %v511 = vld [vmem:[#allocation2 + $0x60c] sm:$0xff]
    %v512 = vld [vmem:[#allocation2 + $0x614] sm:$0xf]
    %v513 = vld [vmem:[#allocation2 + $0x618] sm:$0xff]
    %v514 = vld [vmem:[#allocation2 + $0x620] sm:$0xff]
    %v515 = vld [vmem:[#allocation2 + $0x628] sm:$0xf]
    %v516 = vld [vmem:[#allocation2 + $0x62c] sm:$0xff]
    %v517 = vld [vmem:[#allocation2 + $0x634] sm:$0xff]
    %v518 = vld [vmem:[#allocation2 + $0x63c] sm:$0xf]
    %v519 = vld [vmem:[#allocation2 + $0x640] sm:$0xff]
    %v520 = vld [vmem:[#allocation2 + $0x648] sm:$0xff]
    %v521 = vld [vmem:[#allocation2 + $0x650] sm:$0xf]
    %v522 = vld [vmem:[#allocation2 + $0x654] sm:$0xff]
    %v523 = vld [vmem:[#allocation2 + $0x65c] sm:$0xff]
    %v524 = vld [vmem:[#allocation2 + $0x664] sm:$0xf]
    %v525 = vld [vmem:[#allocation2 + $0x668] sm:$0xff]
    %v526 = vld [vmem:[#allocation2 + $0x670] sm:$0xff]
    %v527 = vld [vmem:[#allocation2 + $0x678] sm:$0xf]
    %v528 = vld [vmem:[#allocation2 + $0x67c] sm:$0xff]
    %v529 = vld [vmem:[#allocation2 + $0x684] sm:$0xff]
    %v530 = vld [vmem:[#allocation2 + $0x68c] sm:$0xf]
    %v531 = vld [vmem:[#allocation2 + $0x690] sm:$0xff]
    %v532 = vld [vmem:[#allocation2 + $0x698] sm:$0xff]
    %v533 = vld [vmem:[#allocation2 + $0x6a0] sm:$0xf]
    %v534 = vld [vmem:[#allocation2 + $0x6a4] sm:$0xff]
    %v535 = vld [vmem:[#allocation2 + $0x6ac] sm:$0xff]
    %v536 = vld [vmem:[#allocation2 + $0x6b4] sm:$0xf]
    %v537 = vld [vmem:[#allocation2 + $0x6b8] sm:$0xff]
    %v538 = vld [vmem:[#allocation2 + $0x6c0] sm:$0xff]
    %v539 = vld [vmem:[#allocation2 + $0x6c8] sm:$0xf]
    %v540 = vld [vmem:[#allocation2 + $0x6cc] sm:$0xff]
    %v541 = vld [vmem:[#allocation2 + $0x6d4] sm:$0xff]
    %v542 = vld [vmem:[#allocation2 + $0x6dc] sm:$0xf]
    %v543 = vld [vmem:[#allocation2 + $0x6e0] sm:$0xff]
    %v544 = vld [vmem:[#allocation2 + $0x6e8] sm:$0xff]
    %v545 = vld [vmem:[#allocation2 + $0x6f0] sm:$0xf]
    %v546 = vld [vmem:[#allocation2 + $0x6f4] sm:$0xff]
    %v547 = vld [vmem:[#allocation2 + $0x6fc] sm:$0xff]
    %v548 = vld [vmem:[#allocation2 + $0x704] sm:$0xf]
    %v549 = vld [vmem:[#allocation2 + $0x708] sm:$0xff]
    %v550 = vld [vmem:[#allocation2 + $0x710] sm:$0xff]
    %v551 = vld [vmem:[#allocation2 + $0x718] sm:$0xf]
    %v552 = vld [vmem:[#allocation2 + $0x71c] sm:$0xff]
    %v553 = vld [vmem:[#allocation2 + $0x724] sm:$0xff]
    %v554 = vld [vmem:[#allocation2 + $0x72c] sm:$0xf]
    %v555 = vld [vmem:[#allocation2 + $0x730] sm:$0xff]
    %v556 = vld [vmem:[#allocation2 + $0x738] sm:$0xff]
    %v557 = vld [vmem:[#allocation2 + $0x740] sm:$0xf]
    %v558 = vld [vmem:[#allocation2 + $0x744] sm:$0xff]
    %v559 = vld [vmem:[#allocation2 + $0x74c] sm:$0xff]
    %v560 = vld [vmem:[#allocation2 + $0x754] sm:$0xf]
    %v561 = vld [vmem:[#allocation2 + $0x758] sm:$0xff]
    %v562 = vld [vmem:[#allocation2 + $0x760] sm:$0xff]
    %v563 = vld [vmem:[#allocation2 + $0x768] sm:$0xf]
    %v564 = vld [vmem:[#allocation2 + $0x76c] sm:$0xff]
    %v565 = vld [vmem:[#allocation2 + $0x774] sm:$0xff]
    %v566 = vld [vmem:[#allocation2 + $0x77c] sm:$0xf]
    %v567 = vld [vmem:[#allocation2 + $0x780] sm:$0xff]
    %v568 = vld [vmem:[#allocation2 + $0x788] sm:$0xff]
    %v569 = vld [vmem:[#allocation2 + $0x790] sm:$0xf]
    %v570 = vld [vmem:[#allocation2 + $0x794] sm:$0xff]
    %v571 = vld [vmem:[#allocation2 + $0x79c] sm:$0xff]
    %v572 = vld [vmem:[#allocation2 + $0x7a4] sm:$0xf]
    %v573 = vld [vmem:[#allocation2 + $0x7a8] sm:$0xff]
    %v574 = vld [vmem:[#allocation2 + $0x7b0] sm:$0xff]
    %v575 = vld [vmem:[#allocation2 + $0x7b8] sm:$0xf]
    %v576 = vld [vmem:[#allocation2 + $0x7bc] sm:$0xff]
    %v577 = vld [vmem:[#allocation2 + $0x7c4] sm:$0xff]
    %v578 = vld [vmem:[#allocation2 + $0x7cc] sm:$0xf]
    %v579 = vld [vmem:[#allocation2 + $0x7d0] sm:$0xff]
    %v580 = vld [vmem:[#allocation2 + $0x7d8] sm:$0xff]
    %v581 = vld [vmem:[#allocation2 + $0x7e0] sm:$0xf]
    %v582 = vld [vmem:[#allocation2 + $0x7e4] sm:$0xff]
    %v583 = vld [vmem:[#allocation2 + $0x7ec] sm:$0xff]
    %v584 = vld [vmem:[#allocation2 + $0x7f4] sm:$0xf]
    %v585 = vld [vmem:[#allocation2 + $0x7f8] sm:$0xff]
    %v586 = vld [vmem:[#allocation2 + $0x800] sm:$0xff]
    %v587 = vld [vmem:[#allocation2 + $0x808] sm:$0xf]
    %v588 = vld [vmem:[#allocation2 + $0x80c] sm:$0xff]
    %v589 = vld [vmem:[#allocation2 + $0x814] sm:$0xff]
    %v590 = vld [vmem:[#allocation2 + $0x81c] sm:$0xf]
    %v591 = vld [vmem:[#allocation2 + $0x820] sm:$0xff]
    %v592 = vld [vmem:[#allocation2 + $0x828] sm:$0xff]
    %v593 = vld [vmem:[#allocation2 + $0x830] sm:$0xf]
    %v594 = vld [vmem:[#allocation2 + $0x834] sm:$0xff]
    %v595 = vld [vmem:[#allocation2 + $0x83c] sm:$0xff]
    %v596 = vld [vmem:[#allocation2 + $0x844] sm:$0xf]
    %v597 = vld [vmem:[#allocation2 + $0x848] sm:$0xff]
    %v598 = vld [vmem:[#allocation2 + $0x850] sm:$0xff]
    %v599 = vld [vmem:[#allocation2 + $0x858] sm:$0xf]
    %v600 = vld [vmem:[#allocation2 + $0x85c] sm:$0xff]
    %v601 = vld [vmem:[#allocation2 + $0x864] sm:$0xff]
    %v602 = vld [vmem:[#allocation2 + $0x86c] sm:$0xf]
    %v603 = vld [vmem:[#allocation2 + $0x870] sm:$0xff]
    %v604 = vld [vmem:[#allocation2 + $0x878] sm:$0xff]
    %v605 = vld [vmem:[#allocation2 + $0x880] sm:$0xf]
    %v606 = vld [vmem:[#allocation2 + $0x884] sm:$0xff]
    %v607 = vld [vmem:[#allocation2 + $0x88c] sm:$0xff]
    %v608 = vld [vmem:[#allocation2 + $0x894] sm:$0xf]
    %v609 = vld [vmem:[#allocation2 + $0x898] sm:$0xff]
    %v610 = vld [vmem:[#allocation2 + $0x8a0] sm:$0xff]
    %v611 = vld [vmem:[#allocation2 + $0x8a8] sm:$0xf]
    %v612 = vld [vmem:[#allocation2 + $0x8ac] sm:$0xff]
    %v613 = vld [vmem:[#allocation2 + $0x8b4] sm:$0xff]
    %v614 = vld [vmem:[#allocation2 + $0x8bc] sm:$0xf]
    %v615 = vld [vmem:[#allocation5] sm:$0x1f]
    %v617 = vlaneseq
    %v618 = vshrl.u32 %v617, 7
    %v619 = vsub.s32 0, %v618
    %v620 = vrot.slane %v615, %v619
    %v621 = vlaneseq
    %v622 = vshrl.u32 %v621, 7
    %v623 = vsub.s32 1, %v622
    %v624 = vrot.slane %v615, %v623
    %v625 = vlaneseq
    %v626 = vshrl.u32 %v625, 7
    %v627 = vsub.s32 2, %v626
    %v628 = vrot.slane %v615, %v627
    %v629 = vlaneseq
    %v630 = vshrl.u32 %v629, 7
    %v631 = vsub.s32 3, %v630
    %v632 = vrot.slane %v615, %v631
    %v633 = vlaneseq
    %v634 = vshrl.u32 %v633, 7
    %v635 = vsub.s32 4, %v634
    %v636 = vrot.slane %v615, %v635
    %v978 = vunpack.c.l.b16 %v279
    %v979 = vunpack.c.h.b16 %v279
    %v980 = vunpack.c.l.b16 %v280
    %v981 = vunpack.c.h.b16 %v280
    %v982 = vunpack.c.l.b16 %v281
    %v983 = vunpack.c.l.b16 %v282
    %v984 = vunpack.c.h.b16 %v282
    %v985 = vunpack.c.l.b16 %v283
    %v986 = vunpack.c.h.b16 %v283
    %v987 = vunpack.c.l.b16 %v284
    %v988 = vunpack.c.l.b16 %v285
    %v989 = vunpack.c.h.b16 %v285
    %v990 = vunpack.c.l.b16 %v286
    %v991 = vunpack.c.h.b16 %v286
    %v992 = vunpack.c.l.b16 %v287
    %v993 = vunpack.c.l.b16 %v288
    %v994 = vunpack.c.h.b16 %v288
    %v995 = vunpack.c.l.b16 %v289
    %v996 = vunpack.c.h.b16 %v289
    %v997 = vunpack.c.l.b16 %v290
    %v998 = vunpack.c.l.b16 %v291
    %v999 = vunpack.c.h.b16 %v291
    %v1000 = vunpack.c.l.b16 %v292
    %v1001 = vunpack.c.h.b16 %v292
    %v1002 = vunpack.c.l.b16 %v293
    %v1003 = vunpack.c.l.b16 %v294
    %v1004 = vunpack.c.h.b16 %v294
    %v1005 = vunpack.c.l.b16 %v295
    %v1006 = vunpack.c.h.b16 %v295
    %v1007 = vunpack.c.l.b16 %v296
    %v1008 = vunpack.c.l.b16 %v297
    %v1009 = vunpack.c.h.b16 %v297
    %v1010 = vunpack.c.l.b16 %v298
    %v1011 = vunpack.c.h.b16 %v298
    %v1012 = vunpack.c.l.b16 %v299
    %v1013 = vunpack.c.l.b16 %v300
    %v1014 = vunpack.c.h.b16 %v300
    %v1015 = vunpack.c.l.b16 %v301
    %v1016 = vunpack.c.h.b16 %v301
    %v1017 = vunpack.c.l.b16 %v302
    %v1018 = vunpack.c.l.b16 %v303
    %v1019 = vunpack.c.h.b16 %v303
    %v1020 = vunpack.c.l.b16 %v304
    %v1021 = vunpack.c.h.b16 %v304
    %v1022 = vunpack.c.l.b16 %v305
    %v1023 = vunpack.c.l.b16 %v306
    %v1024 = vunpack.c.h.b16 %v306
    %v1025 = vunpack.c.l.b16 %v307
    %v1026 = vunpack.c.h.b16 %v307
    %v1027 = vunpack.c.l.b16 %v308
    %v1028 = vunpack.c.l.b16 %v309
    %v1029 = vunpack.c.h.b16 %v309
    %v1030 = vunpack.c.l.b16 %v310
    %v1031 = vunpack.c.h.b16 %v310
    %v1032 = vunpack.c.l.b16 %v311
    %v1033 = vunpack.c.l.b16 %v312
    %v1034 = vunpack.c.h.b16 %v312
    %v1035 = vunpack.c.l.b16 %v313
    %v1036 = vunpack.c.h.b16 %v313
    %v1037 = vunpack.c.l.b16 %v314
    %v1038 = vunpack.c.l.b16 %v315
    %v1039 = vunpack.c.h.b16 %v315
    %v1040 = vunpack.c.l.b16 %v316
    %v1041 = vunpack.c.h.b16 %v316
    %v1042 = vunpack.c.l.b16 %v317
    %v1043 = vunpack.c.l.b16 %v318
    %v1044 = vunpack.c.h.b16 %v318
    %v1045 = vunpack.c.l.b16 %v319
    %v1046 = vunpack.c.h.b16 %v319
    %v1047 = vunpack.c.l.b16 %v320
    %v1048 = vunpack.c.l.b16 %v321
    %v1049 = vunpack.c.h.b16 %v321
    %v1050 = vunpack.c.l.b16 %v322
    %v1051 = vunpack.c.h.b16 %v322
    %v1052 = vunpack.c.l.b16 %v323
    %v1053 = vunpack.c.l.b16 %v324
    %v1054 = vunpack.c.h.b16 %v324
    %v1055 = vunpack.c.l.b16 %v325
    %v1056 = vunpack.c.h.b16 %v325
    %v1057 = vunpack.c.l.b16 %v326
    %v1058 = vunpack.c.l.b16 %v327
    %v1059 = vunpack.c.h.b16 %v327
    %v1060 = vunpack.c.l.b16 %v328
    %v1061 = vunpack.c.h.b16 %v328
    %v1062 = vunpack.c.l.b16 %v329
    %v1063 = vunpack.c.l.b16 %v330
    %v1064 = vunpack.c.h.b16 %v330
    %v1065 = vunpack.c.l.b16 %v331
    %v1066 = vunpack.c.h.b16 %v331
    %v1067 = vunpack.c.l.b16 %v332
    %v1068 = vunpack.c.l.b16 %v333
    %v1069 = vunpack.c.h.b16 %v333
    %v1070 = vunpack.c.l.b16 %v334
    %v1071 = vunpack.c.h.b16 %v334
    %v1072 = vunpack.c.l.b16 %v335
    %v1073 = vunpack.c.l.b16 %v336
    %v1074 = vunpack.c.h.b16 %v336
    %v1075 = vunpack.c.l.b16 %v337
    %v1076 = vunpack.c.h.b16 %v337
    %v1077 = vunpack.c.l.b16 %v338
    %v1078 = vunpack.c.l.b16 %v339
    %v1079 = vunpack.c.h.b16 %v339
    %v1080 = vunpack.c.l.b16 %v340
    %v1081 = vunpack.c.h.b16 %v340
    %v1082 = vunpack.c.l.b16 %v341
    %v1083 = vunpack.c.l.b16 %v342
    %v1084 = vunpack.c.h.b16 %v342
    %v1085 = vunpack.c.l.b16 %v343
    %v1086 = vunpack.c.h.b16 %v343
    %v1087 = vunpack.c.l.b16 %v344
    %v1088 = vunpack.c.l.b16 %v345
    %v1089 = vunpack.c.h.b16 %v345
    %v1090 = vunpack.c.l.b16 %v346
    %v1091 = vunpack.c.h.b16 %v346
    %v1092 = vunpack.c.l.b16 %v347
    %v1093 = vunpack.c.l.b16 %v348
    %v1094 = vunpack.c.h.b16 %v348
    %v1095 = vunpack.c.l.b16 %v349
    %v1096 = vunpack.c.h.b16 %v349
    %v1097 = vunpack.c.l.b16 %v350
    %v1098 = vunpack.c.l.b16 %v351
    %v1099 = vunpack.c.h.b16 %v351
    %v1100 = vunpack.c.l.b16 %v352
    %v1101 = vunpack.c.h.b16 %v352
    %v1102 = vunpack.c.l.b16 %v353
    %v1103 = vunpack.c.l.b16 %v354
    %v1104 = vunpack.c.h.b16 %v354
    %v1105 = vunpack.c.l.b16 %v355
    %v1106 = vunpack.c.h.b16 %v355
    %v1107 = vunpack.c.l.b16 %v356
    %v1108 = vunpack.c.l.b16 %v357
    %v1109 = vunpack.c.h.b16 %v357
    %v1110 = vunpack.c.l.b16 %v358
    %v1111 = vunpack.c.h.b16 %v358
    %v1112 = vunpack.c.l.b16 %v359
    %v1113 = vunpack.c.l.b16 %v360
    %v1114 = vunpack.c.h.b16 %v360
    %v1115 = vunpack.c.l.b16 %v361
    %v1116 = vunpack.c.h.b16 %v361
    %v1117 = vunpack.c.l.b16 %v362
    %v1118 = vunpack.c.l.b16 %v363
    %v1119 = vunpack.c.h.b16 %v363
    %v1120 = vunpack.c.l.b16 %v364
    %v1121 = vunpack.c.h.b16 %v364
    %v1122 = vunpack.c.l.b16 %v365
    %v1123 = vunpack.c.l.b16 %v366
    %v1124 = vunpack.c.h.b16 %v366
    %v1125 = vunpack.c.l.b16 %v367
    %v1126 = vunpack.c.h.b16 %v367
    %v1127 = vunpack.c.l.b16 %v368
    %v1128 = vunpack.c.l.b16 %v369
    %v1129 = vunpack.c.h.b16 %v369
    %v1130 = vunpack.c.l.b16 %v370
    %v1131 = vunpack.c.h.b16 %v370
    %v1132 = vunpack.c.l.b16 %v371
    %v1133 = vunpack.c.l.b16 %v372
    %v1134 = vunpack.c.h.b16 %v372
    %v1135 = vunpack.c.l.b16 %v373
    %v1136 = vunpack.c.h.b16 %v373
    %v1137 = vunpack.c.l.b16 %v374
    %v1138 = vunpack.c.l.b16 %v375
    %v1139 = vunpack.c.h.b16 %v375
    %v1140 = vunpack.c.l.b16 %v376
    %v1141 = vunpack.c.h.b16 %v376
    %v1142 = vunpack.c.l.b16 %v377
    %v1143 = vunpack.c.l.b16 %v378
    %v1144 = vunpack.c.h.b16 %v378
    %v1145 = vunpack.c.l.b16 %v379
    %v1146 = vunpack.c.h.b16 %v379
    %v1147 = vunpack.c.l.b16 %v380
    %v1148 = vunpack.c.l.b16 %v381
    %v1149 = vunpack.c.h.b16 %v381
    %v1150 = vunpack.c.l.b16 %v382
    %v1151 = vunpack.c.h.b16 %v382
    %v1152 = vunpack.c.l.b16 %v383
    %v1153 = vunpack.c.l.b16 %v384
    %v1154 = vunpack.c.h.b16 %v384
    %v1155 = vunpack.c.l.b16 %v385
    %v1156 = vunpack.c.h.b16 %v385
    %v1157 = vunpack.c.l.b16 %v386
    %v1158 = vunpack.c.l.b16 %v387
    %v1159 = vunpack.c.h.b16 %v387
    %v1160 = vunpack.c.l.b16 %v388
    %v1161 = vunpack.c.h.b16 %v388
    %v1162 = vunpack.c.l.b16 %v389
    %v1163 = vunpack.c.l.b16 %v390
    %v1164 = vunpack.c.h.b16 %v390
    %v1165 = vunpack.c.l.b16 %v391
    %v1166 = vunpack.c.h.b16 %v391
    %v1167 = vunpack.c.l.b16 %v392
    %v1168 = vunpack.c.l.b16 %v393
    %v1169 = vunpack.c.h.b16 %v393
    %v1170 = vunpack.c.l.b16 %v394
    %v1171 = vunpack.c.h.b16 %v394
    %v1172 = vunpack.c.l.b16 %v395
    %v1173 = vunpack.c.l.b16 %v396
    %v1174 = vunpack.c.h.b16 %v396
    %v1175 = vunpack.c.l.b16 %v397
    %v1176 = vunpack.c.h.b16 %v397
    %v1177 = vunpack.c.l.b16 %v398
    %v1178 = vunpack.c.l.b16 %v399
    %v1179 = vunpack.c.h.b16 %v399
    %v1180 = vunpack.c.l.b16 %v400
    %v1181 = vunpack.c.h.b16 %v400
    %v1182 = vunpack.c.l.b16 %v401
    %v1183 = vunpack.c.l.b16 %v402
    %v1184 = vunpack.c.h.b16 %v402
    %v1185 = vunpack.c.l.b16 %v403
    %v1186 = vunpack.c.h.b16 %v403
    %v1187 = vunpack.c.l.b16 %v404
    %v1188 = vunpack.c.l.b16 %v405
    %v1189 = vunpack.c.h.b16 %v405
    %v1190 = vunpack.c.l.b16 %v406
    %v1191 = vunpack.c.h.b16 %v406
    %v1192 = vunpack.c.l.b16 %v407
    %v1193 = vunpack.c.l.b16 %v408
    %v1194 = vunpack.c.h.b16 %v408
    %v1195 = vunpack.c.l.b16 %v409
    %v1196 = vunpack.c.h.b16 %v409
    %v1197 = vunpack.c.l.b16 %v410
    %v1198 = vunpack.c.l.b16 %v411
    %v1199 = vunpack.c.h.b16 %v411
    %v1200 = vunpack.c.l.b16 %v412
    %v1201 = vunpack.c.h.b16 %v412
    %v1202 = vunpack.c.l.b16 %v413
    %v1203 = vunpack.c.l.b16 %v414
    %v1204 = vunpack.c.h.b16 %v414
    %v1205 = vunpack.c.l.b16 %v415
    %v1206 = vunpack.c.h.b16 %v415
    %v1207 = vunpack.c.l.b16 %v416
    %v1208 = vunpack.c.l.b16 %v417
    %v1209 = vunpack.c.h.b16 %v417
    %v1210 = vunpack.c.l.b16 %v418
    %v1211 = vunpack.c.h.b16 %v418
    %v1212 = vunpack.c.l.b16 %v419
    %v1213 = vunpack.c.l.b16 %v420
    %v1214 = vunpack.c.h.b16 %v420
    %v1215 = vunpack.c.l.b16 %v421
    %v1216 = vunpack.c.h.b16 %v421
    %v1217 = vunpack.c.l.b16 %v422
    %v1218 = vunpack.c.l.b16 %v423
    %v1219 = vunpack.c.h.b16 %v423
    %v1220 = vunpack.c.l.b16 %v424
    %v1221 = vunpack.c.h.b16 %v424
    %v1222 = vunpack.c.l.b16 %v425
    %v1223 = vunpack.c.l.b16 %v426
    %v1224 = vunpack.c.h.b16 %v426
    %v1225 = vunpack.c.l.b16 %v427
    %v1226 = vunpack.c.h.b16 %v427
    %v1227 = vunpack.c.l.b16 %v428
    %v1228 = vunpack.c.l.b16 %v429
    %v1229 = vunpack.c.h.b16 %v429
    %v1230 = vunpack.c.l.b16 %v430
    %v1231 = vunpack.c.h.b16 %v430
    %v1232 = vunpack.c.l.b16 %v431
    %v1233 = vunpack.c.l.b16 %v432
    %v1234 = vunpack.c.h.b16 %v432
    %v1235 = vunpack.c.l.b16 %v433
    %v1236 = vunpack.c.h.b16 %v433
    %v1237 = vunpack.c.l.b16 %v434
    %v1238 = vunpack.c.l.b16 %v435
    %v1239 = vunpack.c.h.b16 %v435
    %v1240 = vunpack.c.l.b16 %v436
    %v1241 = vunpack.c.h.b16 %v436
    %v1242 = vunpack.c.l.b16 %v437
    %v1243 = vunpack.c.l.b16 %v438
    %v1244 = vunpack.c.h.b16 %v438
    %v1245 = vunpack.c.l.b16 %v439
    %v1246 = vunpack.c.h.b16 %v439
    %v1247 = vunpack.c.l.b16 %v440
    %v1248 = vunpack.c.l.b16 %v441
    %v1249 = vunpack.c.h.b16 %v441
    %v1250 = vunpack.c.l.b16 %v442
    %v1251 = vunpack.c.h.b16 %v442
    %v1252 = vunpack.c.l.b16 %v443
    %v1253 = vunpack.c.l.b16 %v444
    %v1254 = vunpack.c.h.b16 %v444
    %v1255 = vunpack.c.l.b16 %v445
    %v1256 = vunpack.c.h.b16 %v445
    %v1257 = vunpack.c.l.b16 %v446
    %v1258 = vunpack.c.l.b16 %v447
    %v1259 = vunpack.c.h.b16 %v447
    %v1260 = vunpack.c.l.b16 %v448
    %v1261 = vunpack.c.h.b16 %v448
    %v1262 = vunpack.c.l.b16 %v449
    %v1263 = vunpack.c.l.b16 %v450
    %v1264 = vunpack.c.h.b16 %v450
    %v1265 = vunpack.c.l.b16 %v451
    %v1266 = vunpack.c.h.b16 %v451
    %v1267 = vunpack.c.l.b16 %v452
    %v1268 = vunpack.c.l.b16 %v453
    %v1269 = vunpack.c.h.b16 %v453
    %v1270 = vunpack.c.l.b16 %v454
    %v1271 = vunpack.c.h.b16 %v454
    %v1272 = vunpack.c.l.b16 %v455
    %v1273 = vunpack.c.l.b16 %v456
    %v1274 = vunpack.c.h.b16 %v456
    %v1275 = vunpack.c.l.b16 %v457
    %v1276 = vunpack.c.h.b16 %v457
    %v1277 = vunpack.c.l.b16 %v458
    %v1278 = vunpack.c.l.b16 %v459
    %v1279 = vunpack.c.h.b16 %v459
    %v1280 = vunpack.c.l.b16 %v460
    %v1281 = vunpack.c.h.b16 %v460
    %v1282 = vunpack.c.l.b16 %v461
    %v1283 = vunpack.c.l.b16 %v462
    %v1284 = vunpack.c.h.b16 %v462
    %v1285 = vunpack.c.l.b16 %v463
    %v1286 = vunpack.c.h.b16 %v463
    %v1287 = vunpack.c.l.b16 %v464
    %v1288 = vunpack.c.l.b16 %v465
    %v1289 = vunpack.c.h.b16 %v465
    %v1290 = vunpack.c.l.b16 %v466
    %v1291 = vunpack.c.h.b16 %v466
    %v1292 = vunpack.c.l.b16 %v467
    %v1293 = vunpack.c.l.b16 %v468
    %v1294 = vunpack.c.h.b16 %v468
    %v1295 = vunpack.c.l.b16 %v469
    %v1296 = vunpack.c.h.b16 %v469
    %v1297 = vunpack.c.l.b16 %v470
    %v1298 = vunpack.c.l.b16 %v471
    %v1299 = vunpack.c.h.b16 %v471
    %v1300 = vunpack.c.l.b16 %v472
    %v1301 = vunpack.c.h.b16 %v472
    %v1302 = vunpack.c.l.b16 %v473
    %v1303 = vunpack.c.l.b16 %v474
    %v1304 = vunpack.c.h.b16 %v474
    %v1305 = vunpack.c.l.b16 %v475
    %v1306 = vunpack.c.h.b16 %v475
    %v1307 = vunpack.c.l.b16 %v476
    %v1308 = vunpack.c.l.b16 %v477
    %v1309 = vunpack.c.h.b16 %v477
    %v1310 = vunpack.c.l.b16 %v478
    %v1311 = vunpack.c.h.b16 %v478
    %v1312 = vunpack.c.l.b16 %v479
    %v1313 = vunpack.c.l.b16 %v480
    %v1314 = vunpack.c.h.b16 %v480
    %v1315 = vunpack.c.l.b16 %v481
    %v1316 = vunpack.c.h.b16 %v481
    %v1317 = vunpack.c.l.b16 %v482
    %v1318 = vunpack.c.l.b16 %v483
    %v1319 = vunpack.c.h.b16 %v483
    %v1320 = vunpack.c.l.b16 %v484
    %v1321 = vunpack.c.h.b16 %v484
    %v1322 = vunpack.c.l.b16 %v485
    %v1323 = vunpack.c.l.b16 %v486
    %v1324 = vunpack.c.h.b16 %v486
    %v1325 = vunpack.c.l.b16 %v487
    %v1326 = vunpack.c.h.b16 %v487
    %v1327 = vunpack.c.l.b16 %v488
    %v1328 = vunpack.c.l.b16 %v489
    %v1329 = vunpack.c.h.b16 %v489
    %v1330 = vunpack.c.l.b16 %v490
    %v1331 = vunpack.c.h.b16 %v490
    %v1332 = vunpack.c.l.b16 %v491
    %v1333 = vunpack.c.l.b16 %v492
    %v1334 = vunpack.c.h.b16 %v492
    %v1335 = vunpack.c.l.b16 %v493
    %v1336 = vunpack.c.h.b16 %v493
    %v1337 = vunpack.c.l.b16 %v494
    %v1338 = vunpack.c.l.b16 %v495
    %v1339 = vunpack.c.h.b16 %v495
    %v1340 = vunpack.c.l.b16 %v496
    %v1341 = vunpack.c.h.b16 %v496
    %v1342 = vunpack.c.l.b16 %v497
    %v1343 = vunpack.c.l.b16 %v498
    %v1344 = vunpack.c.h.b16 %v498
    %v1345 = vunpack.c.l.b16 %v499
    %v1346 = vunpack.c.h.b16 %v499
    %v1347 = vunpack.c.l.b16 %v500
    %v1348 = vunpack.c.l.b16 %v501
    %v1349 = vunpack.c.h.b16 %v501
    %v1350 = vunpack.c.l.b16 %v502
    %v1351 = vunpack.c.h.b16 %v502
    %v1352 = vunpack.c.l.b16 %v503
    %v1353 = vunpack.c.l.b16 %v504
    %v1354 = vunpack.c.h.b16 %v504
    %v1355 = vunpack.c.l.b16 %v505
    %v1356 = vunpack.c.h.b16 %v505
    %v1357 = vunpack.c.l.b16 %v506
    %v1358 = vunpack.c.l.b16 %v507
    %v1359 = vunpack.c.h.b16 %v507
    %v1360 = vunpack.c.l.b16 %v508
    %v1361 = vunpack.c.h.b16 %v508
    %v1362 = vunpack.c.l.b16 %v509
    %v1363 = vunpack.c.l.b16 %v510
    %v1364 = vunpack.c.h.b16 %v510
    %v1365 = vunpack.c.l.b16 %v511
    %v1366 = vunpack.c.h.b16 %v511
    %v1367 = vunpack.c.l.b16 %v512
    %v1368 = vunpack.c.l.b16 %v513
    %v1369 = vunpack.c.h.b16 %v513
    %v1370 = vunpack.c.l.b16 %v514
    %v1371 = vunpack.c.h.b16 %v514
    %v1372 = vunpack.c.l.b16 %v515
    %v1373 = vunpack.c.l.b16 %v516
    %v1374 = vunpack.c.h.b16 %v516
    %v1375 = vunpack.c.l.b16 %v517
    %v1376 = vunpack.c.h.b16 %v517
    %v1377 = vunpack.c.l.b16 %v518
    %v1378 = vunpack.c.l.b16 %v519
    %v1379 = vunpack.c.h.b16 %v519
    %v1380 = vunpack.c.l.b16 %v520
    %v1381 = vunpack.c.h.b16 %v520
    %v1382 = vunpack.c.l.b16 %v521
    %v1383 = vunpack.c.l.b16 %v522
    %v1384 = vunpack.c.h.b16 %v522
    %v1385 = vunpack.c.l.b16 %v523
    %v1386 = vunpack.c.h.b16 %v523
    %v1387 = vunpack.c.l.b16 %v524
    %v1388 = vunpack.c.l.b16 %v525
    %v1389 = vunpack.c.h.b16 %v525
    %v1390 = vunpack.c.l.b16 %v526
    %v1391 = vunpack.c.h.b16 %v526
    %v1392 = vunpack.c.l.b16 %v527
    %v1393 = vunpack.c.l.b16 %v528
    %v1394 = vunpack.c.h.b16 %v528
    %v1395 = vunpack.c.l.b16 %v529
    %v1396 = vunpack.c.h.b16 %v529
    %v1397 = vunpack.c.l.b16 %v530
    %v1398 = vunpack.c.l.b16 %v531
    %v1399 = vunpack.c.h.b16 %v531
    %v1400 = vunpack.c.l.b16 %v532
    %v1401 = vunpack.c.h.b16 %v532
    %v1402 = vunpack.c.l.b16 %v533
    %v1403 = vunpack.c.l.b16 %v534
    %v1404 = vunpack.c.h.b16 %v534
    %v1405 = vunpack.c.l.b16 %v535
    %v1406 = vunpack.c.h.b16 %v535
    %v1407 = vunpack.c.l.b16 %v536
    %v1408 = vunpack.c.l.b16 %v537
    %v1409 = vunpack.c.h.b16 %v537
    %v1410 = vunpack.c.l.b16 %v538
    %v1411 = vunpack.c.h.b16 %v538
    %v1412 = vunpack.c.l.b16 %v539
    %v1413 = vunpack.c.l.b16 %v540
    %v1414 = vunpack.c.h.b16 %v540
    %v1415 = vunpack.c.l.b16 %v541
    %v1416 = vunpack.c.h.b16 %v541
    %v1417 = vunpack.c.l.b16 %v542
    %v1418 = vunpack.c.l.b16 %v543
    %v1419 = vunpack.c.h.b16 %v543
    %v1420 = vunpack.c.l.b16 %v544
    %v1421 = vunpack.c.h.b16 %v544
    %v1422 = vunpack.c.l.b16 %v545
    %v1423 = vunpack.c.l.b16 %v546
    %v1424 = vunpack.c.h.b16 %v546
    %v1425 = vunpack.c.l.b16 %v547
    %v1426 = vunpack.c.h.b16 %v547
    %v1427 = vunpack.c.l.b16 %v548
    %v1428 = vunpack.c.l.b16 %v549
    %v1429 = vunpack.c.h.b16 %v549
    %v1430 = vunpack.c.l.b16 %v550
    %v1431 = vunpack.c.h.b16 %v550
    %v1432 = vunpack.c.l.b16 %v551
    %v1433 = vunpack.c.l.b16 %v552
    %v1434 = vunpack.c.h.b16 %v552
    %v1435 = vunpack.c.l.b16 %v553
    %v1436 = vunpack.c.h.b16 %v553
    %v1437 = vunpack.c.l.b16 %v554
    %v1438 = vunpack.c.l.b16 %v555
    %v1439 = vunpack.c.h.b16 %v555
    %v1440 = vunpack.c.l.b16 %v556
    %v1441 = vunpack.c.h.b16 %v556
    %v1442 = vunpack.c.l.b16 %v557
    %v1443 = vunpack.c.l.b16 %v558
    %v1444 = vunpack.c.h.b16 %v558
    %v1445 = vunpack.c.l.b16 %v559
    %v1446 = vunpack.c.h.b16 %v559
    %v1447 = vunpack.c.l.b16 %v560
    %v1448 = vunpack.c.l.b16 %v561
    %v1449 = vunpack.c.h.b16 %v561
    %v1450 = vunpack.c.l.b16 %v562
    %v1451 = vunpack.c.h.b16 %v562
    %v1452 = vunpack.c.l.b16 %v563
    %v1453 = vunpack.c.l.b16 %v564
    %v1454 = vunpack.c.h.b16 %v564
    %v1455 = vunpack.c.l.b16 %v565
    %v1456 = vunpack.c.h.b16 %v565
    %v1457 = vunpack.c.l.b16 %v566
    %v1458 = vunpack.c.l.b16 %v567
    %v1459 = vunpack.c.h.b16 %v567
    %v1460 = vunpack.c.l.b16 %v568
    %v1461 = vunpack.c.h.b16 %v568
    %v1462 = vunpack.c.l.b16 %v569
    %v1463 = vunpack.c.l.b16 %v570
    %v1464 = vunpack.c.h.b16 %v570
    %v1465 = vunpack.c.l.b16 %v571
    %v1466 = vunpack.c.h.b16 %v571
    %v1467 = vunpack.c.l.b16 %v572
    %v1468 = vunpack.c.l.b16 %v573
    %v1469 = vunpack.c.h.b16 %v573
    %v1470 = vunpack.c.l.b16 %v574
    %v1471 = vunpack.c.h.b16 %v574
    %v1472 = vunpack.c.l.b16 %v575
    %v1473 = vunpack.c.l.b16 %v576
    %v1474 = vunpack.c.h.b16 %v576
    %v1475 = vunpack.c.l.b16 %v577
    %v1476 = vunpack.c.h.b16 %v577
    %v1477 = vunpack.c.l.b16 %v578
    %v1478 = vunpack.c.l.b16 %v579
    %v1479 = vunpack.c.h.b16 %v579
    %v1480 = vunpack.c.l.b16 %v580
    %v1481 = vunpack.c.h.b16 %v580
    %v1482 = vunpack.c.l.b16 %v581
    %v1483 = vunpack.c.l.b16 %v582
    %v1484 = vunpack.c.h.b16 %v582
    %v1485 = vunpack.c.l.b16 %v583
    %v1486 = vunpack.c.h.b16 %v583
    %v1487 = vunpack.c.l.b16 %v584
    %v1488 = vunpack.c.l.b16 %v585
    %v1489 = vunpack.c.h.b16 %v585
    %v1490 = vunpack.c.l.b16 %v586
    %v1491 = vunpack.c.h.b16 %v586
    %v1492 = vunpack.c.l.b16 %v587
    %v1493 = vunpack.c.l.b16 %v588
    %v1494 = vunpack.c.h.b16 %v588
    %v1495 = vunpack.c.l.b16 %v589
    %v1496 = vunpack.c.h.b16 %v589
    %v1497 = vunpack.c.l.b16 %v590
    %v1498 = vunpack.c.l.b16 %v591
    %v1499 = vunpack.c.h.b16 %v591
    %v1500 = vunpack.c.l.b16 %v592
    %v1501 = vunpack.c.h.b16 %v592
    %v1502 = vunpack.c.l.b16 %v593
    %v1503 = vunpack.c.l.b16 %v594
    %v1504 = vunpack.c.h.b16 %v594
    %v1505 = vunpack.c.l.b16 %v595
    %v1506 = vunpack.c.h.b16 %v595
    %v1507 = vunpack.c.l.b16 %v596
    %v1508 = vunpack.c.l.b16 %v597
    %v1509 = vunpack.c.h.b16 %v597
    %v1510 = vunpack.c.l.b16 %v598
    %v1511 = vunpack.c.h.b16 %v598
    %v1512 = vunpack.c.l.b16 %v599
    %v1513 = vunpack.c.l.b16 %v600
    %v1514 = vunpack.c.h.b16 %v600
    %v1515 = vunpack.c.l.b16 %v601
    %v1516 = vunpack.c.h.b16 %v601
    %v1517 = vunpack.c.l.b16 %v602
    %v1518 = vunpack.c.l.b16 %v603
    %v1519 = vunpack.c.h.b16 %v603
    %v1520 = vunpack.c.l.b16 %v604
    %v1521 = vunpack.c.h.b16 %v604
    %v1522 = vunpack.c.l.b16 %v605
    %v1523 = vunpack.c.l.b16 %v606
    %v1524 = vunpack.c.h.b16 %v606
    %v1525 = vunpack.c.l.b16 %v607
    %v1526 = vunpack.c.h.b16 %v607
    %v1527 = vunpack.c.l.b16 %v608
    %v1528 = vunpack.c.l.b16 %v609
    %v1529 = vunpack.c.h.b16 %v609
    %v1530 = vunpack.c.l.b16 %v610
    %v1531 = vunpack.c.h.b16 %v610
    %v1532 = vunpack.c.l.b16 %v611
    %v1533 = vunpack.c.l.b16 %v612
    %v1534 = vunpack.c.h.b16 %v612
    %v1535 = vunpack.c.l.b16 %v613
    %v1536 = vunpack.c.h.b16 %v613
    %v1537 = vunpack.c.l.b16 %v614
    %v1538 = vpack.c.b16 %v983, %v978
    %v1539 = vpack.c.b16 %v984, %v979
    %v1540 = vpack.c.b16 %v985, %v980
    %v1541 = vpack.c.b16 %v986, %v981
    %v1542 = vpack.c.b16 %v987, %v982
    %v1543 = vpack.c.b16 %v993, %v988
    %v1544 = vpack.c.b16 %v994, %v989
    %v1545 = vpack.c.b16 %v995, %v990
    %v1546 = vpack.c.b16 %v996, %v991
    %v1547 = vpack.c.b16 %v997, %v992
    %v1548 = vpack.c.b16 %v1003, %v998
    %v1549 = vpack.c.b16 %v1004, %v999
    %v1550 = vpack.c.b16 %v1005, %v1000
    %v1551 = vpack.c.b16 %v1006, %v1001
    %v1552 = vpack.c.b16 %v1007, %v1002
    %v1553 = vpack.c.b16 %v1013, %v1008
    %v1554 = vpack.c.b16 %v1014, %v1009
    %v1555 = vpack.c.b16 %v1015, %v1010
    %v1556 = vpack.c.b16 %v1016, %v1011
    %v1557 = vpack.c.b16 %v1017, %v1012
    %v1558 = vpack.c.b16 %v1023, %v1018
    %v1559 = vpack.c.b16 %v1024, %v1019
    %v1560 = vpack.c.b16 %v1025, %v1020
    %v1561 = vpack.c.b16 %v1026, %v1021
    %v1562 = vpack.c.b16 %v1027, %v1022
    %v1563 = vpack.c.b16 %v1033, %v1028
    %v1564 = vpack.c.b16 %v1034, %v1029
    %v1565 = vpack.c.b16 %v1035, %v1030
    %v1566 = vpack.c.b16 %v1036, %v1031
    %v1567 = vpack.c.b16 %v1037, %v1032
    %v1568 = vpack.c.b16 %v1043, %v1038
    %v1569 = vpack.c.b16 %v1044, %v1039
    %v1570 = vpack.c.b16 %v1045, %v1040
    %v1571 = vpack.c.b16 %v1046, %v1041
    %v1572 = vpack.c.b16 %v1047, %v1042
    %v1573 = vpack.c.b16 %v1053, %v1048
    %v1574 = vpack.c.b16 %v1054, %v1049
    %v1575 = vpack.c.b16 %v1055, %v1050
    %v1576 = vpack.c.b16 %v1056, %v1051
    %v1577 = vpack.c.b16 %v1057, %v1052
    %v1578 = vpack.c.b16 %v1063, %v1058
    %v1579 = vpack.c.b16 %v1064, %v1059
    %v1580 = vpack.c.b16 %v1065, %v1060
    %v1581 = vpack.c.b16 %v1066, %v1061
    %v1582 = vpack.c.b16 %v1067, %v1062
    %v1583 = vpack.c.b16 %v1073, %v1068
    %v1584 = vpack.c.b16 %v1074, %v1069
    %v1585 = vpack.c.b16 %v1075, %v1070
    %v1586 = vpack.c.b16 %v1076, %v1071
    %v1587 = vpack.c.b16 %v1077, %v1072
    %v1588 = vpack.c.b16 %v1083, %v1078
    %v1589 = vpack.c.b16 %v1084, %v1079
    %v1590 = vpack.c.b16 %v1085, %v1080
    %v1591 = vpack.c.b16 %v1086, %v1081
    %v1592 = vpack.c.b16 %v1087, %v1082
    %v1593 = vpack.c.b16 %v1093, %v1088
    %v1594 = vpack.c.b16 %v1094, %v1089
    %v1595 = vpack.c.b16 %v1095, %v1090
    %v1596 = vpack.c.b16 %v1096, %v1091
    %v1597 = vpack.c.b16 %v1097, %v1092
    %v1598 = vpack.c.b16 %v1103, %v1098
    %v1599 = vpack.c.b16 %v1104, %v1099
    %v1600 = vpack.c.b16 %v1105, %v1100
    %v1601 = vpack.c.b16 %v1106, %v1101
    %v1602 = vpack.c.b16 %v1107, %v1102
    %v1603 = vpack.c.b16 %v1113, %v1108
    %v1604 = vpack.c.b16 %v1114, %v1109
    %v1605 = vpack.c.b16 %v1115, %v1110
    %v1606 = vpack.c.b16 %v1116, %v1111
    %v1607 = vpack.c.b16 %v1117, %v1112
    %v1608 = vpack.c.b16 %v1123, %v1118
    %v1609 = vpack.c.b16 %v1124, %v1119
    %v1610 = vpack.c.b16 %v1125, %v1120
    %v1611 = vpack.c.b16 %v1126, %v1121
    %v1612 = vpack.c.b16 %v1127, %v1122
    %v1613 = vpack.c.b16 %v1133, %v1128
    %v1614 = vpack.c.b16 %v1134, %v1129
    %v1615 = vpack.c.b16 %v1135, %v1130
    %v1616 = vpack.c.b16 %v1136, %v1131
    %v1617 = vpack.c.b16 %v1137, %v1132
    %v1618 = vpack.c.b16 %v1143, %v1138
    %v1619 = vpack.c.b16 %v1144, %v1139
    %v1620 = vpack.c.b16 %v1145, %v1140
    %v1621 = vpack.c.b16 %v1146, %v1141
    %v1622 = vpack.c.b16 %v1147, %v1142
    %v1623 = vpack.c.b16 %v1153, %v1148
    %v1624 = vpack.c.b16 %v1154, %v1149
    %v1625 = vpack.c.b16 %v1155, %v1150
    %v1626 = vpack.c.b16 %v1156, %v1151
    %v1627 = vpack.c.b16 %v1157, %v1152
    %v1628 = vpack.c.b16 %v1163, %v1158
    %v1629 = vpack.c.b16 %v1164, %v1159
    %v1630 = vpack.c.b16 %v1165, %v1160
    %v1631 = vpack.c.b16 %v1166, %v1161
    %v1632 = vpack.c.b16 %v1167, %v1162
    %v1633 = vpack.c.b16 %v1173, %v1168
    %v1634 = vpack.c.b16 %v1174, %v1169
    %v1635 = vpack.c.b16 %v1175, %v1170
    %v1636 = vpack.c.b16 %v1176, %v1171
    %v1637 = vpack.c.b16 %v1177, %v1172
    %v1638 = vpack.c.b16 %v1183, %v1178
    %v1639 = vpack.c.b16 %v1184, %v1179
    %v1640 = vpack.c.b16 %v1185, %v1180
    %v1641 = vpack.c.b16 %v1186, %v1181
    %v1642 = vpack.c.b16 %v1187, %v1182
    %v1643 = vpack.c.b16 %v1193, %v1188
    %v1644 = vpack.c.b16 %v1194, %v1189
    %v1645 = vpack.c.b16 %v1195, %v1190
    %v1646 = vpack.c.b16 %v1196, %v1191
    %v1647 = vpack.c.b16 %v1197, %v1192
    %v1648 = vpack.c.b16 %v1203, %v1198
    %v1649 = vpack.c.b16 %v1204, %v1199
    %v1650 = vpack.c.b16 %v1205, %v1200
    %v1651 = vpack.c.b16 %v1206, %v1201
    %v1652 = vpack.c.b16 %v1207, %v1202
    %v1653 = vpack.c.b16 %v1213, %v1208
    %v1654 = vpack.c.b16 %v1214, %v1209
    %v1655 = vpack.c.b16 %v1215, %v1210
    %v1656 = vpack.c.b16 %v1216, %v1211
    %v1657 = vpack.c.b16 %v1217, %v1212
    %v1658 = vpack.c.b16 %v1223, %v1218
    %v1659 = vpack.c.b16 %v1224, %v1219
    %v1660 = vpack.c.b16 %v1225, %v1220
    %v1661 = vpack.c.b16 %v1226, %v1221
    %v1662 = vpack.c.b16 %v1227, %v1222
    %v1663 = vpack.c.b16 %v1233, %v1228
    %v1664 = vpack.c.b16 %v1234, %v1229
    %v1665 = vpack.c.b16 %v1235, %v1230
    %v1666 = vpack.c.b16 %v1236, %v1231
    %v1667 = vpack.c.b16 %v1237, %v1232
    %v1668 = vpack.c.b16 %v1243, %v1238
    %v1669 = vpack.c.b16 %v1244, %v1239
    %v1670 = vpack.c.b16 %v1245, %v1240
    %v1671 = vpack.c.b16 %v1246, %v1241
    %v1672 = vpack.c.b16 %v1247, %v1242
    %v1673 = vpack.c.b16 %v1253, %v1248
    %v1674 = vpack.c.b16 %v1254, %v1249
    %v1675 = vpack.c.b16 %v1255, %v1250
    %v1676 = vpack.c.b16 %v1256, %v1251
    %v1677 = vpack.c.b16 %v1257, %v1252
    %v1678 = vpack.c.b16 %v1263, %v1258
    %v1679 = vpack.c.b16 %v1264, %v1259
    %v1680 = vpack.c.b16 %v1265, %v1260
    %v1681 = vpack.c.b16 %v1266, %v1261
    %v1682 = vpack.c.b16 %v1267, %v1262
    %v1683 = vpack.c.b16 %v1273, %v1268
    %v1684 = vpack.c.b16 %v1274, %v1269
    %v1685 = vpack.c.b16 %v1275, %v1270
    %v1686 = vpack.c.b16 %v1276, %v1271
    %v1687 = vpack.c.b16 %v1277, %v1272
    %v1688 = vpack.c.b16 %v1283, %v1278
    %v1689 = vpack.c.b16 %v1284, %v1279
    %v1690 = vpack.c.b16 %v1285, %v1280
    %v1691 = vpack.c.b16 %v1286, %v1281
    %v1692 = vpack.c.b16 %v1287, %v1282
    %v1693 = vpack.c.b16 %v1293, %v1288
    %v1694 = vpack.c.b16 %v1294, %v1289
    %v1695 = vpack.c.b16 %v1295, %v1290
    %v1696 = vpack.c.b16 %v1296, %v1291
    %v1697 = vpack.c.b16 %v1297, %v1292
    %v1698 = vpack.c.b16 %v1303, %v1298
    %v1699 = vpack.c.b16 %v1304, %v1299
    %v1700 = vpack.c.b16 %v1305, %v1300
    %v1701 = vpack.c.b16 %v1306, %v1301
    %v1702 = vpack.c.b16 %v1307, %v1302
    %v1703 = vpack.c.b16 %v1313, %v1308
    %v1704 = vpack.c.b16 %v1314, %v1309
    %v1705 = vpack.c.b16 %v1315, %v1310
    %v1706 = vpack.c.b16 %v1316, %v1311
    %v1707 = vpack.c.b16 %v1317, %v1312
    %v1708 = vpack.c.b16 %v1323, %v1318
    %v1709 = vpack.c.b16 %v1324, %v1319
    %v1710 = vpack.c.b16 %v1325, %v1320
    %v1711 = vpack.c.b16 %v1326, %v1321
    %v1712 = vpack.c.b16 %v1327, %v1322
    %v1713 = vpack.c.b16 %v1333, %v1328
    %v1714 = vpack.c.b16 %v1334, %v1329
    %v1715 = vpack.c.b16 %v1335, %v1330
    %v1716 = vpack.c.b16 %v1336, %v1331
    %v1717 = vpack.c.b16 %v1337, %v1332
    %v1718 = vpack.c.b16 %v1343, %v1338
    %v1719 = vpack.c.b16 %v1344, %v1339
    %v1720 = vpack.c.b16 %v1345, %v1340
    %v1721 = vpack.c.b16 %v1346, %v1341
    %v1722 = vpack.c.b16 %v1347, %v1342
    %v1723 = vpack.c.b16 %v1353, %v1348
    %v1724 = vpack.c.b16 %v1354, %v1349
    %v1725 = vpack.c.b16 %v1355, %v1350
    %v1726 = vpack.c.b16 %v1356, %v1351
    %v1727 = vpack.c.b16 %v1357, %v1352
    %v1728 = vpack.c.b16 %v1363, %v1358
    %v1729 = vpack.c.b16 %v1364, %v1359
    %v1730 = vpack.c.b16 %v1365, %v1360
    %v1731 = vpack.c.b16 %v1366, %v1361
    %v1732 = vpack.c.b16 %v1367, %v1362
    %v1733 = vpack.c.b16 %v1373, %v1368
    %v1734 = vpack.c.b16 %v1374, %v1369
    %v1735 = vpack.c.b16 %v1375, %v1370
    %v1736 = vpack.c.b16 %v1376, %v1371
    %v1737 = vpack.c.b16 %v1377, %v1372
    %v1738 = vpack.c.b16 %v1383, %v1378
    %v1739 = vpack.c.b16 %v1384, %v1379
    %v1740 = vpack.c.b16 %v1385, %v1380
    %v1741 = vpack.c.b16 %v1386, %v1381
    %v1742 = vpack.c.b16 %v1387, %v1382
    %v1743 = vpack.c.b16 %v1393, %v1388
    %v1744 = vpack.c.b16 %v1394, %v1389
    %v1745 = vpack.c.b16 %v1395, %v1390
    %v1746 = vpack.c.b16 %v1396, %v1391
    %v1747 = vpack.c.b16 %v1397, %v1392
    %v1748 = vpack.c.b16 %v1403, %v1398
    %v1749 = vpack.c.b16 %v1404, %v1399
    %v1750 = vpack.c.b16 %v1405, %v1400
    %v1751 = vpack.c.b16 %v1406, %v1401
    %v1752 = vpack.c.b16 %v1407, %v1402
    %v1753 = vpack.c.b16 %v1413, %v1408
    %v1754 = vpack.c.b16 %v1414, %v1409
    %v1755 = vpack.c.b16 %v1415, %v1410
    %v1756 = vpack.c.b16 %v1416, %v1411
    %v1757 = vpack.c.b16 %v1417, %v1412
    %v1758 = vpack.c.b16 %v1423, %v1418
    %v1759 = vpack.c.b16 %v1424, %v1419
    %v1760 = vpack.c.b16 %v1425, %v1420
    %v1761 = vpack.c.b16 %v1426, %v1421
    %v1762 = vpack.c.b16 %v1427, %v1422
    %v1763 = vpack.c.b16 %v1433, %v1428
    %v1764 = vpack.c.b16 %v1434, %v1429
    %v1765 = vpack.c.b16 %v1435, %v1430
    %v1766 = vpack.c.b16 %v1436, %v1431
    %v1767 = vpack.c.b16 %v1437, %v1432
    %v1768 = vpack.c.b16 %v1443, %v1438
    %v1769 = vpack.c.b16 %v1444, %v1439
    %v1770 = vpack.c.b16 %v1445, %v1440
    %v1771 = vpack.c.b16 %v1446, %v1441
    %v1772 = vpack.c.b16 %v1447, %v1442
    %v1773 = vpack.c.b16 %v1453, %v1448
    %v1774 = vpack.c.b16 %v1454, %v1449
    %v1775 = vpack.c.b16 %v1455, %v1450
    %v1776 = vpack.c.b16 %v1456, %v1451
    %v1777 = vpack.c.b16 %v1457, %v1452
    %v1778 = vpack.c.b16 %v1463, %v1458
    %v1779 = vpack.c.b16 %v1464, %v1459
    %v1780 = vpack.c.b16 %v1465, %v1460
    %v1781 = vpack.c.b16 %v1466, %v1461
    %v1782 = vpack.c.b16 %v1467, %v1462
    %v1783 = vpack.c.b16 %v1473, %v1468
    %v1784 = vpack.c.b16 %v1474, %v1469
    %v1785 = vpack.c.b16 %v1475, %v1470
    %v1786 = vpack.c.b16 %v1476, %v1471
    %v1787 = vpack.c.b16 %v1477, %v1472
    %v1788 = vpack.c.b16 %v1483, %v1478
    %v1789 = vpack.c.b16 %v1484, %v1479
    %v1790 = vpack.c.b16 %v1485, %v1480
    %v1791 = vpack.c.b16 %v1486, %v1481
    %v1792 = vpack.c.b16 %v1487, %v1482
    %v1793 = vpack.c.b16 %v1493, %v1488
    %v1794 = vpack.c.b16 %v1494, %v1489
    %v1795 = vpack.c.b16 %v1495, %v1490
    %v1796 = vpack.c.b16 %v1496, %v1491
    %v1797 = vpack.c.b16 %v1497, %v1492
    %v1798 = vpack.c.b16 %v1503, %v1498
    %v1799 = vpack.c.b16 %v1504, %v1499
    %v1800 = vpack.c.b16 %v1505, %v1500
    %v1801 = vpack.c.b16 %v1506, %v1501
    %v1802 = vpack.c.b16 %v1507, %v1502
    %v1803 = vpack.c.b16 %v1513, %v1508
    %v1804 = vpack.c.b16 %v1514, %v1509
    %v1805 = vpack.c.b16 %v1515, %v1510
    %v1806 = vpack.c.b16 %v1516, %v1511
    %v1807 = vpack.c.b16 %v1517, %v1512
    %v1808 = vpack.c.b16 %v1523, %v1518
    %v1809 = vpack.c.b16 %v1524, %v1519
    %v1810 = vpack.c.b16 %v1525, %v1520
    %v1811 = vpack.c.b16 %v1526, %v1521
    %v1812 = vpack.c.b16 %v1527, %v1522
    %v1813 = vpack.c.b16 %v1533, %v1528
    %v1814 = vpack.c.b16 %v1534, %v1529
    %v1815 = vpack.c.b16 %v1535, %v1530
    %v1816 = vpack.c.b16 %v1536, %v1531
    %v1817 = vpack.c.b16 %v1537, %v1532
    %2098 = vmatprep.subr.bf16.mxu0 %v1539
    %2099 = vmatpush1.bf16.msra.mxu0 %v1538
    %2100 = vmatprep.subr.bf16.mxu0 %v1544
    %2101 = vmatpush1.bf16.msra.mxu0 %v1543
    %2102 = vmatprep.subr.bf16.mxu0 %v1549
    %2103 = vmatpush1.bf16.msra.mxu0 %v1548
    %2104 = vmatprep.subr.bf16.mxu0 %v1554
    %2105 = vmatpush1.bf16.msra.mxu0 %v1553
    %2106 = vmatprep.subr.bf16.mxu0 %v1559
    %2107 = vmatpush1.bf16.msra.mxu0 %v1558
    %2108 = vmatprep.subr.bf16.mxu0 %v1564
    %2109 = vmatpush1.bf16.msra.mxu0 %v1563
    %2110 = vmatprep.subr.bf16.mxu0 %v1569
    %2111 = vmatpush1.bf16.msra.mxu0 %v1568
    %2112 = vmatprep.subr.bf16.mxu0 %v1574
    %2113 = vmatpush1.bf16.msra.mxu0 %v1573
    %2114 = vmatprep.subr.bf16.mxu0 %v1579
    %2115 = vmatpush1.bf16.msra.mxu0 %v1578
    %2116 = vmatprep.subr.bf16.mxu0 %v1584
    %2117 = vmatpush1.bf16.msra.mxu0 %v1583
    %2118 = vmatprep.subr.bf16.mxu0 %v1589
    %2119 = vmatpush1.bf16.msra.mxu0 %v1588
    %2120 = vmatprep.subr.bf16.mxu0 %v1594
    %2121 = vmatpush1.bf16.msra.mxu0 %v1593
    %2122 = vmatprep.subr.bf16.mxu0 %v1599
    %2123 = vmatpush1.bf16.msra.mxu0 %v1598
    %2124 = vmatprep.subr.bf16.mxu0 %v1604
    %2125 = vmatpush1.bf16.msra.mxu0 %v1603
    %2126 = vmatprep.subr.bf16.mxu0 %v1609
    %2127 = vmatpush1.bf16.msra.mxu0 %v1608
    %2128 = vmatprep.subr.bf16.mxu0 %v1614
    %2129 = vmatpush1.bf16.msra.mxu0 %v1613
    %2130 = vmatprep.mubr.bf16.mxu0 %v273
    %2131 = vmatmul.mubr.bf16.gmra.mrb[0].mxu0 %v272
    %v2132 = vpop.f32.mrb[0].mxu0
    %v2133 = vadd.f32 %v620, %v2132
    %v2134 = vpop.f32.mrb[0].mxu0
    %v2135 = vadd.f32 %v624, %v2134
    %v2136 = vpop.f32.mrb[0].mxu0
    %v2137 = vpop.f32.mrb[0].mxu0
    %2138 = vdwg.mxu0
    %2139 = vmatprep.subr.bf16.mxu0 %v1619
    %2140 = vmatpush1.bf16.msra.mxu0 %v1618
    %2141 = vmatprep.subr.bf16.mxu0 %v1624
    %2142 = vmatpush1.bf16.msra.mxu0 %v1623
    %2143 = vmatprep.subr.bf16.mxu0 %v1629
    %2144 = vmatpush1.bf16.msra.mxu0 %v1628
    %2145 = vmatprep.subr.bf16.mxu0 %v1634
    %2146 = vmatpush1.bf16.msra.mxu0 %v1633
    %2147 = vmatprep.subr.bf16.mxu0 %v1639
    %2148 = vmatpush1.bf16.msra.mxu0 %v1638
    %2149 = vmatprep.subr.bf16.mxu0 %v1644
    %2150 = vmatpush1.bf16.msra.mxu0 %v1643
    %2151 = vmatprep.subr.bf16.mxu0 %v1649
    %2152 = vmatpush1.bf16.msra.mxu0 %v1648
    %2153 = vmatprep.subr.bf16.mxu0 %v1654
    %2154 = vmatpush1.bf16.msra.mxu0 %v1653
    %2155 = vmatprep.subr.bf16.mxu0 %v1659
    %2156 = vmatpush1.bf16.msra.mxu0 %v1658
    %2157 = vmatprep.subr.bf16.mxu0 %v1664
    %2158 = vmatpush1.bf16.msra.mxu0 %v1663
    %2159 = vmatprep.subr.bf16.mxu0 %v1669
    %2160 = vmatpush1.bf16.msra.mxu0 %v1668
    %2161 = vmatprep.subr.bf16.mxu0 %v1674
    %2162 = vmatpush1.bf16.msra.mxu0 %v1673
    %2163 = vmatprep.subr.bf16.mxu0 %v1679
    %2164 = vmatpush1.bf16.msra.mxu0 %v1678
    %2165 = vmatprep.subr.bf16.mxu0 %v1684
    %2166 = vmatpush1.bf16.msra.mxu0 %v1683
    %2167 = vmatprep.subr.bf16.mxu0 %v1689
    %2168 = vmatpush1.bf16.msra.mxu0 %v1688
    %2169 = vmatprep.subr.bf16.mxu0 %v1694
    %2170 = vmatpush1.bf16.msra.mxu0 %v1693
    %2171 = vmatprep.mubr.bf16.mxu0 %v275
    %2172 = vmatmul.mubr.bf16.gmra.mrb[0].mxu0 %v274
    %v2173 = vpop.f32.mrb[0].mxu0
    %v2174 = vadd.f32 %v2133, %v2173
    %v2175 = vpop.f32.mrb[0].mxu0
    %v2176 = vadd.f32 %v2135, %v2175
    %v2177 = vpop.f32.mrb[0].mxu0
    %v2178 = vpop.f32.mrb[0].mxu0
    %2179 = vdwg.mxu0
    %2180 = vmatprep.subr.bf16.mxu0 %v1699
    %2181 = vmatpush1.bf16.msra.mxu0 %v1698
    %2182 = vmatprep.subr.bf16.mxu0 %v1704
    %2183 = vmatpush1.bf16.msra.mxu0 %v1703
    %2184 = vmatprep.subr.bf16.mxu0 %v1709
    %2185 = vmatpush1.bf16.msra.mxu0 %v1708
    %2186 = vmatprep.subr.bf16.mxu0 %v1714
    %2187 = vmatpush1.bf16.msra.mxu0 %v1713
    %2188 = vmatprep.subr.bf16.mxu0 %v1719
    %2189 = vmatpush1.bf16.msra.mxu0 %v1718
    %2190 = vmatprep.subr.bf16.mxu0 %v1724
    %2191 = vmatpush1.bf16.msra.mxu0 %v1723
    %2192 = vmatprep.subr.bf16.mxu0 %v1729
    %2193 = vmatpush1.bf16.msra.mxu0 %v1728
    %2194 = vmatprep.subr.bf16.mxu0 %v1734
    %2195 = vmatpush1.bf16.msra.mxu0 %v1733
    %2196 = vmatprep.subr.bf16.mxu0 %v1739
    %2197 = vmatpush1.bf16.msra.mxu0 %v1738
    %2198 = vmatprep.subr.bf16.mxu0 %v1744
    %2199 = vmatpush1.bf16.msra.mxu0 %v1743
    %2200 = vmatprep.subr.bf16.mxu0 %v1749
    %2201 = vmatpush1.bf16.msra.mxu0 %v1748
    %2202 = vmatprep.subr.bf16.mxu0 %v1754
    %2203 = vmatpush1.bf16.msra.mxu0 %v1753
    %2204 = vmatprep.subr.bf16.mxu0 %v1759
    %2205 = vmatpush1.bf16.msra.mxu0 %v1758
    %2206 = vmatprep.subr.bf16.mxu0 %v1764
    %2207 = vmatpush1.bf16.msra.mxu0 %v1763
    %2208 = vmatprep.subr.bf16.mxu0 %v1769
    %2209 = vmatpush1.bf16.msra.mxu0 %v1768
    %2210 = vmatprep.subr.bf16.mxu0 %v1774
    %2211 = vmatpush1.bf16.msra.mxu0 %v1773
    %2212 = vmatprep.mubr.bf16.mxu0 %v277
    %2213 = vmatmul.mubr.bf16.gmra.mrb[0].mxu0 %v276
    %v2214 = vpop.f32.mrb[0].mxu0
    %v2215 = vadd.f32 %v2174, %v2214
    %v2216 = vpop.f32.mrb[0].mxu0
    %v2217 = vadd.f32 %v2176, %v2216
    %v2218 = vpop.f32.mrb[0].mxu0
    %v2219 = vpop.f32.mrb[0].mxu0
    %2220 = vdwg.mxu0
    %2221 = vmatprep.subr.bf16.mxu0 %v1779
    %2222 = vmatpush1.bf16.msra.mxu0 %v1778
    %2223 = vmatprep.subr.bf16.mxu0 %v1784
    %2224 = vmatpush1.bf16.msra.mxu0 %v1783
    %2225 = vmatprep.subr.bf16.mxu0 %v1789
    %2226 = vmatpush1.bf16.msra.mxu0 %v1788
    %2227 = vmatprep.subr.bf16.mxu0 %v1794
    %2228 = vmatpush1.bf16.msra.mxu0 %v1793
    %2229 = vmatprep.subr.bf16.mxu0 %v1799
    %2230 = vmatpush1.bf16.msra.mxu0 %v1798
    %2231 = vmatprep.subr.bf16.mxu0 %v1804
    %2232 = vmatpush1.bf16.msra.mxu0 %v1803
    %2233 = vmatprep.subr.bf16.mxu0 %v1809
    %2234 = vmatpush1.bf16.msra.mxu0 %v1808
    %2235 = vmatprep.subr.bf16.mxu0 %v1814
    %2236 = vmatpush1.bf16.msra.mxu0 %v1813
    %2237 = vmatprep.subr.bf16.mxu0 0
    %2238 = vmatpush1.bf16.msra.mxu0 0
    %2239 = vmatprep.subr.bf16.mxu0 0
    %2240 = vmatpush1.bf16.msra.mxu0 0
    %2241 = vmatprep.subr.bf16.mxu0 0
    %2242 = vmatpush1.bf16.msra.mxu0 0
    %2243 = vmatprep.subr.bf16.mxu0 0
    %2244 = vmatpush1.bf16.msra.mxu0 0
    %2245 = vmatprep.subr.bf16.mxu0 0
    %2246 = vmatpush1.bf16.msra.mxu0 0
    %2247 = vmatprep.subr.bf16.mxu0 0
    %2248 = vmatpush1.bf16.msra.mxu0 0
    %2249 = vmatprep.subr.bf16.mxu0 0
    %2250 = vmatpush1.bf16.msra.mxu0 0
    %2251 = vmatprep.subr.bf16.mxu0 0
    %2252 = vmatpush1.bf16.msra.mxu0 0
    %2253 = vmatprep.mubr.bf16.mxu0 0
    %2254 = vmatmul.mubr.bf16.gmra.mrb[0].mxu0 %v278
    %v2255 = vpop.f32.mrb[0].mxu0
    %v2256 = vadd.f32 %v2215, %v2255
    %v2257 = vpop.f32.mrb[0].mxu0
    %v2258 = vadd.f32 %v2217, %v2257
    %v2259 = vpop.f32.mrb[0].mxu0
    %v2260 = vpop.f32.mrb[0].mxu0
    %2261 = vdwg.mxu0
    %2262 = vmatprep.subr.bf16.mxu0 %v1541
    %2263 = vmatpush1.bf16.msra.mxu0 %v1540
    %2264 = vmatprep.subr.bf16.mxu0 %v1546
    %2265 = vmatpush1.bf16.msra.mxu0 %v1545
    %2266 = vmatprep.subr.bf16.mxu0 %v1551
    %2267 = vmatpush1.bf16.msra.mxu0 %v1550
    %2268 = vmatprep.subr.bf16.mxu0 %v1556
    %2269 = vmatpush1.bf16.msra.mxu0 %v1555
    %2270 = vmatprep.subr.bf16.mxu0 %v1561
    %2271 = vmatpush1.bf16.msra.mxu0 %v1560
    %2272 = vmatprep.subr.bf16.mxu0 %v1566
    %2273 = vmatpush1.bf16.msra.mxu0 %v1565
    %2274 = vmatprep.subr.bf16.mxu0 %v1571
    %2275 = vmatpush1.bf16.msra.mxu0 %v1570
    %2276 = vmatprep.subr.bf16.mxu0 %v1576
    %2277 = vmatpush1.bf16.msra.mxu0 %v1575
    %2278 = vmatprep.subr.bf16.mxu0 %v1581
    %2279 = vmatpush1.bf16.msra.mxu0 %v1580
    %2280 = vmatprep.subr.bf16.mxu0 %v1586
    %2281 = vmatpush1.bf16.msra.mxu0 %v1585
    %2282 = vmatprep.subr.bf16.mxu0 %v1591
    %2283 = vmatpush1.bf16.msra.mxu0 %v1590
    %2284 = vmatprep.subr.bf16.mxu0 %v1596
    %2285 = vmatpush1.bf16.msra.mxu0 %v1595
    %2286 = vmatprep.subr.bf16.mxu0 %v1601
    %2287 = vmatpush1.bf16.msra.mxu0 %v1600
    %2288 = vmatprep.subr.bf16.mxu0 %v1606
    %2289 = vmatpush1.bf16.msra.mxu0 %v1605
    %2290 = vmatprep.subr.bf16.mxu0 %v1611
    %2291 = vmatpush1.bf16.msra.mxu0 %v1610
    %2292 = vmatprep.subr.bf16.mxu0 %v1616
    %2293 = vmatpush1.bf16.msra.mxu0 %v1615
    %2294 = vmatprep.mubr.bf16.mxu0 %v273
    %2295 = vmatmul.mubr.bf16.gmra.mrb[0].mxu0 %v272
    %v2296 = vpop.f32.mrb[0].mxu0
    %v2297 = vadd.f32 %v628, %v2296
    %v2298 = vpop.f32.mrb[0].mxu0
    %v2299 = vadd.f32 %v632, %v2298
    %v2300 = vpop.f32.mrb[0].mxu0
    %v2301 = vpop.f32.mrb[0].mxu0
    %2302 = vdwg.mxu0
    %2303 = vmatprep.subr.bf16.mxu0 %v1621
    %2304 = vmatpush1.bf16.msra.mxu0 %v1620
    %2305 = vmatprep.subr.bf16.mxu0 %v1626
    %2306 = vmatpush1.bf16.msra.mxu0 %v1625
    %2307 = vmatprep.subr.bf16.mxu0 %v1631
    %2308 = vmatpush1.bf16.msra.mxu0 %v1630
    %2309 = vmatprep.subr.bf16.mxu0 %v1636
    %2310 = vmatpush1.bf16.msra.mxu0 %v1635
    %2311 = vmatprep.subr.bf16.mxu0 %v1641
    %2312 = vmatpush1.bf16.msra.mxu0 %v1640
    %2313 = vmatprep.subr.bf16.mxu0 %v1646
    %2314 = vmatpush1.bf16.msra.mxu0 %v1645
    %2315 = vmatprep.subr.bf16.mxu0 %v1651
    %2316 = vmatpush1.bf16.msra.mxu0 %v1650
    %2317 = vmatprep.subr.bf16.mxu0 %v1656
    %2318 = vmatpush1.bf16.msra.mxu0 %v1655
    %2319 = vmatprep.subr.bf16.mxu0 %v1661
    %2320 = vmatpush1.bf16.msra.mxu0 %v1660
    %2321 = vmatprep.subr.bf16.mxu0 %v1666
    %2322 = vmatpush1.bf16.msra.mxu0 %v1665
    %2323 = vmatprep.subr.bf16.mxu0 %v1671
    %2324 = vmatpush1.bf16.msra.mxu0 %v1670
    %2325 = vmatprep.subr.bf16.mxu0 %v1676
    %2326 = vmatpush1.bf16.msra.mxu0 %v1675
    %2327 = vmatprep.subr.bf16.mxu0 %v1681
    %2328 = vmatpush1.bf16.msra.mxu0 %v1680
    %2329 = vmatprep.subr.bf16.mxu0 %v1686
    %2330 = vmatpush1.bf16.msra.mxu0 %v1685
    %2331 = vmatprep.subr.bf16.mxu0 %v1691
    %2332 = vmatpush1.bf16.msra.mxu0 %v1690
    %2333 = vmatprep.subr.bf16.mxu0 %v1696
    %2334 = vmatpush1.bf16.msra.mxu0 %v1695
    %2335 = vmatprep.mubr.bf16.mxu0 %v275
    %2336 = vmatmul.mubr.bf16.gmra.mrb[0].mxu0 %v274
    %v2337 = vpop.f32.mrb[0].mxu0
    %v2338 = vadd.f32 %v2297, %v2337
    %v2339 = vpop.f32.mrb[0].mxu0
    %v2340 = vadd.f32 %v2299, %v2339
    %v2341 = vpop.f32.mrb[0].mxu0
    %v2342 = vpop.f32.mrb[0].mxu0
    %2343 = vdwg.mxu0
    %2344 = vmatprep.subr.bf16.mxu0 %v1701
    %2345 = vmatpush1.bf16.msra.mxu0 %v1700
    %2346 = vmatprep.subr.bf16.mxu0 %v1706
    %2347 = vmatpush1.bf16.msra.mxu0 %v1705
    %2348 = vmatprep.subr.bf16.mxu0 %v1711
    %2349 = vmatpush1.bf16.msra.mxu0 %v1710
    %2350 = vmatprep.subr.bf16.mxu0 %v1716
    %2351 = vmatpush1.bf16.msra.mxu0 %v1715
    %2352 = vmatprep.subr.bf16.mxu0 %v1721
    %2353 = vmatpush1.bf16.msra.mxu0 %v1720
    %2354 = vmatprep.subr.bf16.mxu0 %v1726
    %2355 = vmatpush1.bf16.msra.mxu0 %v1725
    %2356 = vmatprep.subr.bf16.mxu0 %v1731
    %2357 = vmatpush1.bf16.msra.mxu0 %v1730
    %2358 = vmatprep.subr.bf16.mxu0 %v1736
    %2359 = vmatpush1.bf16.msra.mxu0 %v1735
    %2360 = vmatprep.subr.bf16.mxu0 %v1741
    %2361 = vmatpush1.bf16.msra.mxu0 %v1740
    %2362 = vmatprep.subr.bf16.mxu0 %v1746
    %2363 = vmatpush1.bf16.msra.mxu0 %v1745
    %2364 = vmatprep.subr.bf16.mxu0 %v1751
    %2365 = vmatpush1.bf16.msra.mxu0 %v1750
    %2366 = vmatprep.subr.bf16.mxu0 %v1756
    %2367 = vmatpush1.bf16.msra.mxu0 %v1755
    %2368 = vmatprep.subr.bf16.mxu0 %v1761
    %2369 = vmatpush1.bf16.msra.mxu0 %v1760
    %2370 = vmatprep.subr.bf16.mxu0 %v1766
    %2371 = vmatpush1.bf16.msra.mxu0 %v1765
    %2372 = vmatprep.subr.bf16.mxu0 %v1771
    %2373 = vmatpush1.bf16.msra.mxu0 %v1770
    %2374 = vmatprep.subr.bf16.mxu0 %v1776
    %2375 = vmatpush1.bf16.msra.mxu0 %v1775
    %2376 = vmatprep.mubr.bf16.mxu0 %v277
    %2377 = vmatmul.mubr.bf16.gmra.mrb[0].mxu0 %v276
    %v2378 = vpop.f32.mrb[0].mxu0
    %v2379 = vadd.f32 %v2338, %v2378
    %v2380 = vpop.f32.mrb[0].mxu0
    %v2381 = vadd.f32 %v2340, %v2380
    %v2382 = vpop.f32.mrb[0].mxu0
    %v2383 = vpop.f32.mrb[0].mxu0
    %2384 = vdwg.mxu0
    %2385 = vmatprep.subr.bf16.mxu0 %v1781
    %2386 = vmatpush1.bf16.msra.mxu0 %v1780
    %2387 = vmatprep.subr.bf16.mxu0 %v1786
    %2388 = vmatpush1.bf16.msra.mxu0 %v1785
    %2389 = vmatprep.subr.bf16.mxu0 %v1791
    %2390 = vmatpush1.bf16.msra.mxu0 %v1790
    %2391 = vmatprep.subr.bf16.mxu0 %v1796
    %2392 = vmatpush1.bf16.msra.mxu0 %v1795
    %2393 = vmatprep.subr.bf16.mxu0 %v1801
    %2394 = vmatpush1.bf16.msra.mxu0 %v1800
    %2395 = vmatprep.subr.bf16.mxu0 %v1806
    %2396 = vmatpush1.bf16.msra.mxu0 %v1805
    %2397 = vmatprep.subr.bf16.mxu0 %v1811
    %2398 = vmatpush1.bf16.msra.mxu0 %v1810
    %2399 = vmatprep.subr.bf16.mxu0 %v1816
    %2400 = vmatpush1.bf16.msra.mxu0 %v1815
    %2401 = vmatprep.subr.bf16.mxu0 0
    %2402 = vmatpush1.bf16.msra.mxu0 0
    %2403 = vmatprep.subr.bf16.mxu0 0
    %2404 = vmatpush1.bf16.msra.mxu0 0
    %2405 = vmatprep.subr.bf16.mxu0 0
    %2406 = vmatpush1.bf16.msra.mxu0 0
    %2407 = vmatprep.subr.bf16.mxu0 0
    %2408 = vmatpush1.bf16.msra.mxu0 0
    %2409 = vmatprep.subr.bf16.mxu0 0
    %2410 = vmatpush1.bf16.msra.mxu0 0
    %2411 = vmatprep.subr.bf16.mxu0 0
    %2412 = vmatpush1.bf16.msra.mxu0 0
    %2413 = vmatprep.subr.bf16.mxu0 0
    %2414 = vmatpush1.bf16.msra.mxu0 0
    %2415 = vmatprep.subr.bf16.mxu0 0
    %2416 = vmatpush1.bf16.msra.mxu0 0
    %2417 = vmatprep.mubr.bf16.mxu0 0
    %2418 = vmatmul.mubr.bf16.gmra.mrb[0].mxu0 %v278
    %v2419 = vpop.f32.mrb[0].mxu0
    %v2420 = vadd.f32 %v2379, %v2419
    %v2421 = vpop.f32.mrb[0].mxu0
    %v2422 = vadd.f32 %v2381, %v2421
    %v2423 = vpop.f32.mrb[0].mxu0
    %v2424 = vpop.f32.mrb[0].mxu0
    %2425 = vdwg.mxu0
    %2426 = vmatprep.subr.bf16.mxu0 0
    %2427 = vmatpush1.bf16.msra.mxu0 %v1542
    %2428 = vmatprep.subr.bf16.mxu0 0
    %2429 = vmatpush1.bf16.msra.mxu0 %v1547
    %2430 = vmatprep.subr.bf16.mxu0 0
    %2431 = vmatpush1.bf16.msra.mxu0 %v1552
    %2432 = vmatprep.subr.bf16.mxu0 0
    %2433 = vmatpush1.bf16.msra.mxu0 %v1557
    %2434 = vmatprep.subr.bf16.mxu0 0
    %2435 = vmatpush1.bf16.msra.mxu0 %v1562
    %2436 = vmatprep.subr.bf16.mxu0 0
    %2437 = vmatpush1.bf16.msra.mxu0 %v1567
    %2438 = vmatprep.subr.bf16.mxu0 0
    %2439 = vmatpush1.bf16.msra.mxu0 %v1572
    %2440 = vmatprep.subr.bf16.mxu0 0
    %2441 = vmatpush1.bf16.msra.mxu0 %v1577
    %2442 = vmatprep.subr.bf16.mxu0 0
    %2443 = vmatpush1.bf16.msra.mxu0 %v1582
    %2444 = vmatprep.subr.bf16.mxu0 0
    %2445 = vmatpush1.bf16.msra.mxu0 %v1587
    %2446 = vmatprep.subr.bf16.mxu0 0
    %2447 = vmatpush1.bf16.msra.mxu0 %v1592
    %2448 = vmatprep.subr.bf16.mxu0 0
    %2449 = vmatpush1.bf16.msra.mxu0 %v1597
    %2450 = vmatprep.subr.bf16.mxu0 0
    %2451 = vmatpush1.bf16.msra.mxu0 %v1602
    %2452 = vmatprep.subr.bf16.mxu0 0
    %2453 = vmatpush1.bf16.msra.mxu0 %v1607
    %2454 = vmatprep.subr.bf16.mxu0 0
    %2455 = vmatpush1.bf16.msra.mxu0 %v1612
    %2456 = vmatprep.subr.bf16.mxu0 0
    %2457 = vmatpush1.bf16.msra.mxu0 %v1617
    %2458 = vmatprep.mubr.bf16.mxu0 %v273
    %2459 = vmatmul.mubr.bf16.gmra.mrb[0].mxu0 %v272
    %v2460 = vpop.f32.mrb[0].mxu0
    %v2461 = vadd.f32 %v636, %v2460
    %v2462 = vpop.f32.mrb[0].mxu0
    %v2463 = vpop.f32.mrb[0].mxu0
    %v2464 = vpop.f32.mrb[0].mxu0
    %2465 = vdwg.mxu0
    %2466 = vmatprep.subr.bf16.mxu0 0
    %2467 = vmatpush1.bf16.msra.mxu0 %v1622
    %2468 = vmatprep.subr.bf16.mxu0 0
    %2469 = vmatpush1.bf16.msra.mxu0 %v1627
    %2470 = vmatprep.subr.bf16.mxu0 0
    %2471 = vmatpush1.bf16.msra.mxu0 %v1632
    %2472 = vmatprep.subr.bf16.mxu0 0
    %2473 = vmatpush1.bf16.msra.mxu0 %v1637
    %2474 = vmatprep.subr.bf16.mxu0 0
    %2475 = vmatpush1.bf16.msra.mxu0 %v1642
    %2476 = vmatprep.subr.bf16.mxu0 0
    %2477 = vmatpush1.bf16.msra.mxu0 %v1647
    %2478 = vmatprep.subr.bf16.mxu0 0
    %2479 = vmatpush1.bf16.msra.mxu0 %v1652
    %2480 = vmatprep.subr.bf16.mxu0 0
    %2481 = vmatpush1.bf16.msra.mxu0 %v1657
    %2482 = vmatprep.subr.bf16.mxu0 0
    %2483 = vmatpush1.bf16.msra.mxu0 %v1662
    %2484 = vmatprep.subr.bf16.mxu0 0
    %2485 = vmatpush1.bf16.msra.mxu0 %v1667
    %2486 = vmatprep.subr.bf16.mxu0 0
    %2487 = vmatpush1.bf16.msra.mxu0 %v1672
    %2488 = vmatprep.subr.bf16.mxu0 0
    %2489 = vmatpush1.bf16.msra.mxu0 %v1677
    %2490 = vmatprep.subr.bf16.mxu0 0
    %2491 = vmatpush1.bf16.msra.mxu0 %v1682
    %2492 = vmatprep.subr.bf16.mxu0 0
    %2493 = vmatpush1.bf16.msra.mxu0 %v1687
    %2494 = vmatprep.subr.bf16.mxu0 0
    %2495 = vmatpush1.bf16.msra.mxu0 %v1692
    %2496 = vmatprep.subr.bf16.mxu0 0
    %2497 = vmatpush1.bf16.msra.mxu0 %v1697
    %2498 = vmatprep.mubr.bf16.mxu0 %v275
    %2499 = vmatmul.mubr.bf16.gmra.mrb[0].mxu0 %v274
    %v2500 = vpop.f32.mrb[0].mxu0
    %v2501 = vadd.f32 %v2461, %v2500
    %v2502 = vpop.f32.mrb[0].mxu0
    %v2503 = vpop.f32.mrb[0].mxu0
    %v2504 = vpop.f32.mrb[0].mxu0
    %2505 = vdwg.mxu0
    %2506 = vmatprep.subr.bf16.mxu0 0
    %2507 = vmatpush1.bf16.msra.mxu0 %v1702
    %2508 = vmatprep.subr.bf16.mxu0 0
    %2509 = vmatpush1.bf16.msra.mxu0 %v1707
    %2510 = vmatprep.subr.bf16.mxu0 0
    %2511 = vmatpush1.bf16.msra.mxu0 %v1712
    %2512 = vmatprep.subr.bf16.mxu0 0
    %2513 = vmatpush1.bf16.msra.mxu0 %v1717
    %2514 = vmatprep.subr.bf16.mxu0 0
    %2515 = vmatpush1.bf16.msra.mxu0 %v1722
    %2516 = vmatprep.subr.bf16.mxu0 0
    %2517 = vmatpush1.bf16.msra.mxu0 %v1727
    %2518 = vmatprep.subr.bf16.mxu0 0
    %2519 = vmatpush1.bf16.msra.mxu0 %v1732
    %2520 = vmatprep.subr.bf16.mxu0 0
    %2521 = vmatpush1.bf16.msra.mxu0 %v1737
    %2522 = vmatprep.subr.bf16.mxu0 0
    %2523 = vmatpush1.bf16.msra.mxu0 %v1742
    %2524 = vmatprep.subr.bf16.mxu0 0
    %2525 = vmatpush1.bf16.msra.mxu0 %v1747
    %2526 = vmatprep.subr.bf16.mxu0 0
    %2527 = vmatpush1.bf16.msra.mxu0 %v1752
    %2528 = vmatprep.subr.bf16.mxu0 0
    %2529 = vmatpush1.bf16.msra.mxu0 %v1757
    %2530 = vmatprep.subr.bf16.mxu0 0
    %2531 = vmatpush1.bf16.msra.mxu0 %v1762
    %2532 = vmatprep.subr.bf16.mxu0 0
    %2533 = vmatpush1.bf16.msra.mxu0 %v1767
    %2534 = vmatprep.subr.bf16.mxu0 0
    %2535 = vmatpush1.bf16.msra.mxu0 %v1772
    %2536 = vmatprep.subr.bf16.mxu0 0
    %2537 = vmatpush1.bf16.msra.mxu0 %v1777
    %2538 = vmatprep.mubr.bf16.mxu0 %v277
    %2539 = vmatmul.mubr.bf16.gmra.mrb[0].mxu0 %v276
    %v2540 = vpop.f32.mrb[0].mxu0
    %v2541 = vadd.f32 %v2501, %v2540
    %v2542 = vpop.f32.mrb[0].mxu0
    %v2543 = vpop.f32.mrb[0].mxu0
    %v2544 = vpop.f32.mrb[0].mxu0
    %2545 = vdwg.mxu0
    %2546 = vmatprep.subr.bf16.mxu0 0
    %2547 = vmatpush1.bf16.msra.mxu0 %v1782
    %2548 = vmatprep.subr.bf16.mxu0 0
    %2549 = vmatpush1.bf16.msra.mxu0 %v1787
    %2550 = vmatprep.subr.bf16.mxu0 0
    %2551 = vmatpush1.bf16.msra.mxu0 %v1792
    %2552 = vmatprep.subr.bf16.mxu0 0
    %2553 = vmatpush1.bf16.msra.mxu0 %v1797
    %2554 = vmatprep.subr.bf16.mxu0 0
    %2555 = vmatpush1.bf16.msra.mxu0 %v1802
    %2556 = vmatprep.subr.bf16.mxu0 0
    %2557 = vmatpush1.bf16.msra.mxu0 %v1807
    %2558 = vmatprep.subr.bf16.mxu0 0
    %2559 = vmatpush1.bf16.msra.mxu0 %v1812
    %2560 = vmatprep.subr.bf16.mxu0 0
    %2561 = vmatpush1.bf16.msra.mxu0 %v1817
    %2562 = vmatprep.subr.bf16.mxu0 0
    %2563 = vmatpush1.bf16.msra.mxu0 0
    %2564 = vmatprep.subr.bf16.mxu0 0
    %2565 = vmatpush1.bf16.msra.mxu0 0
    %2566 = vmatprep.subr.bf16.mxu0 0
    %2567 = vmatpush1.bf16.msra.mxu0 0
    %2568 = vmatprep.subr.bf16.mxu0 0
    %2569 = vmatpush1.bf16.msra.mxu0 0
    %2570 = vmatprep.subr.bf16.mxu0 0
    %2571 = vmatpush1.bf16.msra.mxu0 0
    %2572 = vmatprep.subr.bf16.mxu0 0
    %2573 = vmatpush1.bf16.msra.mxu0 0
    %2574 = vmatprep.subr.bf16.mxu0 0
    %2575 = vmatpush1.bf16.msra.mxu0 0
    %2576 = vmatprep.subr.bf16.mxu0 0
    %2577 = vmatpush1.bf16.msra.mxu0 0
    %2578 = vmatprep.mubr.bf16.mxu0 0
    %2579 = vmatmul.mubr.bf16.gmra.mrb[0].mxu0 %v278
    %v2580 = vpop.f32.mrb[0].mxu0
    %v2581 = vadd.f32 %v2541, %v2580
    %v2582 = vpop.f32.mrb[0].mxu0
    %v2583 = vpop.f32.mrb[0].mxu0
    %v2584 = vpop.f32.mrb[0].mxu0
    %2585 = vdwg.mxu0
    %v2586 = vmax.f32 %v2256, 0.0
    %v2587 = vmax.f32 %v2258, 0.0
    %v2588 = vmax.f32 %v2420, 0.0
    %v2589 = vmax.f32 %v2422, 0.0
    %v2590 = vmax.f32 %v2581, 0.0
    %v2591 = vpack.c.bf16 %v2586, %v2586
    %v2592 = vpack.c.bf16 %v2587, %v2587
    %v2593 = vpack.c.bf16 %v2588, %v2588
    %v2594 = vpack.c.bf16 %v2589, %v2589
    %v2595 = vpack.c.bf16 %v2590, %v2590
    %v2596 = vld [vmem:[#allocation7] sm:$0xff]
    %v2597 = vld [vmem:[#allocation7 + $0x8] sm:$0xff]
    %v2598 = vld [vmem:[#allocation7 + $0x10] sm:$0xff]
    %v2599 = vld [vmem:[#allocation7 + $0x18] sm:$0xf]
    %v2600 = vld [vmem:[#allocation7 + $0x1c] sm:$0xff]
    %v2601 = vld [vmem:[#allocation7 + $0x24] sm:$0xff]
    %v2602 = vld [vmem:[#allocation7 + $0x2c] sm:$0xff]
    %v2603 = vld [vmem:[#allocation7 + $0x34] sm:$0xf]
    %v2604 = vld [vmem:[#allocation7 + $0x38] sm:$0xff]
    %v2605 = vld [vmem:[#allocation7 + $0x40] sm:$0xff]
    %v2606 = vld [vmem:[#allocation7 + $0x48] sm:$0xff]
    %v2607 = vld [vmem:[#allocation7 + $0x50] sm:$0xf]
    %v2608 = vld [vmem:[#allocation7 + $0x54] sm:$0xff]
    %v2609 = vld [vmem:[#allocation7 + $0x5c] sm:$0xff]
    %v2610 = vld [vmem:[#allocation7 + $0x64] sm:$0xff]
    %v2611 = vld [vmem:[#allocation7 + $0x6c] sm:$0xf]
    %v2612 = vld [vmem:[#allocation7 + $0x70] sm:$0xff]
    %v2613 = vld [vmem:[#allocation7 + $0x78] sm:$0xff]
    %v2614 = vld [vmem:[#allocation7 + $0x80] sm:$0xff]
    %v2615 = vld [vmem:[#allocation7 + $0x88] sm:$0xf]
    %v2616 = vld [vmem:[#allocation7 + $0x8c] sm:$0xff]
    %v2617 = vld [vmem:[#allocation7 + $0x94] sm:$0xff]
    %v2618 = vld [vmem:[#allocation7 + $0x9c] sm:$0xff]
    %v2619 = vld [vmem:[#allocation7 + $0xa4] sm:$0xf]
    %v2620 = vld [vmem:[#allocation7 + $0xa8] sm:$0xff]
    %v2621 = vld [vmem:[#allocation7 + $0xb0] sm:$0xff]
    %v2622 = vld [vmem:[#allocation7 + $0xb8] sm:$0xff]
    %v2623 = vld [vmem:[#allocation7 + $0xc0] sm:$0xf]
    %v2624 = vld [vmem:[#allocation7 + $0xc4] sm:$0xff]
    %v2625 = vld [vmem:[#allocation7 + $0xcc] sm:$0xff]
    %v2626 = vld [vmem:[#allocation7 + $0xd4] sm:$0xff]
    %v2627 = vld [vmem:[#allocation7 + $0xdc] sm:$0xf]
    %v2628 = vld [vmem:[#allocation7 + $0xe0] sm:$0xff]
    %v2629 = vld [vmem:[#allocation7 + $0xe8] sm:$0xff]
    %v2630 = vld [vmem:[#allocation7 + $0xf0] sm:$0xff]
    %v2631 = vld [vmem:[#allocation7 + $0xf8] sm:$0xf]
    %v2632 = vld [vmem:[#allocation7 + $0xfc] sm:$0xff]
    %v2633 = vld [vmem:[#allocation7 + $0x104] sm:$0xff]
    %v2634 = vld [vmem:[#allocation7 + $0x10c] sm:$0xff]
    %v2635 = vld [vmem:[#allocation7 + $0x114] sm:$0xf]
    %v2636 = vld [vmem:[#allocation7 + $0x118] sm:$0xff]
    %v2637 = vld [vmem:[#allocation7 + $0x120] sm:$0xff]
    %v2638 = vld [vmem:[#allocation7 + $0x128] sm:$0xff]
    %v2639 = vld [vmem:[#allocation7 + $0x130] sm:$0xf]
    %v2640 = vld [vmem:[#allocation7 + $0x134] sm:$0xff]
    %v2641 = vld [vmem:[#allocation7 + $0x13c] sm:$0xff]
    %v2642 = vld [vmem:[#allocation7 + $0x144] sm:$0xff]
    %v2643 = vld [vmem:[#allocation7 + $0x14c] sm:$0xf]
    %v2644 = vld [vmem:[#allocation7 + $0x150] sm:$0xff]
    %v2645 = vld [vmem:[#allocation7 + $0x158] sm:$0xff]
    %v2646 = vld [vmem:[#allocation7 + $0x160] sm:$0xff]
    %v2647 = vld [vmem:[#allocation7 + $0x168] sm:$0xf]
    %v2648 = vld [vmem:[#allocation7 + $0x16c] sm:$0xff]
    %v2649 = vld [vmem:[#allocation7 + $0x174] sm:$0xff]
    %v2650 = vld [vmem:[#allocation7 + $0x17c] sm:$0xff]
    %v2651 = vld [vmem:[#allocation7 + $0x184] sm:$0xf]
    %v2652 = vld [vmem:[#allocation7 + $0x188] sm:$0xff]
    %v2653 = vld [vmem:[#allocation7 + $0x190] sm:$0xff]
    %v2654 = vld [vmem:[#allocation7 + $0x198] sm:$0xff]
    %v2655 = vld [vmem:[#allocation7 + $0x1a0] sm:$0xf]
    %v2656 = vld [vmem:[#allocation7 + $0x1a4] sm:$0xff]
    %v2657 = vld [vmem:[#allocation7 + $0x1ac] sm:$0xff]
    %v2658 = vld [vmem:[#allocation7 + $0x1b4] sm:$0xff]
    %v2659 = vld [vmem:[#allocation7 + $0x1bc] sm:$0xf]
    %v2660 = vld [vmem:[#allocation7 + $0x1c0] sm:$0xff]
    %v2661 = vld [vmem:[#allocation7 + $0x1c8] sm:$0xff]
    %v2662 = vld [vmem:[#allocation7 + $0x1d0] sm:$0xff]
    %v2663 = vld [vmem:[#allocation7 + $0x1d8] sm:$0xf]
    %v2664 = vld [vmem:[#allocation7 + $0x1dc] sm:$0xff]
    %v2665 = vld [vmem:[#allocation7 + $0x1e4] sm:$0xff]
    %v2666 = vld [vmem:[#allocation7 + $0x1ec] sm:$0xff]
    %v2667 = vld [vmem:[#allocation7 + $0x1f4] sm:$0xf]
    %v2668 = vld [vmem:[#allocation7 + $0x1f8] sm:$0xff]
    %v2669 = vld [vmem:[#allocation7 + $0x200] sm:$0xff]
    %v2670 = vld [vmem:[#allocation7 + $0x208] sm:$0xff]
    %v2671 = vld [vmem:[#allocation7 + $0x210] sm:$0xf]
    %v2672 = vld [vmem:[#allocation7 + $0x214] sm:$0xff]
    %v2673 = vld [vmem:[#allocation7 + $0x21c] sm:$0xff]
    %v2674 = vld [vmem:[#allocation7 + $0x224] sm:$0xff]
    %v2675 = vld [vmem:[#allocation7 + $0x22c] sm:$0xf]
    %v2676 = vld [vmem:[#allocation7 + $0x230] sm:$0xff]
    %v2677 = vld [vmem:[#allocation7 + $0x238] sm:$0xff]
    %v2678 = vld [vmem:[#allocation7 + $0x240] sm:$0xff]
    %v2679 = vld [vmem:[#allocation7 + $0x248] sm:$0xf]
    %v2680 = vld [vmem:[#allocation7 + $0x24c] sm:$0xff]
    %v2681 = vld [vmem:[#allocation7 + $0x254] sm:$0xff]
    %v2682 = vld [vmem:[#allocation7 + $0x25c] sm:$0xff]
    %v2683 = vld [vmem:[#allocation7 + $0x264] sm:$0xf]
    %v2684 = vld [vmem:[#allocation7 + $0x268] sm:$0xff]
    %v2685 = vld [vmem:[#allocation7 + $0x270] sm:$0xff]
    %v2686 = vld [vmem:[#allocation7 + $0x278] sm:$0xff]
    %v2687 = vld [vmem:[#allocation7 + $0x280] sm:$0xf]
    %v2688 = vld [vmem:[#allocation7 + $0x284] sm:$0xff]
    %v2689 = vld [vmem:[#allocation7 + $0x28c] sm:$0xff]
    %v2690 = vld [vmem:[#allocation7 + $0x294] sm:$0xff]
    %v2691 = vld [vmem:[#allocation7 + $0x29c] sm:$0xf]
    %v2692 = vld [vmem:[#allocation7 + $0x2a0] sm:$0xff]
    %v2693 = vld [vmem:[#allocation7 + $0x2a8] sm:$0xff]
    %v2694 = vld [vmem:[#allocation7 + $0x2b0] sm:$0xff]
    %v2695 = vld [vmem:[#allocation7 + $0x2b8] sm:$0xf]
    %v2696 = vld [vmem:[#allocation7 + $0x2bc] sm:$0xff]
    %v2697 = vld [vmem:[#allocation7 + $0x2c4] sm:$0xff]
    %v2698 = vld [vmem:[#allocation7 + $0x2cc] sm:$0xff]
    %v2699 = vld [vmem:[#allocation7 + $0x2d4] sm:$0xf]
    %v2700 = vld [vmem:[#allocation7 + $0x2d8] sm:$0xff]
    %v2701 = vld [vmem:[#allocation7 + $0x2e0] sm:$0xff]
    %v2702 = vld [vmem:[#allocation7 + $0x2e8] sm:$0xff]
    %v2703 = vld [vmem:[#allocation7 + $0x2f0] sm:$0xf]
    %v2704 = vld [vmem:[#allocation7 + $0x2f4] sm:$0xff]
    %v2705 = vld [vmem:[#allocation7 + $0x2fc] sm:$0xff]
    %v2706 = vld [vmem:[#allocation7 + $0x304] sm:$0xff]
    %v2707 = vld [vmem:[#allocation7 + $0x30c] sm:$0xf]
    %v2708 = vld [vmem:[#allocation7 + $0x310] sm:$0xff]
    %v2709 = vld [vmem:[#allocation7 + $0x318] sm:$0xff]
    %v2710 = vld [vmem:[#allocation7 + $0x320] sm:$0xff]
    %v2711 = vld [vmem:[#allocation7 + $0x328] sm:$0xf]
    %v2712 = vld [vmem:[#allocation7 + $0x32c] sm:$0xff]
    %v2713 = vld [vmem:[#allocation7 + $0x334] sm:$0xff]
    %v2714 = vld [vmem:[#allocation7 + $0x33c] sm:$0xff]
    %v2715 = vld [vmem:[#allocation7 + $0x344] sm:$0xf]
    %v2716 = vld [vmem:[#allocation7 + $0x348] sm:$0xff]
    %v2717 = vld [vmem:[#allocation7 + $0x350] sm:$0xff]
    %v2718 = vld [vmem:[#allocation7 + $0x358] sm:$0xff]
    %v2719 = vld [vmem:[#allocation7 + $0x360] sm:$0xf]
    %v2720 = vld [vmem:[#allocation7 + $0x364] sm:$0xff]
    %v2721 = vld [vmem:[#allocation7 + $0x36c] sm:$0xff]
    %v2722 = vld [vmem:[#allocation7 + $0x374] sm:$0xff]
    %v2723 = vld [vmem:[#allocation7 + $0x37c] sm:$0xf]
    %v2724 = vld [vmem:[#allocation7 + $0x380] sm:$0xff]
    %v2725 = vld [vmem:[#allocation7 + $0x388] sm:$0xff]
    %v2726 = vld [vmem:[#allocation7 + $0x390] sm:$0xff]
    %v2727 = vld [vmem:[#allocation7 + $0x398] sm:$0xf]
    %v2728 = vld [vmem:[#allocation7 + $0x39c] sm:$0xff]
    %v2729 = vld [vmem:[#allocation7 + $0x3a4] sm:$0xff]
    %v2730 = vld [vmem:[#allocation7 + $0x3ac] sm:$0xff]
    %v2731 = vld [vmem:[#allocation7 + $0x3b4] sm:$0xf]
    %v2732 = vld [vmem:[#allocation7 + $0x3b8] sm:$0xff]
    %v2733 = vld [vmem:[#allocation7 + $0x3c0] sm:$0xff]
    %v2734 = vld [vmem:[#allocation7 + $0x3c8] sm:$0xff]
    %v2735 = vld [vmem:[#allocation7 + $0x3d0] sm:$0xf]
    %v2736 = vld [vmem:[#allocation7 + $0x3d4] sm:$0xff]
    %v2737 = vld [vmem:[#allocation7 + $0x3dc] sm:$0xff]
    %v2738 = vld [vmem:[#allocation7 + $0x3e4] sm:$0xff]
    %v2739 = vld [vmem:[#allocation7 + $0x3ec] sm:$0xf]
    %v2740 = vld [vmem:[#allocation7 + $0x3f0] sm:$0xff]
    %v2741 = vld [vmem:[#allocation7 + $0x3f8] sm:$0xff]
    %v2742 = vld [vmem:[#allocation7 + $0x400] sm:$0xff]
    %v2743 = vld [vmem:[#allocation7 + $0x408] sm:$0xf]
    %v2744 = vld [vmem:[#allocation7 + $0x40c] sm:$0xff]
    %v2745 = vld [vmem:[#allocation7 + $0x414] sm:$0xff]
    %v2746 = vld [vmem:[#allocation7 + $0x41c] sm:$0xff]
    %v2747 = vld [vmem:[#allocation7 + $0x424] sm:$0xf]
    %v2748 = vld [vmem:[#allocation7 + $0x428] sm:$0xff]
    %v2749 = vld [vmem:[#allocation7 + $0x430] sm:$0xff]
    %v2750 = vld [vmem:[#allocation7 + $0x438] sm:$0xff]
    %v2751 = vld [vmem:[#allocation7 + $0x440] sm:$0xf]
    %v2752 = vld [vmem:[#allocation7 + $0x444] sm:$0xff]
    %v2753 = vld [vmem:[#allocation7 + $0x44c] sm:$0xff]
    %v2754 = vld [vmem:[#allocation7 + $0x454] sm:$0xff]
    %v2755 = vld [vmem:[#allocation7 + $0x45c] sm:$0xf]
    %v2756 = vld [vmem:[#allocation7 + $0x460] sm:$0xff]
    %v2757 = vld [vmem:[#allocation7 + $0x468] sm:$0xff]
    %v2758 = vld [vmem:[#allocation7 + $0x470] sm:$0xff]
    %v2759 = vld [vmem:[#allocation7 + $0x478] sm:$0xf]
    %v2760 = vld [vmem:[#allocation7 + $0x47c] sm:$0xff]
    %v2761 = vld [vmem:[#allocation7 + $0x484] sm:$0xff]
    %v2762 = vld [vmem:[#allocation7 + $0x48c] sm:$0xff]
    %v2763 = vld [vmem:[#allocation7 + $0x494] sm:$0xf]
    %v2764 = vld [vmem:[#allocation7 + $0x498] sm:$0xff]
    %v2765 = vld [vmem:[#allocation7 + $0x4a0] sm:$0xff]
    %v2766 = vld [vmem:[#allocation7 + $0x4a8] sm:$0xff]
    %v2767 = vld [vmem:[#allocation7 + $0x4b0] sm:$0xf]
    %v2768 = vld [vmem:[#allocation7 + $0x4b4] sm:$0xff]
    %v2769 = vld [vmem:[#allocation7 + $0x4bc] sm:$0xff]
    %v2770 = vld [vmem:[#allocation7 + $0x4c4] sm:$0xff]
    %v2771 = vld [vmem:[#allocation7 + $0x4cc] sm:$0xf]
    %v2772 = vld [vmem:[#allocation7 + $0x4d0] sm:$0xff]
    %v2773 = vld [vmem:[#allocation7 + $0x4d8] sm:$0xff]
    %v2774 = vld [vmem:[#allocation7 + $0x4e0] sm:$0xff]
    %v2775 = vld [vmem:[#allocation7 + $0x4e8] sm:$0xf]
    %v2776 = vld [vmem:[#allocation7 + $0x4ec] sm:$0xff]
    %v2777 = vld [vmem:[#allocation7 + $0x4f4] sm:$0xff]
    %v2778 = vld [vmem:[#allocation7 + $0x4fc] sm:$0xff]
    %v2779 = vld [vmem:[#allocation7 + $0x504] sm:$0xf]
    %v2780 = vld [vmem:[#allocation7 + $0x508] sm:$0xff]
    %v2781 = vld [vmem:[#allocation7 + $0x510] sm:$0xff]
    %v2782 = vld [vmem:[#allocation7 + $0x518] sm:$0xff]
    %v2783 = vld [vmem:[#allocation7 + $0x520] sm:$0xf]
    %v2784 = vld [vmem:[#allocation7 + $0x524] sm:$0xff]
    %v2785 = vld [vmem:[#allocation7 + $0x52c] sm:$0xff]
    %v2786 = vld [vmem:[#allocation7 + $0x534] sm:$0xff]
    %v2787 = vld [vmem:[#allocation7 + $0x53c] sm:$0xf]
    %v2788 = vld [vmem:[#allocation7 + $0x540] sm:$0xff]
    %v2789 = vld [vmem:[#allocation7 + $0x548] sm:$0xff]
    %v2790 = vld [vmem:[#allocation7 + $0x550] sm:$0xff]
    %v2791 = vld [vmem:[#allocation7 + $0x558] sm:$0xf]
    %v2792 = vld [vmem:[#allocation7 + $0x55c] sm:$0xff]
    %v2793 = vld [vmem:[#allocation7 + $0x564] sm:$0xff]
    %v2794 = vld [vmem:[#allocation7 + $0x56c] sm:$0xff]
    %v2795 = vld [vmem:[#allocation7 + $0x574] sm:$0xf]
    %v2796 = vld [vmem:[#allocation7 + $0x578] sm:$0xff]
    %v2797 = vld [vmem:[#allocation7 + $0x580] sm:$0xff]
    %v2798 = vld [vmem:[#allocation7 + $0x588] sm:$0xff]
    %v2799 = vld [vmem:[#allocation7 + $0x590] sm:$0xf]
    %v2800 = vld [vmem:[#allocation7 + $0x594] sm:$0xff]
    %v2801 = vld [vmem:[#allocation7 + $0x59c] sm:$0xff]
    %v2802 = vld [vmem:[#allocation7 + $0x5a4] sm:$0xff]
    %v2803 = vld [vmem:[#allocation7 + $0x5ac] sm:$0xf]
    %v2804 = vld [vmem:[#allocation7 + $0x5b0] sm:$0xff]
    %v2805 = vld [vmem:[#allocation7 + $0x5b8] sm:$0xff]
    %v2806 = vld [vmem:[#allocation7 + $0x5c0] sm:$0xff]
    %v2807 = vld [vmem:[#allocation7 + $0x5c8] sm:$0xf]
    %v2808 = vld [vmem:[#allocation7 + $0x5cc] sm:$0xff]
    %v2809 = vld [vmem:[#allocation7 + $0x5d4] sm:$0xff]
    %v2810 = vld [vmem:[#allocation7 + $0x5dc] sm:$0xff]
    %v2811 = vld [vmem:[#allocation7 + $0x5e4] sm:$0xf]
    %v2812 = vld [vmem:[#allocation7 + $0x5e8] sm:$0xff]
    %v2813 = vld [vmem:[#allocation7 + $0x5f0] sm:$0xff]
    %v2814 = vld [vmem:[#allocation7 + $0x5f8] sm:$0xff]
    %v2815 = vld [vmem:[#allocation7 + $0x600] sm:$0xf]
    %v2816 = vld [vmem:[#allocation7 + $0x604] sm:$0xff]
    %v2817 = vld [vmem:[#allocation7 + $0x60c] sm:$0xff]
    %v2818 = vld [vmem:[#allocation7 + $0x614] sm:$0xff]
    %v2819 = vld [vmem:[#allocation7 + $0x61c] sm:$0xf]
    %v2820 = vld [vmem:[#allocation7 + $0x620] sm:$0xff]
    %v2821 = vld [vmem:[#allocation7 + $0x628] sm:$0xff]
    %v2822 = vld [vmem:[#allocation7 + $0x630] sm:$0xff]
    %v2823 = vld [vmem:[#allocation7 + $0x638] sm:$0xf]
    %v2824 = vld [vmem:[#allocation7 + $0x63c] sm:$0xff]
    %v2825 = vld [vmem:[#allocation7 + $0x644] sm:$0xff]
    %v2826 = vld [vmem:[#allocation7 + $0x64c] sm:$0xff]
    %v2827 = vld [vmem:[#allocation7 + $0x654] sm:$0xf]
    %v2828 = vld [vmem:[#allocation7 + $0x658] sm:$0xff]
    %v2829 = vld [vmem:[#allocation7 + $0x660] sm:$0xff]
    %v2830 = vld [vmem:[#allocation7 + $0x668] sm:$0xff]
    %v2831 = vld [vmem:[#allocation7 + $0x670] sm:$0xf]
    %v2832 = vld [vmem:[#allocation7 + $0x674] sm:$0xff]
    %v2833 = vld [vmem:[#allocation7 + $0x67c] sm:$0xff]
    %v2834 = vld [vmem:[#allocation7 + $0x684] sm:$0xff]
    %v2835 = vld [vmem:[#allocation7 + $0x68c] sm:$0xf]
    %v2836 = vld [vmem:[#allocation7 + $0x690] sm:$0xff]
    %v2837 = vld [vmem:[#allocation7 + $0x698] sm:$0xff]
    %v2838 = vld [vmem:[#allocation7 + $0x6a0] sm:$0xff]
    %v2839 = vld [vmem:[#allocation7 + $0x6a8] sm:$0xf]
    %v2840 = vld [vmem:[#allocation7 + $0x6ac] sm:$0xff]
    %v2841 = vld [vmem:[#allocation7 + $0x6b4] sm:$0xff]
    %v2842 = vld [vmem:[#allocation7 + $0x6bc] sm:$0xff]
    %v2843 = vld [vmem:[#allocation7 + $0x6c4] sm:$0xf]
    %v2844 = vld [vmem:[#allocation7 + $0x6c8] sm:$0xff]
    %v2845 = vld [vmem:[#allocation7 + $0x6d0] sm:$0xff]
    %v2846 = vld [vmem:[#allocation7 + $0x6d8] sm:$0xff]
    %v2847 = vld [vmem:[#allocation7 + $0x6e0] sm:$0xf]
    %v2848 = vld [vmem:[#allocation7 + $0x6e4] sm:$0xff]
    %v2849 = vld [vmem:[#allocation7 + $0x6ec] sm:$0xff]
    %v2850 = vld [vmem:[#allocation7 + $0x6f4] sm:$0xff]
    %v2851 = vld [vmem:[#allocation7 + $0x6fc] sm:$0xf]
    %v2852 = vld [vmem:[#allocation7 + $0x700] sm:$0xff]
    %v2853 = vld [vmem:[#allocation7 + $0x708] sm:$0xff]
    %v2854 = vld [vmem:[#allocation7 + $0x710] sm:$0xff]
    %v2855 = vld [vmem:[#allocation7 + $0x718] sm:$0xf]
    %v2856 = vld [vmem:[#allocation7 + $0x71c] sm:$0xff]
    %v2857 = vld [vmem:[#allocation7 + $0x724] sm:$0xff]
    %v2858 = vld [vmem:[#allocation7 + $0x72c] sm:$0xff]
    %v2859 = vld [vmem:[#allocation7 + $0x734] sm:$0xf]
    %v2860 = vld [vmem:[#allocation7 + $0x738] sm:$0xff]
    %v2861 = vld [vmem:[#allocation7 + $0x740] sm:$0xff]
    %v2862 = vld [vmem:[#allocation7 + $0x748] sm:$0xff]
    %v2863 = vld [vmem:[#allocation7 + $0x750] sm:$0xf]
    %v2864 = vld [vmem:[#allocation7 + $0x754] sm:$0xff]
    %v2865 = vld [vmem:[#allocation7 + $0x75c] sm:$0xff]
    %v2866 = vld [vmem:[#allocation7 + $0x764] sm:$0xff]
    %v2867 = vld [vmem:[#allocation7 + $0x76c] sm:$0xf]
    %v2868 = vld [vmem:[#allocation7 + $0x770] sm:$0xff]
    %v2869 = vld [vmem:[#allocation7 + $0x778] sm:$0xff]
    %v2870 = vld [vmem:[#allocation7 + $0x780] sm:$0xff]
    %v2871 = vld [vmem:[#allocation7 + $0x788] sm:$0xf]
    %v2872 = vld [vmem:[#allocation7 + $0x78c] sm:$0xff]
    %v2873 = vld [vmem:[#allocation7 + $0x794] sm:$0xff]
    %v2874 = vld [vmem:[#allocation7 + $0x79c] sm:$0xff]
    %v2875 = vld [vmem:[#allocation7 + $0x7a4] sm:$0xf]
    %v2876 = vld [vmem:[#allocation7 + $0x7a8] sm:$0xff]
    %v2877 = vld [vmem:[#allocation7 + $0x7b0] sm:$0xff]
    %v2878 = vld [vmem:[#allocation7 + $0x7b8] sm:$0xff]
    %v2879 = vld [vmem:[#allocation7 + $0x7c0] sm:$0xf]
    %v2880 = vld [vmem:[#allocation7 + $0x7c4] sm:$0xff]
    %v2881 = vld [vmem:[#allocation7 + $0x7cc] sm:$0xff]
    %v2882 = vld [vmem:[#allocation7 + $0x7d4] sm:$0xff]
    %v2883 = vld [vmem:[#allocation7 + $0x7dc] sm:$0xf]
    %v2884 = vld [vmem:[#allocation7 + $0x7e0] sm:$0xff]
    %v2885 = vld [vmem:[#allocation7 + $0x7e8] sm:$0xff]
    %v2886 = vld [vmem:[#allocation7 + $0x7f0] sm:$0xff]
    %v2887 = vld [vmem:[#allocation7 + $0x7f8] sm:$0xf]
    %v2888 = vld [vmem:[#allocation7 + $0x7fc] sm:$0xff]
    %v2889 = vld [vmem:[#allocation7 + $0x804] sm:$0xff]
    %v2890 = vld [vmem:[#allocation7 + $0x80c] sm:$0xff]
    %v2891 = vld [vmem:[#allocation7 + $0x814] sm:$0xf]
    %v2892 = vld [vmem:[#allocation7 + $0x818] sm:$0xff]
    %v2893 = vld [vmem:[#allocation7 + $0x820] sm:$0xff]
    %v2894 = vld [vmem:[#allocation7 + $0x828] sm:$0xff]
    %v2895 = vld [vmem:[#allocation7 + $0x830] sm:$0xf]
    %v2896 = vld [vmem:[#allocation7 + $0x834] sm:$0xff]
    %v2897 = vld [vmem:[#allocation7 + $0x83c] sm:$0xff]
    %v2898 = vld [vmem:[#allocation7 + $0x844] sm:$0xff]
    %v2899 = vld [vmem:[#allocation7 + $0x84c] sm:$0xf]
    %v2900 = vld [vmem:[#allocation7 + $0x850] sm:$0xff]
    %v2901 = vld [vmem:[#allocation7 + $0x858] sm:$0xff]
    %v2902 = vld [vmem:[#allocation7 + $0x860] sm:$0xff]
    %v2903 = vld [vmem:[#allocation7 + $0x868] sm:$0xf]
    %v2904 = vld [vmem:[#allocation7 + $0x86c] sm:$0xff]
    %v2905 = vld [vmem:[#allocation7 + $0x874] sm:$0xff]
    %v2906 = vld [vmem:[#allocation7 + $0x87c] sm:$0xff]
    %v2907 = vld [vmem:[#allocation7 + $0x884] sm:$0xf]
    %v2908 = vld [vmem:[#allocation7 + $0x888] sm:$0xff]
    %v2909 = vld [vmem:[#allocation7 + $0x890] sm:$0xff]
    %v2910 = vld [vmem:[#allocation7 + $0x898] sm:$0xff]
    %v2911 = vld [vmem:[#allocation7 + $0x8a0] sm:$0xf]
    %v2912 = vld [vmem:[#allocation7 + $0x8a4] sm:$0xff]
    %v2913 = vld [vmem:[#allocation7 + $0x8ac] sm:$0xff]
    %v2914 = vld [vmem:[#allocation7 + $0x8b4] sm:$0xff]
    %v2915 = vld [vmem:[#allocation7 + $0x8bc] sm:$0xf]
    %v2916 = vld [vmem:[#allocation8] sm:$0xff]
    %v2918 = vlaneseq
    %v2919 = vshrl.u32 %v2918, 7
    %v2920 = vsub.s32 0, %v2919
    %v2921 = vrot.slane %v2916, %v2920
    %v2922 = vlaneseq
    %v2923 = vshrl.u32 %v2922, 7
    %v2924 = vsub.s32 1, %v2923
    %v2925 = vrot.slane %v2916, %v2924
    %v2926 = vlaneseq
    %v2927 = vshrl.u32 %v2926, 7
    %v2928 = vsub.s32 2, %v2927
    %v2929 = vrot.slane %v2916, %v2928
    %v2930 = vlaneseq
    %v2931 = vshrl.u32 %v2930, 7
    %v2932 = vsub.s32 3, %v2931
    %v2933 = vrot.slane %v2916, %v2932
    %v2934 = vlaneseq
    %v2935 = vshrl.u32 %v2934, 7
    %v2936 = vsub.s32 4, %v2935
    %v2937 = vrot.slane %v2916, %v2936
    %v2938 = vlaneseq
    %v2939 = vshrl.u32 %v2938, 7
    %v2940 = vsub.s32 5, %v2939
    %v2941 = vrot.slane %v2916, %v2940
    %v2942 = vlaneseq
    %v2943 = vshrl.u32 %v2942, 7
    %v2944 = vsub.s32 6, %v2943
    %v2945 = vrot.slane %v2916, %v2944
    %v3273 = vunpack.c.l.b16 %v2596
    %v3274 = vunpack.c.h.b16 %v2596
    %v3275 = vunpack.c.l.b16 %v2597
    %v3276 = vunpack.c.h.b16 %v2597
    %v3277 = vunpack.c.l.b16 %v2598
    %v3278 = vunpack.c.h.b16 %v2598
    %v3279 = vunpack.c.l.b16 %v2599
    %v3280 = vunpack.c.l.b16 %v2600
    %v3281 = vunpack.c.h.b16 %v2600
    %v3282 = vunpack.c.l.b16 %v2601
    %v3283 = vunpack.c.h.b16 %v2601
    %v3284 = vunpack.c.l.b16 %v2602
    %v3285 = vunpack.c.h.b16 %v2602
    %v3286 = vunpack.c.l.b16 %v2603
    %v3287 = vunpack.c.l.b16 %v2604
    %v3288 = vunpack.c.h.b16 %v2604
    %v3289 = vunpack.c.l.b16 %v2605
    %v3290 = vunpack.c.h.b16 %v2605
    %v3291 = vunpack.c.l.b16 %v2606
    %v3292 = vunpack.c.h.b16 %v2606
    %v3293 = vunpack.c.l.b16 %v2607
    %v3294 = vunpack.c.l.b16 %v2608
    %v3295 = vunpack.c.h.b16 %v2608
    %v3296 = vunpack.c.l.b16 %v2609
    %v3297 = vunpack.c.h.b16 %v2609
    %v3298 = vunpack.c.l.b16 %v2610
    %v3299 = vunpack.c.h.b16 %v2610
    %v3300 = vunpack.c.l.b16 %v2611
    %v3301 = vunpack.c.l.b16 %v2612
    %v3302 = vunpack.c.h.b16 %v2612
    %v3303 = vunpack.c.l.b16 %v2613
    %v3304 = vunpack.c.h.b16 %v2613
    %v3305 = vunpack.c.l.b16 %v2614
    %v3306 = vunpack.c.h.b16 %v2614
    %v3307 = vunpack.c.l.b16 %v2615
    %v3308 = vunpack.c.l.b16 %v2616
    %v3309 = vunpack.c.h.b16 %v2616
    %v3310 = vunpack.c.l.b16 %v2617
    %v3311 = vunpack.c.h.b16 %v2617
    %v3312 = vunpack.c.l.b16 %v2618
    %v3313 = vunpack.c.h.b16 %v2618
    %v3314 = vunpack.c.l.b16 %v2619
    %v3315 = vunpack.c.l.b16 %v2620
    %v3316 = vunpack.c.h.b16 %v2620
    %v3317 = vunpack.c.l.b16 %v2621
    %v3318 = vunpack.c.h.b16 %v2621
    %v3319 = vunpack.c.l.b16 %v2622
    %v3320 = vunpack.c.h.b16 %v2622
    %v3321 = vunpack.c.l.b16 %v2623
    %v3322 = vunpack.c.l.b16 %v2624
    %v3323 = vunpack.c.h.b16 %v2624
    %v3324 = vunpack.c.l.b16 %v2625
    %v3325 = vunpack.c.h.b16 %v2625
    %v3326 = vunpack.c.l.b16 %v2626
    %v3327 = vunpack.c.h.b16 %v2626
    %v3328 = vunpack.c.l.b16 %v2627
    %v3329 = vunpack.c.l.b16 %v2628
    %v3330 = vunpack.c.h.b16 %v2628
    %v3331 = vunpack.c.l.b16 %v2629
    %v3332 = vunpack.c.h.b16 %v2629
    %v3333 = vunpack.c.l.b16 %v2630
    %v3334 = vunpack.c.h.b16 %v2630
    %v3335 = vunpack.c.l.b16 %v2631
    %v3336 = vunpack.c.l.b16 %v2632
    %v3337 = vunpack.c.h.b16 %v2632
    %v3338 = vunpack.c.l.b16 %v2633
    %v3339 = vunpack.c.h.b16 %v2633
    %v3340 = vunpack.c.l.b16 %v2634
    %v3341 = vunpack.c.h.b16 %v2634
    %v3342 = vunpack.c.l.b16 %v2635
    %v3343 = vunpack.c.l.b16 %v2636
    %v3344 = vunpack.c.h.b16 %v2636
    %v3345 = vunpack.c.l.b16 %v2637
    %v3346 = vunpack.c.h.b16 %v2637
    %v3347 = vunpack.c.l.b16 %v2638
    %v3348 = vunpack.c.h.b16 %v2638
    %v3349 = vunpack.c.l.b16 %v2639
    %v3350 = vunpack.c.l.b16 %v2640
    %v3351 = vunpack.c.h.b16 %v2640
    %v3352 = vunpack.c.l.b16 %v2641
    %v3353 = vunpack.c.h.b16 %v2641
    %v3354 = vunpack.c.l.b16 %v2642
    %v3355 = vunpack.c.h.b16 %v2642
    %v3356 = vunpack.c.l.b16 %v2643
    %v3357 = vunpack.c.l.b16 %v2644
    %v3358 = vunpack.c.h.b16 %v2644
    %v3359 = vunpack.c.l.b16 %v2645
    %v3360 = vunpack.c.h.b16 %v2645
    %v3361 = vunpack.c.l.b16 %v2646
    %v3362 = vunpack.c.h.b16 %v2646
    %v3363 = vunpack.c.l.b16 %v2647
    %v3364 = vunpack.c.l.b16 %v2648
    %v3365 = vunpack.c.h.b16 %v2648
    %v3366 = vunpack.c.l.b16 %v2649
    %v3367 = vunpack.c.h.b16 %v2649
    %v3368 = vunpack.c.l.b16 %v2650
    %v3369 = vunpack.c.h.b16 %v2650
    %v3370 = vunpack.c.l.b16 %v2651
    %v3371 = vunpack.c.l.b16 %v2652
    %v3372 = vunpack.c.h.b16 %v2652
    %v3373 = vunpack.c.l.b16 %v2653
    %v3374 = vunpack.c.h.b16 %v2653
    %v3375 = vunpack.c.l.b16 %v2654
    %v3376 = vunpack.c.h.b16 %v2654
    %v3377 = vunpack.c.l.b16 %v2655
    %v3378 = vunpack.c.l.b16 %v2656
    %v3379 = vunpack.c.h.b16 %v2656
    %v3380 = vunpack.c.l.b16 %v2657
    %v3381 = vunpack.c.h.b16 %v2657
    %v3382 = vunpack.c.l.b16 %v2658
    %v3383 = vunpack.c.h.b16 %v2658
    %v3384 = vunpack.c.l.b16 %v2659
    %v3385 = vunpack.c.l.b16 %v2660
    %v3386 = vunpack.c.h.b16 %v2660
    %v3387 = vunpack.c.l.b16 %v2661
    %v3388 = vunpack.c.h.b16 %v2661
    %v3389 = vunpack.c.l.b16 %v2662
    %v3390 = vunpack.c.h.b16 %v2662
    %v3391 = vunpack.c.l.b16 %v2663
    %v3392 = vunpack.c.l.b16 %v2664
    %v3393 = vunpack.c.h.b16 %v2664
    %v3394 = vunpack.c.l.b16 %v2665
    %v3395 = vunpack.c.h.b16 %v2665
    %v3396 = vunpack.c.l.b16 %v2666
    %v3397 = vunpack.c.h.b16 %v2666
    %v3398 = vunpack.c.l.b16 %v2667
    %v3399 = vunpack.c.l.b16 %v2668
    %v3400 = vunpack.c.h.b16 %v2668
    %v3401 = vunpack.c.l.b16 %v2669
    %v3402 = vunpack.c.h.b16 %v2669
    %v3403 = vunpack.c.l.b16 %v2670
    %v3404 = vunpack.c.h.b16 %v2670
    %v3405 = vunpack.c.l.b16 %v2671
    %v3406 = vunpack.c.l.b16 %v2672
    %v3407 = vunpack.c.h.b16 %v2672
    %v3408 = vunpack.c.l.b16 %v2673
    %v3409 = vunpack.c.h.b16 %v2673
    %v3410 = vunpack.c.l.b16 %v2674
    %v3411 = vunpack.c.h.b16 %v2674
    %v3412 = vunpack.c.l.b16 %v2675
    %v3413 = vunpack.c.l.b16 %v2676
    %v3414 = vunpack.c.h.b16 %v2676
    %v3415 = vunpack.c.l.b16 %v2677
    %v3416 = vunpack.c.h.b16 %v2677
    %v3417 = vunpack.c.l.b16 %v2678
    %v3418 = vunpack.c.h.b16 %v2678
    %v3419 = vunpack.c.l.b16 %v2679
    %v3420 = vunpack.c.l.b16 %v2680
    %v3421 = vunpack.c.h.b16 %v2680
    %v3422 = vunpack.c.l.b16 %v2681
    %v3423 = vunpack.c.h.b16 %v2681
    %v3424 = vunpack.c.l.b16 %v2682
    %v3425 = vunpack.c.h.b16 %v2682
    %v3426 = vunpack.c.l.b16 %v2683
    %v3427 = vunpack.c.l.b16 %v2684
    %v3428 = vunpack.c.h.b16 %v2684
    %v3429 = vunpack.c.l.b16 %v2685
    %v3430 = vunpack.c.h.b16 %v2685
    %v3431 = vunpack.c.l.b16 %v2686
    %v3432 = vunpack.c.h.b16 %v2686
    %v3433 = vunpack.c.l.b16 %v2687
    %v3434 = vunpack.c.l.b16 %v2688
    %v3435 = vunpack.c.h.b16 %v2688
    %v3436 = vunpack.c.l.b16 %v2689
    %v3437 = vunpack.c.h.b16 %v2689
    %v3438 = vunpack.c.l.b16 %v2690
    %v3439 = vunpack.c.h.b16 %v2690
    %v3440 = vunpack.c.l.b16 %v2691
    %v3441 = vunpack.c.l.b16 %v2692
    %v3442 = vunpack.c.h.b16 %v2692
    %v3443 = vunpack.c.l.b16 %v2693
    %v3444 = vunpack.c.h.b16 %v2693
    %v3445 = vunpack.c.l.b16 %v2694
    %v3446 = vunpack.c.h.b16 %v2694
    %v3447 = vunpack.c.l.b16 %v2695
    %v3448 = vunpack.c.l.b16 %v2696
    %v3449 = vunpack.c.h.b16 %v2696
    %v3450 = vunpack.c.l.b16 %v2697
    %v3451 = vunpack.c.h.b16 %v2697
    %v3452 = vunpack.c.l.b16 %v2698
    %v3453 = vunpack.c.h.b16 %v2698
    %v3454 = vunpack.c.l.b16 %v2699
    %v3455 = vunpack.c.l.b16 %v2700
    %v3456 = vunpack.c.h.b16 %v2700
    %v3457 = vunpack.c.l.b16 %v2701
    %v3458 = vunpack.c.h.b16 %v2701
    %v3459 = vunpack.c.l.b16 %v2702
    %v3460 = vunpack.c.h.b16 %v2702
    %v3461 = vunpack.c.l.b16 %v2703
    %v3462 = vunpack.c.l.b16 %v2704
    %v3463 = vunpack.c.h.b16 %v2704
    %v3464 = vunpack.c.l.b16 %v2705
    %v3465 = vunpack.c.h.b16 %v2705
    %v3466 = vunpack.c.l.b16 %v2706
    %v3467 = vunpack.c.h.b16 %v2706
    %v3468 = vunpack.c.l.b16 %v2707
    %v3469 = vunpack.c.l.b16 %v2708
    %v3470 = vunpack.c.h.b16 %v2708
    %v3471 = vunpack.c.l.b16 %v2709
    %v3472 = vunpack.c.h.b16 %v2709
    %v3473 = vunpack.c.l.b16 %v2710
    %v3474 = vunpack.c.h.b16 %v2710
    %v3475 = vunpack.c.l.b16 %v2711
    %v3476 = vunpack.c.l.b16 %v2712
    %v3477 = vunpack.c.h.b16 %v2712
    %v3478 = vunpack.c.l.b16 %v2713
    %v3479 = vunpack.c.h.b16 %v2713
    %v3480 = vunpack.c.l.b16 %v2714
    %v3481 = vunpack.c.h.b16 %v2714
    %v3482 = vunpack.c.l.b16 %v2715
    %v3483 = vunpack.c.l.b16 %v2716
    %v3484 = vunpack.c.h.b16 %v2716
    %v3485 = vunpack.c.l.b16 %v2717
    %v3486 = vunpack.c.h.b16 %v2717
    %v3487 = vunpack.c.l.b16 %v2718
    %v3488 = vunpack.c.h.b16 %v2718
    %v3489 = vunpack.c.l.b16 %v2719
    %v3490 = vunpack.c.l.b16 %v2720
    %v3491 = vunpack.c.h.b16 %v2720
    %v3492 = vunpack.c.l.b16 %v2721
    %v3493 = vunpack.c.h.b16 %v2721
    %v3494 = vunpack.c.l.b16 %v2722
    %v3495 = vunpack.c.h.b16 %v2722
    %v3496 = vunpack.c.l.b16 %v2723
    %v3497 = vunpack.c.l.b16 %v2724
    %v3498 = vunpack.c.h.b16 %v2724
    %v3499 = vunpack.c.l.b16 %v2725
    %v3500 = vunpack.c.h.b16 %v2725
    %v3501 = vunpack.c.l.b16 %v2726
    %v3502 = vunpack.c.h.b16 %v2726
    %v3503 = vunpack.c.l.b16 %v2727
    %v3504 = vunpack.c.l.b16 %v2728
    %v3505 = vunpack.c.h.b16 %v2728
    %v3506 = vunpack.c.l.b16 %v2729
    %v3507 = vunpack.c.h.b16 %v2729
    %v3508 = vunpack.c.l.b16 %v2730
    %v3509 = vunpack.c.h.b16 %v2730
    %v3510 = vunpack.c.l.b16 %v2731
    %v3511 = vunpack.c.l.b16 %v2732
    %v3512 = vunpack.c.h.b16 %v2732
    %v3513 = vunpack.c.l.b16 %v2733
    %v3514 = vunpack.c.h.b16 %v2733
    %v3515 = vunpack.c.l.b16 %v2734
    %v3516 = vunpack.c.h.b16 %v2734
    %v3517 = vunpack.c.l.b16 %v2735
    %v3518 = vunpack.c.l.b16 %v2736
    %v3519 = vunpack.c.h.b16 %v2736
    %v3520 = vunpack.c.l.b16 %v2737
    %v3521 = vunpack.c.h.b16 %v2737
    %v3522 = vunpack.c.l.b16 %v2738
    %v3523 = vunpack.c.h.b16 %v2738
    %v3524 = vunpack.c.l.b16 %v2739
    %v3525 = vunpack.c.l.b16 %v2740
    %v3526 = vunpack.c.h.b16 %v2740
    %v3527 = vunpack.c.l.b16 %v2741
    %v3528 = vunpack.c.h.b16 %v2741
    %v3529 = vunpack.c.l.b16 %v2742
    %v3530 = vunpack.c.h.b16 %v2742
    %v3531 = vunpack.c.l.b16 %v2743
    %v3532 = vunpack.c.l.b16 %v2744
    %v3533 = vunpack.c.h.b16 %v2744
    %v3534 = vunpack.c.l.b16 %v2745
    %v3535 = vunpack.c.h.b16 %v2745
    %v3536 = vunpack.c.l.b16 %v2746
    %v3537 = vunpack.c.h.b16 %v2746
    %v3538 = vunpack.c.l.b16 %v2747
    %v3539 = vunpack.c.l.b16 %v2748
    %v3540 = vunpack.c.h.b16 %v2748
    %v3541 = vunpack.c.l.b16 %v2749
    %v3542 = vunpack.c.h.b16 %v2749
    %v3543 = vunpack.c.l.b16 %v2750
    %v3544 = vunpack.c.h.b16 %v2750
    %v3545 = vunpack.c.l.b16 %v2751
    %v3546 = vunpack.c.l.b16 %v2752
    %v3547 = vunpack.c.h.b16 %v2752
    %v3548 = vunpack.c.l.b16 %v2753
    %v3549 = vunpack.c.h.b16 %v2753
    %v3550 = vunpack.c.l.b16 %v2754
    %v3551 = vunpack.c.h.b16 %v2754
    %v3552 = vunpack.c.l.b16 %v2755
    %v3553 = vunpack.c.l.b16 %v2756
    %v3554 = vunpack.c.h.b16 %v2756
    %v3555 = vunpack.c.l.b16 %v2757
    %v3556 = vunpack.c.h.b16 %v2757
    %v3557 = vunpack.c.l.b16 %v2758
    %v3558 = vunpack.c.h.b16 %v2758
    %v3559 = vunpack.c.l.b16 %v2759
    %v3560 = vunpack.c.l.b16 %v2760
    %v3561 = vunpack.c.h.b16 %v2760
    %v3562 = vunpack.c.l.b16 %v2761
    %v3563 = vunpack.c.h.b16 %v2761
    %v3564 = vunpack.c.l.b16 %v2762
    %v3565 = vunpack.c.h.b16 %v2762
    %v3566 = vunpack.c.l.b16 %v2763
    %v3567 = vunpack.c.l.b16 %v2764
    %v3568 = vunpack.c.h.b16 %v2764
    %v3569 = vunpack.c.l.b16 %v2765
    %v3570 = vunpack.c.h.b16 %v2765
    %v3571 = vunpack.c.l.b16 %v2766
    %v3572 = vunpack.c.h.b16 %v2766
    %v3573 = vunpack.c.l.b16 %v2767
    %v3574 = vunpack.c.l.b16 %v2768
    %v3575 = vunpack.c.h.b16 %v2768
    %v3576 = vunpack.c.l.b16 %v2769
    %v3577 = vunpack.c.h.b16 %v2769
    %v3578 = vunpack.c.l.b16 %v2770
    %v3579 = vunpack.c.h.b16 %v2770
    %v3580 = vunpack.c.l.b16 %v2771
    %v3581 = vunpack.c.l.b16 %v2772
    %v3582 = vunpack.c.h.b16 %v2772
    %v3583 = vunpack.c.l.b16 %v2773
    %v3584 = vunpack.c.h.b16 %v2773
    %v3585 = vunpack.c.l.b16 %v2774
    %v3586 = vunpack.c.h.b16 %v2774
    %v3587 = vunpack.c.l.b16 %v2775
    %v3588 = vunpack.c.l.b16 %v2776
    %v3589 = vunpack.c.h.b16 %v2776
    %v3590 = vunpack.c.l.b16 %v2777
    %v3591 = vunpack.c.h.b16 %v2777
    %v3592 = vunpack.c.l.b16 %v2778
    %v3593 = vunpack.c.h.b16 %v2778
    %v3594 = vunpack.c.l.b16 %v2779
    %v3595 = vunpack.c.l.b16 %v2780
    %v3596 = vunpack.c.h.b16 %v2780
    %v3597 = vunpack.c.l.b16 %v2781
    %v3598 = vunpack.c.h.b16 %v2781
    %v3599 = vunpack.c.l.b16 %v2782
    %v3600 = vunpack.c.h.b16 %v2782
    %v3601 = vunpack.c.l.b16 %v2783
    %v3602 = vunpack.c.l.b16 %v2784
    %v3603 = vunpack.c.h.b16 %v2784
    %v3604 = vunpack.c.l.b16 %v2785
    %v3605 = vunpack.c.h.b16 %v2785
    %v3606 = vunpack.c.l.b16 %v2786
    %v3607 = vunpack.c.h.b16 %v2786
    %v3608 = vunpack.c.l.b16 %v2787
    %v3609 = vunpack.c.l.b16 %v2788
    %v3610 = vunpack.c.h.b16 %v2788
    %v3611 = vunpack.c.l.b16 %v2789
    %v3612 = vunpack.c.h.b16 %v2789
    %v3613 = vunpack.c.l.b16 %v2790
    %v3614 = vunpack.c.h.b16 %v2790
    %v3615 = vunpack.c.l.b16 %v2791
    %v3616 = vunpack.c.l.b16 %v2792
    %v3617 = vunpack.c.h.b16 %v2792
    %v3618 = vunpack.c.l.b16 %v2793
    %v3619 = vunpack.c.h.b16 %v2793
    %v3620 = vunpack.c.l.b16 %v2794
    %v3621 = vunpack.c.h.b16 %v2794
    %v3622 = vunpack.c.l.b16 %v2795
    %v3623 = vunpack.c.l.b16 %v2796
    %v3624 = vunpack.c.h.b16 %v2796
    %v3625 = vunpack.c.l.b16 %v2797
    %v3626 = vunpack.c.h.b16 %v2797
    %v3627 = vunpack.c.l.b16 %v2798
    %v3628 = vunpack.c.h.b16 %v2798
    %v3629 = vunpack.c.l.b16 %v2799
    %v3630 = vunpack.c.l.b16 %v2800
    %v3631 = vunpack.c.h.b16 %v2800
    %v3632 = vunpack.c.l.b16 %v2801
    %v3633 = vunpack.c.h.b16 %v2801
    %v3634 = vunpack.c.l.b16 %v2802
    %v3635 = vunpack.c.h.b16 %v2802
    %v3636 = vunpack.c.l.b16 %v2803
    %v3637 = vunpack.c.l.b16 %v2804
    %v3638 = vunpack.c.h.b16 %v2804
    %v3639 = vunpack.c.l.b16 %v2805
    %v3640 = vunpack.c.h.b16 %v2805
    %v3641 = vunpack.c.l.b16 %v2806
    %v3642 = vunpack.c.h.b16 %v2806
    %v3643 = vunpack.c.l.b16 %v2807
    %v3644 = vunpack.c.l.b16 %v2808
    %v3645 = vunpack.c.h.b16 %v2808
    %v3646 = vunpack.c.l.b16 %v2809
    %v3647 = vunpack.c.h.b16 %v2809
    %v3648 = vunpack.c.l.b16 %v2810
    %v3649 = vunpack.c.h.b16 %v2810
    %v3650 = vunpack.c.l.b16 %v2811
    %v3651 = vunpack.c.l.b16 %v2812
    %v3652 = vunpack.c.h.b16 %v2812
    %v3653 = vunpack.c.l.b16 %v2813
    %v3654 = vunpack.c.h.b16 %v2813
    %v3655 = vunpack.c.l.b16 %v2814
    %v3656 = vunpack.c.h.b16 %v2814
    %v3657 = vunpack.c.l.b16 %v2815
    %v3658 = vunpack.c.l.b16 %v2816
    %v3659 = vunpack.c.h.b16 %v2816
    %v3660 = vunpack.c.l.b16 %v2817
    %v3661 = vunpack.c.h.b16 %v2817
    %v3662 = vunpack.c.l.b16 %v2818
    %v3663 = vunpack.c.h.b16 %v2818
    %v3664 = vunpack.c.l.b16 %v2819
    %v3665 = vunpack.c.l.b16 %v2820
    %v3666 = vunpack.c.h.b16 %v2820
    %v3667 = vunpack.c.l.b16 %v2821
    %v3668 = vunpack.c.h.b16 %v2821
    %v3669 = vunpack.c.l.b16 %v2822
    %v3670 = vunpack.c.h.b16 %v2822
    %v3671 = vunpack.c.l.b16 %v2823
    %v3672 = vunpack.c.l.b16 %v2824
    %v3673 = vunpack.c.h.b16 %v2824
    %v3674 = vunpack.c.l.b16 %v2825
    %v3675 = vunpack.c.h.b16 %v2825
    %v3676 = vunpack.c.l.b16 %v2826
    %v3677 = vunpack.c.h.b16 %v2826
    %v3678 = vunpack.c.l.b16 %v2827
    %v3679 = vunpack.c.l.b16 %v2828
    %v3680 = vunpack.c.h.b16 %v2828
    %v3681 = vunpack.c.l.b16 %v2829
    %v3682 = vunpack.c.h.b16 %v2829
    %v3683 = vunpack.c.l.b16 %v2830
    %v3684 = vunpack.c.h.b16 %v2830
    %v3685 = vunpack.c.l.b16 %v2831
    %v3686 = vunpack.c.l.b16 %v2832
    %v3687 = vunpack.c.h.b16 %v2832
    %v3688 = vunpack.c.l.b16 %v2833
    %v3689 = vunpack.c.h.b16 %v2833
    %v3690 = vunpack.c.l.b16 %v2834
    %v3691 = vunpack.c.h.b16 %v2834
    %v3692 = vunpack.c.l.b16 %v2835
    %v3693 = vunpack.c.l.b16 %v2836
    %v3694 = vunpack.c.h.b16 %v2836
    %v3695 = vunpack.c.l.b16 %v2837
    %v3696 = vunpack.c.h.b16 %v2837
    %v3697 = vunpack.c.l.b16 %v2838
    %v3698 = vunpack.c.h.b16 %v2838
    %v3699 = vunpack.c.l.b16 %v2839
    %v3700 = vunpack.c.l.b16 %v2840
    %v3701 = vunpack.c.h.b16 %v2840
    %v3702 = vunpack.c.l.b16 %v2841
    %v3703 = vunpack.c.h.b16 %v2841
    %v3704 = vunpack.c.l.b16 %v2842
    %v3705 = vunpack.c.h.b16 %v2842
    %v3706 = vunpack.c.l.b16 %v2843
    %v3707 = vunpack.c.l.b16 %v2844
    %v3708 = vunpack.c.h.b16 %v2844
    %v3709 = vunpack.c.l.b16 %v2845
    %v3710 = vunpack.c.h.b16 %v2845
    %v3711 = vunpack.c.l.b16 %v2846
    %v3712 = vunpack.c.h.b16 %v2846
    %v3713 = vunpack.c.l.b16 %v2847
    %v3714 = vunpack.c.l.b16 %v2848
    %v3715 = vunpack.c.h.b16 %v2848
    %v3716 = vunpack.c.l.b16 %v2849
    %v3717 = vunpack.c.h.b16 %v2849
    %v3718 = vunpack.c.l.b16 %v2850
    %v3719 = vunpack.c.h.b16 %v2850
    %v3720 = vunpack.c.l.b16 %v2851
    %v3721 = vunpack.c.l.b16 %v2852
    %v3722 = vunpack.c.h.b16 %v2852
    %v3723 = vunpack.c.l.b16 %v2853
    %v3724 = vunpack.c.h.b16 %v2853
    %v3725 = vunpack.c.l.b16 %v2854
    %v3726 = vunpack.c.h.b16 %v2854
    %v3727 = vunpack.c.l.b16 %v2855
    %v3728 = vunpack.c.l.b16 %v2856
    %v3729 = vunpack.c.h.b16 %v2856
    %v3730 = vunpack.c.l.b16 %v2857
    %v3731 = vunpack.c.h.b16 %v2857
    %v3732 = vunpack.c.l.b16 %v2858
    %v3733 = vunpack.c.h.b16 %v2858
    %v3734 = vunpack.c.l.b16 %v2859
    %v3735 = vunpack.c.l.b16 %v2860
    %v3736 = vunpack.c.h.b16 %v2860
    %v3737 = vunpack.c.l.b16 %v2861
    %v3738 = vunpack.c.h.b16 %v2861
    %v3739 = vunpack.c.l.b16 %v2862
    %v3740 = vunpack.c.h.b16 %v2862
    %v3741 = vunpack.c.l.b16 %v2863
    %v3742 = vunpack.c.l.b16 %v2864
    %v3743 = vunpack.c.h.b16 %v2864
    %v3744 = vunpack.c.l.b16 %v2865
    %v3745 = vunpack.c.h.b16 %v2865
    %v3746 = vunpack.c.l.b16 %v2866
    %v3747 = vunpack.c.h.b16 %v2866
    %v3748 = vunpack.c.l.b16 %v2867
    %v3749 = vunpack.c.l.b16 %v2868
    %v3750 = vunpack.c.h.b16 %v2868
    %v3751 = vunpack.c.l.b16 %v2869
    %v3752 = vunpack.c.h.b16 %v2869
    %v3753 = vunpack.c.l.b16 %v2870
    %v3754 = vunpack.c.h.b16 %v2870
    %v3755 = vunpack.c.l.b16 %v2871
    %v3756 = vunpack.c.l.b16 %v2872
    %v3757 = vunpack.c.h.b16 %v2872
    %v3758 = vunpack.c.l.b16 %v2873
    %v3759 = vunpack.c.h.b16 %v2873
    %v3760 = vunpack.c.l.b16 %v2874
    %v3761 = vunpack.c.h.b16 %v2874
    %v3762 = vunpack.c.l.b16 %v2875
    %v3763 = vunpack.c.l.b16 %v2876
    %v3764 = vunpack.c.h.b16 %v2876
    %v3765 = vunpack.c.l.b16 %v2877
    %v3766 = vunpack.c.h.b16 %v2877
    %v3767 = vunpack.c.l.b16 %v2878
    %v3768 = vunpack.c.h.b16 %v2878
    %v3769 = vunpack.c.l.b16 %v2879
    %v3770 = vunpack.c.l.b16 %v2880
    %v3771 = vunpack.c.h.b16 %v2880
    %v3772 = vunpack.c.l.b16 %v2881
    %v3773 = vunpack.c.h.b16 %v2881
    %v3774 = vunpack.c.l.b16 %v2882
    %v3775 = vunpack.c.h.b16 %v2882
    %v3776 = vunpack.c.l.b16 %v2883
    %v3777 = vunpack.c.l.b16 %v2884
    %v3778 = vunpack.c.h.b16 %v2884
    %v3779 = vunpack.c.l.b16 %v2885
    %v3780 = vunpack.c.h.b16 %v2885
    %v3781 = vunpack.c.l.b16 %v2886
    %v3782 = vunpack.c.h.b16 %v2886
    %v3783 = vunpack.c.l.b16 %v2887
    %v3784 = vunpack.c.l.b16 %v2888
    %v3785 = vunpack.c.h.b16 %v2888
    %v3786 = vunpack.c.l.b16 %v2889
    %v3787 = vunpack.c.h.b16 %v2889
    %v3788 = vunpack.c.l.b16 %v2890
    %v3789 = vunpack.c.h.b16 %v2890
    %v3790 = vunpack.c.l.b16 %v2891
    %v3791 = vunpack.c.l.b16 %v2892
    %v3792 = vunpack.c.h.b16 %v2892
    %v3793 = vunpack.c.l.b16 %v2893
    %v3794 = vunpack.c.h.b16 %v2893
    %v3795 = vunpack.c.l.b16 %v2894
    %v3796 = vunpack.c.h.b16 %v2894
    %v3797 = vunpack.c.l.b16 %v2895
    %v3798 = vunpack.c.l.b16 %v2896
    %v3799 = vunpack.c.h.b16 %v2896
    %v3800 = vunpack.c.l.b16 %v2897
    %v3801 = vunpack.c.h.b16 %v2897
    %v3802 = vunpack.c.l.b16 %v2898
    %v3803 = vunpack.c.h.b16 %v2898
    %v3804 = vunpack.c.l.b16 %v2899
    %v3805 = vunpack.c.l.b16 %v2900
    %v3806 = vunpack.c.h.b16 %v2900
    %v3807 = vunpack.c.l.b16 %v2901
    %v3808 = vunpack.c.h.b16 %v2901
    %v3809 = vunpack.c.l.b16 %v2902
    %v3810 = vunpack.c.h.b16 %v2902
    %v3811 = vunpack.c.l.b16 %v2903
    %v3812 = vunpack.c.l.b16 %v2904
    %v3813 = vunpack.c.h.b16 %v2904
    %v3814 = vunpack.c.l.b16 %v2905
    %v3815 = vunpack.c.h.b16 %v2905
    %v3816 = vunpack.c.l.b16 %v2906
    %v3817 = vunpack.c.h.b16 %v2906
    %v3818 = vunpack.c.l.b16 %v2907
    %v3819 = vunpack.c.l.b16 %v2908
    %v3820 = vunpack.c.h.b16 %v2908
    %v3821 = vunpack.c.l.b16 %v2909
    %v3822 = vunpack.c.h.b16 %v2909
    %v3823 = vunpack.c.l.b16 %v2910
    %v3824 = vunpack.c.h.b16 %v2910
    %v3825 = vunpack.c.l.b16 %v2911
    %v3826 = vunpack.c.l.b16 %v2912
    %v3827 = vunpack.c.h.b16 %v2912
    %v3828 = vunpack.c.l.b16 %v2913
    %v3829 = vunpack.c.h.b16 %v2913
    %v3830 = vunpack.c.l.b16 %v2914
    %v3831 = vunpack.c.h.b16 %v2914
    %v3832 = vunpack.c.l.b16 %v2915
    %v3833 = vpack.c.b16 %v3280, %v3273
    %v3834 = vpack.c.b16 %v3281, %v3274
    %v3835 = vpack.c.b16 %v3282, %v3275
    %v3836 = vpack.c.b16 %v3283, %v3276
    %v3837 = vpack.c.b16 %v3284, %v3277
    %v3838 = vpack.c.b16 %v3285, %v3278
    %v3839 = vpack.c.b16 %v3286, %v3279
    %v3840 = vpack.c.b16 %v3294, %v3287
    %v3841 = vpack.c.b16 %v3295, %v3288
    %v3842 = vpack.c.b16 %v3296, %v3289
    %v3843 = vpack.c.b16 %v3297, %v3290
    %v3844 = vpack.c.b16 %v3298, %v3291
    %v3845 = vpack.c.b16 %v3299, %v3292
    %v3846 = vpack.c.b16 %v3300, %v3293
    %v3847 = vpack.c.b16 %v3308, %v3301
    %v3848 = vpack.c.b16 %v3309, %v3302
    %v3849 = vpack.c.b16 %v3310, %v3303
    %v3850 = vpack.c.b16 %v3311, %v3304
    %v3851 = vpack.c.b16 %v3312, %v3305
    %v3852 = vpack.c.b16 %v3313, %v3306
    %v3853 = vpack.c.b16 %v3314, %v3307
    %v3854 = vpack.c.b16 %v3322, %v3315
    %v3855 = vpack.c.b16 %v3323, %v3316
    %v3856 = vpack.c.b16 %v3324, %v3317
    %v3857 = vpack.c.b16 %v3325, %v3318
    %v3858 = vpack.c.b16 %v3326, %v3319
    %v3859 = vpack.c.b16 %v3327, %v3320
    %v3860 = vpack.c.b16 %v3328, %v3321
    %v3861 = vpack.c.b16 %v3336, %v3329
    %v3862 = vpack.c.b16 %v3337, %v3330
    %v3863 = vpack.c.b16 %v3338, %v3331
    %v3864 = vpack.c.b16 %v3339, %v3332
    %v3865 = vpack.c.b16 %v3340, %v3333
    %v3866 = vpack.c.b16 %v3341, %v3334
    %v3867 = vpack.c.b16 %v3342, %v3335
    %v3868 = vpack.c.b16 %v3350, %v3343
    %v3869 = vpack.c.b16 %v3351, %v3344
    %v3870 = vpack.c.b16 %v3352, %v3345
    %v3871 = vpack.c.b16 %v3353, %v3346
    %v3872 = vpack.c.b16 %v3354, %v3347
    %v3873 = vpack.c.b16 %v3355, %v3348
    %v3874 = vpack.c.b16 %v3356, %v3349
    %v3875 = vpack.c.b16 %v3364, %v3357
    %v3876 = vpack.c.b16 %v3365, %v3358
    %v3877 = vpack.c.b16 %v3366, %v3359
    %v3878 = vpack.c.b16 %v3367, %v3360
    %v3879 = vpack.c.b16 %v3368, %v3361
    %v3880 = vpack.c.b16 %v3369, %v3362
    %v3881 = vpack.c.b16 %v3370, %v3363
    %v3882 = vpack.c.b16 %v3378, %v3371
    %v3883 = vpack.c.b16 %v3379, %v3372
    %v3884 = vpack.c.b16 %v3380, %v3373
    %v3885 = vpack.c.b16 %v3381, %v3374
    %v3886 = vpack.c.b16 %v3382, %v3375
    %v3887 = vpack.c.b16 %v3383, %v3376
    %v3888 = vpack.c.b16 %v3384, %v3377
    %v3889 = vpack.c.b16 %v3392, %v3385
    %v3890 = vpack.c.b16 %v3393, %v3386
    %v3891 = vpack.c.b16 %v3394, %v3387
    %v3892 = vpack.c.b16 %v3395, %v3388
    %v3893 = vpack.c.b16 %v3396, %v3389
    %v3894 = vpack.c.b16 %v3397, %v3390
    %v3895 = vpack.c.b16 %v3398, %v3391
    %v3896 = vpack.c.b16 %v3406, %v3399
    %v3897 = vpack.c.b16 %v3407, %v3400
    %v3898 = vpack.c.b16 %v3408, %v3401
    %v3899 = vpack.c.b16 %v3409, %v3402
    %v3900 = vpack.c.b16 %v3410, %v3403
    %v3901 = vpack.c.b16 %v3411, %v3404
    %v3902 = vpack.c.b16 %v3412, %v3405
    %v3903 = vpack.c.b16 %v3420, %v3413
    %v3904 = vpack.c.b16 %v3421, %v3414
    %v3905 = vpack.c.b16 %v3422, %v3415
    %v3906 = vpack.c.b16 %v3423, %v3416
    %v3907 = vpack.c.b16 %v3424, %v3417
    %v3908 = vpack.c.b16 %v3425, %v3418
    %v3909 = vpack.c.b16 %v3426, %v3419
    %v3910 = vpack.c.b16 %v3434, %v3427
    %v3911 = vpack.c.b16 %v3435, %v3428
    %v3912 = vpack.c.b16 %v3436, %v3429
    %v3913 = vpack.c.b16 %v3437, %v3430
    %v3914 = vpack.c.b16 %v3438, %v3431
    %v3915 = vpack.c.b16 %v3439, %v3432
    %v3916 = vpack.c.b16 %v3440, %v3433
    %v3917 = vpack.c.b16 %v3448, %v3441
    %v3918 = vpack.c.b16 %v3449, %v3442
    %v3919 = vpack.c.b16 %v3450, %v3443
    %v3920 = vpack.c.b16 %v3451, %v3444
    %v3921 = vpack.c.b16 %v3452, %v3445
    %v3922 = vpack.c.b16 %v3453, %v3446
    %v3923 = vpack.c.b16 %v3454, %v3447
    %v3924 = vpack.c.b16 %v3462, %v3455
    %v3925 = vpack.c.b16 %v3463, %v3456
    %v3926 = vpack.c.b16 %v3464, %v3457
    %v3927 = vpack.c.b16 %v3465, %v3458
    %v3928 = vpack.c.b16 %v3466, %v3459
    %v3929 = vpack.c.b16 %v3467, %v3460
    %v3930 = vpack.c.b16 %v3468, %v3461
    %v3931 = vpack.c.b16 %v3476, %v3469
    %v3932 = vpack.c.b16 %v3477, %v3470
    %v3933 = vpack.c.b16 %v3478, %v3471
    %v3934 = vpack.c.b16 %v3479, %v3472
    %v3935 = vpack.c.b16 %v3480, %v3473
    %v3936 = vpack.c.b16 %v3481, %v3474
    %v3937 = vpack.c.b16 %v3482, %v3475
    %v3938 = vpack.c.b16 %v3490, %v3483
    %v3939 = vpack.c.b16 %v3491, %v3484
    %v3940 = vpack.c.b16 %v3492, %v3485
    %v3941 = vpack.c.b16 %v3493, %v3486
    %v3942 = vpack.c.b16 %v3494, %v3487
    %v3943 = vpack.c.b16 %v3495, %v3488
    %v3944 = vpack.c.b16 %v3496, %v3489
    %v3945 = vpack.c.b16 %v3504, %v3497
    %v3946 = vpack.c.b16 %v3505, %v3498
    %v3947 = vpack.c.b16 %v3506, %v3499
    %v3948 = vpack.c.b16 %v3507, %v3500
    %v3949 = vpack.c.b16 %v3508, %v3501
    %v3950 = vpack.c.b16 %v3509, %v3502
    %v3951 = vpack.c.b16 %v3510, %v3503
    %v3952 = vpack.c.b16 %v3518, %v3511
    %v3953 = vpack.c.b16 %v3519, %v3512
    %v3954 = vpack.c.b16 %v3520, %v3513
    %v3955 = vpack.c.b16 %v3521, %v3514
    %v3956 = vpack.c.b16 %v3522, %v3515
    %v3957 = vpack.c.b16 %v3523, %v3516
    %v3958 = vpack.c.b16 %v3524, %v3517
    %v3959 = vpack.c.b16 %v3532, %v3525
    %v3960 = vpack.c.b16 %v3533, %v3526
    %v3961 = vpack.c.b16 %v3534, %v3527
    %v3962 = vpack.c.b16 %v3535, %v3528
    %v3963 = vpack.c.b16 %v3536, %v3529
    %v3964 = vpack.c.b16 %v3537, %v3530
    %v3965 = vpack.c.b16 %v3538, %v3531
    %v3966 = vpack.c.b16 %v3546, %v3539
    %v3967 = vpack.c.b16 %v3547, %v3540
    %v3968 = vpack.c.b16 %v3548, %v3541
    %v3969 = vpack.c.b16 %v3549, %v3542
    %v3970 = vpack.c.b16 %v3550, %v3543
    %v3971 = vpack.c.b16 %v3551, %v3544
    %v3972 = vpack.c.b16 %v3552, %v3545
    %v3973 = vpack.c.b16 %v3560, %v3553
    %v3974 = vpack.c.b16 %v3561, %v3554
    %v3975 = vpack.c.b16 %v3562, %v3555
    %v3976 = vpack.c.b16 %v3563, %v3556
    %v3977 = vpack.c.b16 %v3564, %v3557
    %v3978 = vpack.c.b16 %v3565, %v3558
    %v3979 = vpack.c.b16 %v3566, %v3559
    %v3980 = vpack.c.b16 %v3574, %v3567
    %v3981 = vpack.c.b16 %v3575, %v3568
    %v3982 = vpack.c.b16 %v3576, %v3569
    %v3983 = vpack.c.b16 %v3577, %v3570
    %v3984 = vpack.c.b16 %v3578, %v3571
    %v3985 = vpack.c.b16 %v3579, %v3572
    %v3986 = vpack.c.b16 %v3580, %v3573
    %v3987 = vpack.c.b16 %v3588, %v3581
    %v3988 = vpack.c.b16 %v3589, %v3582
    %v3989 = vpack.c.b16 %v3590, %v3583
    %v3990 = vpack.c.b16 %v3591, %v3584
    %v3991 = vpack.c.b16 %v3592, %v3585
    %v3992 = vpack.c.b16 %v3593, %v3586
    %v3993 = vpack.c.b16 %v3594, %v3587
    %v3994 = vpack.c.b16 %v3602, %v3595
    %v3995 = vpack.c.b16 %v3603, %v3596
    %v3996 = vpack.c.b16 %v3604, %v3597
    %v3997 = vpack.c.b16 %v3605, %v3598
    %v3998 = vpack.c.b16 %v3606, %v3599
    %v3999 = vpack.c.b16 %v3607, %v3600
    %v4000 = vpack.c.b16 %v3608, %v3601
    %v4001 = vpack.c.b16 %v3616, %v3609
    %v4002 = vpack.c.b16 %v3617, %v3610
    %v4003 = vpack.c.b16 %v3618, %v3611
    %v4004 = vpack.c.b16 %v3619, %v3612
    %v4005 = vpack.c.b16 %v3620, %v3613
    %v4006 = vpack.c.b16 %v3621, %v3614
    %v4007 = vpack.c.b16 %v3622, %v3615
    %v4008 = vpack.c.b16 %v3630, %v3623
    %v4009 = vpack.c.b16 %v3631, %v3624
    %v4010 = vpack.c.b16 %v3632, %v3625
    %v4011 = vpack.c.b16 %v3633, %v3626
    %v4012 = vpack.c.b16 %v3634, %v3627
    %v4013 = vpack.c.b16 %v3635, %v3628
    %v4014 = vpack.c.b16 %v3636, %v3629
    %v4015 = vpack.c.b16 %v3644, %v3637
    %v4016 = vpack.c.b16 %v3645, %v3638
    %v4017 = vpack.c.b16 %v3646, %v3639
    %v4018 = vpack.c.b16 %v3647, %v3640
    %v4019 = vpack.c.b16 %v3648, %v3641
    %v4020 = vpack.c.b16 %v3649, %v3642
    %v4021 = vpack.c.b16 %v3650, %v3643
    %v4022 = vpack.c.b16 %v3658, %v3651
    %v4023 = vpack.c.b16 %v3659, %v3652
    %v4024 = vpack.c.b16 %v3660, %v3653
    %v4025 = vpack.c.b16 %v3661, %v3654
    %v4026 = vpack.c.b16 %v3662, %v3655
    %v4027 = vpack.c.b16 %v3663, %v3656
    %v4028 = vpack.c.b16 %v3664, %v3657
    %v4029 = vpack.c.b16 %v3672, %v3665
    %v4030 = vpack.c.b16 %v3673, %v3666
    %v4031 = vpack.c.b16 %v3674, %v3667
    %v4032 = vpack.c.b16 %v3675, %v3668
    %v4033 = vpack.c.b16 %v3676, %v3669
    %v4034 = vpack.c.b16 %v3677, %v3670
    %v4035 = vpack.c.b16 %v3678, %v3671
    %v4036 = vpack.c.b16 %v3686, %v3679
    %v4037 = vpack.c.b16 %v3687, %v3680
    %v4038 = vpack.c.b16 %v3688, %v3681
    %v4039 = vpack.c.b16 %v3689, %v3682
    %v4040 = vpack.c.b16 %v3690, %v3683
    %v4041 = vpack.c.b16 %v3691, %v3684
    %v4042 = vpack.c.b16 %v3692, %v3685
    %v4043 = vpack.c.b16 %v3700, %v3693
    %v4044 = vpack.c.b16 %v3701, %v3694
    %v4045 = vpack.c.b16 %v3702, %v3695
    %v4046 = vpack.c.b16 %v3703, %v3696
    %v4047 = vpack.c.b16 %v3704, %v3697
    %v4048 = vpack.c.b16 %v3705, %v3698
    %v4049 = vpack.c.b16 %v3706, %v3699
    %v4050 = vpack.c.b16 %v3714, %v3707
    %v4051 = vpack.c.b16 %v3715, %v3708
    %v4052 = vpack.c.b16 %v3716, %v3709
    %v4053 = vpack.c.b16 %v3717, %v3710
    %v4054 = vpack.c.b16 %v3718, %v3711
    %v4055 = vpack.c.b16 %v3719, %v3712
    %v4056 = vpack.c.b16 %v3720, %v3713
    %v4057 = vpack.c.b16 %v3728, %v3721
    %v4058 = vpack.c.b16 %v3729, %v3722
    %v4059 = vpack.c.b16 %v3730, %v3723
    %v4060 = vpack.c.b16 %v3731, %v3724
    %v4061 = vpack.c.b16 %v3732, %v3725
    %v4062 = vpack.c.b16 %v3733, %v3726
    %v4063 = vpack.c.b16 %v3734, %v3727
    %v4064 = vpack.c.b16 %v3742, %v3735
    %v4065 = vpack.c.b16 %v3743, %v3736
    %v4066 = vpack.c.b16 %v3744, %v3737
    %v4067 = vpack.c.b16 %v3745, %v3738
    %v4068 = vpack.c.b16 %v3746, %v3739
    %v4069 = vpack.c.b16 %v3747, %v3740
    %v4070 = vpack.c.b16 %v3748, %v3741
    %v4071 = vpack.c.b16 %v3756, %v3749
    %v4072 = vpack.c.b16 %v3757, %v3750
    %v4073 = vpack.c.b16 %v3758, %v3751
    %v4074 = vpack.c.b16 %v3759, %v3752
    %v4075 = vpack.c.b16 %v3760, %v3753
    %v4076 = vpack.c.b16 %v3761, %v3754
    %v4077 = vpack.c.b16 %v3762, %v3755
    %v4078 = vpack.c.b16 %v3770, %v3763
    %v4079 = vpack.c.b16 %v3771, %v3764
    %v4080 = vpack.c.b16 %v3772, %v3765
    %v4081 = vpack.c.b16 %v3773, %v3766
    %v4082 = vpack.c.b16 %v3774, %v3767
    %v4083 = vpack.c.b16 %v3775, %v3768
    %v4084 = vpack.c.b16 %v3776, %v3769
    %v4085 = vpack.c.b16 %v3784, %v3777
    %v4086 = vpack.c.b16 %v3785, %v3778
    %v4087 = vpack.c.b16 %v3786, %v3779
    %v4088 = vpack.c.b16 %v3787, %v3780
    %v4089 = vpack.c.b16 %v3788, %v3781
    %v4090 = vpack.c.b16 %v3789, %v3782
    %v4091 = vpack.c.b16 %v3790, %v3783
    %v4092 = vpack.c.b16 %v3798, %v3791
    %v4093 = vpack.c.b16 %v3799, %v3792
    %v4094 = vpack.c.b16 %v3800, %v3793
    %v4095 = vpack.c.b16 %v3801, %v3794
    %v4096 = vpack.c.b16 %v3802, %v3795
    %v4097 = vpack.c.b16 %v3803, %v3796
    %v4098 = vpack.c.b16 %v3804, %v3797
    %v4099 = vpack.c.b16 %v3812, %v3805
    %v4100 = vpack.c.b16 %v3813, %v3806
    %v4101 = vpack.c.b16 %v3814, %v3807
    %v4102 = vpack.c.b16 %v3815, %v3808
    %v4103 = vpack.c.b16 %v3816, %v3809
    %v4104 = vpack.c.b16 %v3817, %v3810
    %v4105 = vpack.c.b16 %v3818, %v3811
    %v4106 = vpack.c.b16 %v3826, %v3819
    %v4107 = vpack.c.b16 %v3827, %v3820
    %v4108 = vpack.c.b16 %v3828, %v3821
    %v4109 = vpack.c.b16 %v3829, %v3822
    %v4110 = vpack.c.b16 %v3830, %v3823
    %v4111 = vpack.c.b16 %v3831, %v3824
    %v4112 = vpack.c.b16 %v3832, %v3825
    %4393 = vmatprep.subr.bf16.mxu0 %v3834
    %4394 = vmatpush1.bf16.msra.mxu0 %v3833
    %4395 = vmatprep.subr.bf16.mxu0 %v3841
    %4396 = vmatpush1.bf16.msra.mxu0 %v3840
    %4397 = vmatprep.subr.bf16.mxu0 %v3848
    %4398 = vmatpush1.bf16.msra.mxu0 %v3847
    %4399 = vmatprep.subr.bf16.mxu0 %v3855
    %4400 = vmatpush1.bf16.msra.mxu0 %v3854
    %4401 = vmatprep.subr.bf16.mxu0 %v3862
    %4402 = vmatpush1.bf16.msra.mxu0 %v3861
    %4403 = vmatprep.subr.bf16.mxu0 %v3869
    %4404 = vmatpush1.bf16.msra.mxu0 %v3868
    %4405 = vmatprep.subr.bf16.mxu0 %v3876
    %4406 = vmatpush1.bf16.msra.mxu0 %v3875
    %4407 = vmatprep.subr.bf16.mxu0 %v3883
    %4408 = vmatpush1.bf16.msra.mxu0 %v3882
    %4409 = vmatprep.subr.bf16.mxu0 %v3890
    %4410 = vmatpush1.bf16.msra.mxu0 %v3889
    %4411 = vmatprep.subr.bf16.mxu0 %v3897
    %4412 = vmatpush1.bf16.msra.mxu0 %v3896
    %4413 = vmatprep.subr.bf16.mxu0 %v3904
    %4414 = vmatpush1.bf16.msra.mxu0 %v3903
    %4415 = vmatprep.subr.bf16.mxu0 %v3911
    %4416 = vmatpush1.bf16.msra.mxu0 %v3910
    %4417 = vmatprep.subr.bf16.mxu0 %v3918
    %4418 = vmatpush1.bf16.msra.mxu0 %v3917
    %4419 = vmatprep.subr.bf16.mxu0 %v3925
    %4420 = vmatpush1.bf16.msra.mxu0 %v3924
    %4421 = vmatprep.subr.bf16.mxu0 %v3932
    %4422 = vmatpush1.bf16.msra.mxu0 %v3931
    %4423 = vmatprep.subr.bf16.mxu0 %v3939
    %4424 = vmatpush1.bf16.msra.mxu0 %v3938
    %4425 = vmatprep.mubr.bf16.mxu0 %v2592
    %4426 = vmatmul.mubr.bf16.gmra.mrb[0].mxu0 %v2591
    %v4427 = vpop.f32.mrb[0].mxu0
    %v4428 = vadd.f32 %v2921, %v4427
    %v4429 = vpop.f32.mrb[0].mxu0
    %v4430 = vadd.f32 %v2925, %v4429
    %v4431 = vpop.f32.mrb[0].mxu0
    %v4432 = vpop.f32.mrb[0].mxu0
    %4433 = vdwg.mxu0
    %4434 = vmatprep.subr.bf16.mxu0 %v3946
    %4435 = vmatpush1.bf16.msra.mxu0 %v3945
    %4436 = vmatprep.subr.bf16.mxu0 %v3953
    %4437 = vmatpush1.bf16.msra.mxu0 %v3952
    %4438 = vmatprep.subr.bf16.mxu0 %v3960
    %4439 = vmatpush1.bf16.msra.mxu0 %v3959
    %4440 = vmatprep.subr.bf16.mxu0 %v3967
    %4441 = vmatpush1.bf16.msra.mxu0 %v3966
    %4442 = vmatprep.subr.bf16.mxu0 %v3974
    %4443 = vmatpush1.bf16.msra.mxu0 %v3973
    %4444 = vmatprep.subr.bf16.mxu0 %v3981
    %4445 = vmatpush1.bf16.msra.mxu0 %v3980
    %4446 = vmatprep.subr.bf16.mxu0 %v3988
    %4447 = vmatpush1.bf16.msra.mxu0 %v3987
    %4448 = vmatprep.subr.bf16.mxu0 %v3995
    %4449 = vmatpush1.bf16.msra.mxu0 %v3994
    %4450 = vmatprep.subr.bf16.mxu0 %v4002
    %4451 = vmatpush1.bf16.msra.mxu0 %v4001
    %4452 = vmatprep.subr.bf16.mxu0 %v4009
    %4453 = vmatpush1.bf16.msra.mxu0 %v4008
    %4454 = vmatprep.subr.bf16.mxu0 %v4016
    %4455 = vmatpush1.bf16.msra.mxu0 %v4015
    %4456 = vmatprep.subr.bf16.mxu0 %v4023
    %4457 = vmatpush1.bf16.msra.mxu0 %v4022
    %4458 = vmatprep.subr.bf16.mxu0 %v4030
    %4459 = vmatpush1.bf16.msra.mxu0 %v4029
    %4460 = vmatprep.subr.bf16.mxu0 %v4037
    %4461 = vmatpush1.bf16.msra.mxu0 %v4036
    %4462 = vmatprep.subr.bf16.mxu0 %v4044
    %4463 = vmatpush1.bf16.msra.mxu0 %v4043
    %4464 = vmatprep.subr.bf16.mxu0 %v4051
    %4465 = vmatpush1.bf16.msra.mxu0 %v4050
    %4466 = vmatprep.mubr.bf16.mxu0 %v2594
    %4467 = vmatmul.mubr.bf16.gmra.mrb[0].mxu0 %v2593
    %v4468 = vpop.f32.mrb[0].mxu0
    %v4469 = vadd.f32 %v4428, %v4468
    %v4470 = vpop.f32.mrb[0].mxu0
    %v4471 = vadd.f32 %v4430, %v4470
    %v4472 = vpop.f32.mrb[0].mxu0
    %v4473 = vpop.f32.mrb[0].mxu0
    %4474 = vdwg.mxu0
    %4475 = vmatprep.subr.bf16.mxu0 %v4058
    %4476 = vmatpush1.bf16.msra.mxu0 %v4057
    %4477 = vmatprep.subr.bf16.mxu0 %v4065
    %4478 = vmatpush1.bf16.msra.mxu0 %v4064
    %4479 = vmatprep.subr.bf16.mxu0 %v4072
    %4480 = vmatpush1.bf16.msra.mxu0 %v4071
    %4481 = vmatprep.subr.bf16.mxu0 %v4079
    %4482 = vmatpush1.bf16.msra.mxu0 %v4078
    %4483 = vmatprep.subr.bf16.mxu0 %v4086
    %4484 = vmatpush1.bf16.msra.mxu0 %v4085
    %4485 = vmatprep.subr.bf16.mxu0 %v4093
    %4486 = vmatpush1.bf16.msra.mxu0 %v4092
    %4487 = vmatprep.subr.bf16.mxu0 %v4100
    %4488 = vmatpush1.bf16.msra.mxu0 %v4099
    %4489 = vmatprep.subr.bf16.mxu0 %v4107
    %4490 = vmatpush1.bf16.msra.mxu0 %v4106
    %4491 = vmatprep.subr.bf16.mxu0 0
    %4492 = vmatpush1.bf16.msra.mxu0 0
    %4493 = vmatprep.subr.bf16.mxu0 0
    %4494 = vmatpush1.bf16.msra.mxu0 0
    %4495 = vmatprep.subr.bf16.mxu0 0
    %4496 = vmatpush1.bf16.msra.mxu0 0
    %4497 = vmatprep.subr.bf16.mxu0 0
    %4498 = vmatpush1.bf16.msra.mxu0 0
    %4499 = vmatprep.subr.bf16.mxu0 0
    %4500 = vmatpush1.bf16.msra.mxu0 0
    %4501 = vmatprep.subr.bf16.mxu0 0
    %4502 = vmatpush1.bf16.msra.mxu0 0
    %4503 = vmatprep.subr.bf16.mxu0 0
    %4504 = vmatpush1.bf16.msra.mxu0 0
    %4505 = vmatprep.subr.bf16.mxu0 0
    %4506 = vmatpush1.bf16.msra.mxu0 0
    %4507 = vmatprep.mubr.bf16.mxu0 0
    %4508 = vmatmul.mubr.bf16.gmra.mrb[0].mxu0 %v2595
    %v4509 = vpop.f32.mrb[0].mxu0
    %v4510 = vadd.f32 %v4469, %v4509
    %v4511 = vpop.f32.mrb[0].mxu0
    %v4512 = vadd.f32 %v4471, %v4511
    %v4513 = vpop.f32.mrb[0].mxu0
    %v4514 = vpop.f32.mrb[0].mxu0
    %4515 = vdwg.mxu0
    %4516 = vmatprep.subr.bf16.mxu0 %v3836
    %4517 = vmatpush1.bf16.msra.mxu0 %v3835
    %4518 = vmatprep.subr.bf16.mxu0 %v3843
    %4519 = vmatpush1.bf16.msra.mxu0 %v3842
    %4520 = vmatprep.subr.bf16.mxu0 %v3850
    %4521 = vmatpush1.bf16.msra.mxu0 %v3849
    %4522 = vmatprep.subr.bf16.mxu0 %v3857
    %4523 = vmatpush1.bf16.msra.mxu0 %v3856
    %4524 = vmatprep.subr.bf16.mxu0 %v3864
    %4525 = vmatpush1.bf16.msra.mxu0 %v3863
    %4526 = vmatprep.subr.bf16.mxu0 %v3871
    %4527 = vmatpush1.bf16.msra.mxu0 %v3870
    %4528 = vmatprep.subr.bf16.mxu0 %v3878
    %4529 = vmatpush1.bf16.msra.mxu0 %v3877
    %4530 = vmatprep.subr.bf16.mxu0 %v3885
    %4531 = vmatpush1.bf16.msra.mxu0 %v3884
    %4532 = vmatprep.subr.bf16.mxu0 %v3892
    %4533 = vmatpush1.bf16.msra.mxu0 %v3891
    %4534 = vmatprep.subr.bf16.mxu0 %v3899
    %4535 = vmatpush1.bf16.msra.mxu0 %v3898
    %4536 = vmatprep.subr.bf16.mxu0 %v3906
    %4537 = vmatpush1.bf16.msra.mxu0 %v3905
    %4538 = vmatprep.subr.bf16.mxu0 %v3913
    %4539 = vmatpush1.bf16.msra.mxu0 %v3912
    %4540 = vmatprep.subr.bf16.mxu0 %v3920
    %4541 = vmatpush1.bf16.msra.mxu0 %v3919
    %4542 = vmatprep.subr.bf16.mxu0 %v3927
    %4543 = vmatpush1.bf16.msra.mxu0 %v3926
    %4544 = vmatprep.subr.bf16.mxu0 %v3934
    %4545 = vmatpush1.bf16.msra.mxu0 %v3933
    %4546 = vmatprep.subr.bf16.mxu0 %v3941
    %4547 = vmatpush1.bf16.msra.mxu0 %v3940
    %4548 = vmatprep.mubr.bf16.mxu0 %v2592
    %4549 = vmatmul.mubr.bf16.gmra.mrb[0].mxu0 %v2591
    %v4550 = vpop.f32.mrb[0].mxu0
    %v4551 = vadd.f32 %v2929, %v4550
    %v4552 = vpop.f32.mrb[0].mxu0
    %v4553 = vadd.f32 %v2933, %v4552
    %v4554 = vpop.f32.mrb[0].mxu0
    %v4555 = vpop.f32.mrb[0].mxu0
    %4556 = vdwg.mxu0
    %4557 = vmatprep.subr.bf16.mxu0 %v3948
    %4558 = vmatpush1.bf16.msra.mxu0 %v3947
    %4559 = vmatprep.subr.bf16.mxu0 %v3955
    %4560 = vmatpush1.bf16.msra.mxu0 %v3954
    %4561 = vmatprep.subr.bf16.mxu0 %v3962
    %4562 = vmatpush1.bf16.msra.mxu0 %v3961
    %4563 = vmatprep.subr.bf16.mxu0 %v3969
    %4564 = vmatpush1.bf16.msra.mxu0 %v3968
    %4565 = vmatprep.subr.bf16.mxu0 %v3976
    %4566 = vmatpush1.bf16.msra.mxu0 %v3975
    %4567 = vmatprep.subr.bf16.mxu0 %v3983
    %4568 = vmatpush1.bf16.msra.mxu0 %v3982
    %4569 = vmatprep.subr.bf16.mxu0 %v3990
    %4570 = vmatpush1.bf16.msra.mxu0 %v3989
    %4571 = vmatprep.subr.bf16.mxu0 %v3997
    %4572 = vmatpush1.bf16.msra.mxu0 %v3996
    %4573 = vmatprep.subr.bf16.mxu0 %v4004
    %4574 = vmatpush1.bf16.msra.mxu0 %v4003
    %4575 = vmatprep.subr.bf16.mxu0 %v4011
    %4576 = vmatpush1.bf16.msra.mxu0 %v4010
    %4577 = vmatprep.subr.bf16.mxu0 %v4018
    %4578 = vmatpush1.bf16.msra.mxu0 %v4017
    %4579 = vmatprep.subr.bf16.mxu0 %v4025
    %4580 = vmatpush1.bf16.msra.mxu0 %v4024
    %4581 = vmatprep.subr.bf16.mxu0 %v4032
    %4582 = vmatpush1.bf16.msra.mxu0 %v4031
    %4583 = vmatprep.subr.bf16.mxu0 %v4039
    %4584 = vmatpush1.bf16.msra.mxu0 %v4038
    %4585 = vmatprep.subr.bf16.mxu0 %v4046
    %4586 = vmatpush1.bf16.msra.mxu0 %v4045
    %4587 = vmatprep.subr.bf16.mxu0 %v4053
    %4588 = vmatpush1.bf16.msra.mxu0 %v4052
    %4589 = vmatprep.mubr.bf16.mxu0 %v2594
    %4590 = vmatmul.mubr.bf16.gmra.mrb[0].mxu0 %v2593
    %v4591 = vpop.f32.mrb[0].mxu0
    %v4592 = vadd.f32 %v4551, %v4591
    %v4593 = vpop.f32.mrb[0].mxu0
    %v4594 = vadd.f32 %v4553, %v4593
    %v4595 = vpop.f32.mrb[0].mxu0
    %v4596 = vpop.f32.mrb[0].mxu0
    %4597 = vdwg.mxu0
    %4598 = vmatprep.subr.bf16.mxu0 %v4060
    %4599 = vmatpush1.bf16.msra.mxu0 %v4059
    %4600 = vmatprep.subr.bf16.mxu0 %v4067
    %4601 = vmatpush1.bf16.msra.mxu0 %v4066
    %4602 = vmatprep.subr.bf16.mxu0 %v4074
    %4603 = vmatpush1.bf16.msra.mxu0 %v4073
    %4604 = vmatprep.subr.bf16.mxu0 %v4081
    %4605 = vmatpush1.bf16.msra.mxu0 %v4080
    %4606 = vmatprep.subr.bf16.mxu0 %v4088
    %4607 = vmatpush1.bf16.msra.mxu0 %v4087
    %4608 = vmatprep.subr.bf16.mxu0 %v4095
    %4609 = vmatpush1.bf16.msra.mxu0 %v4094
    %4610 = vmatprep.subr.bf16.mxu0 %v4102
    %4611 = vmatpush1.bf16.msra.mxu0 %v4101
    %4612 = vmatprep.subr.bf16.mxu0 %v4109
    %4613 = vmatpush1.bf16.msra.mxu0 %v4108
    %4614 = vmatprep.subr.bf16.mxu0 0
    %4615 = vmatpush1.bf16.msra.mxu0 0
    %4616 = vmatprep.subr.bf16.mxu0 0
    %4617 = vmatpush1.bf16.msra.mxu0 0
    %4618 = vmatprep.subr.bf16.mxu0 0
    %4619 = vmatpush1.bf16.msra.mxu0 0
    %4620 = vmatprep.subr.bf16.mxu0 0
    %4621 = vmatpush1.bf16.msra.mxu0 0
    %4622 = vmatprep.subr.bf16.mxu0 0
    %4623 = vmatpush1.bf16.msra.mxu0 0
    %4624 = vmatprep.subr.bf16.mxu0 0
    %4625 = vmatpush1.bf16.msra.mxu0 0
    %4626 = vmatprep.subr.bf16.mxu0 0
    %4627 = vmatpush1.bf16.msra.mxu0 0
    %4628 = vmatprep.subr.bf16.mxu0 0
    %4629 = vmatpush1.bf16.msra.mxu0 0
    %4630 = vmatprep.mubr.bf16.mxu0 0
    %4631 = vmatmul.mubr.bf16.gmra.mrb[0].mxu0 %v2595
    %v4632 = vpop.f32.mrb[0].mxu0
    %v4633 = vadd.f32 %v4592, %v4632
    %v4634 = vpop.f32.mrb[0].mxu0
    %v4635 = vadd.f32 %v4594, %v4634
    %v4636 = vpop.f32.mrb[0].mxu0
    %v4637 = vpop.f32.mrb[0].mxu0
    %4638 = vdwg.mxu0
    %4639 = vmatprep.subr.bf16.mxu0 %v3838
    %4640 = vmatpush1.bf16.msra.mxu0 %v3837
    %4641 = vmatprep.subr.bf16.mxu0 %v3845
    %4642 = vmatpush1.bf16.msra.mxu0 %v3844
    %4643 = vmatprep.subr.bf16.mxu0 %v3852
    %4644 = vmatpush1.bf16.msra.mxu0 %v3851
    %4645 = vmatprep.subr.bf16.mxu0 %v3859
    %4646 = vmatpush1.bf16.msra.mxu0 %v3858
    %4647 = vmatprep.subr.bf16.mxu0 %v3866
    %4648 = vmatpush1.bf16.msra.mxu0 %v3865
    %4649 = vmatprep.subr.bf16.mxu0 %v3873
    %4650 = vmatpush1.bf16.msra.mxu0 %v3872
    %4651 = vmatprep.subr.bf16.mxu0 %v3880
    %4652 = vmatpush1.bf16.msra.mxu0 %v3879
    %4653 = vmatprep.subr.bf16.mxu0 %v3887
    %4654 = vmatpush1.bf16.msra.mxu0 %v3886
    %4655 = vmatprep.subr.bf16.mxu0 %v3894
    %4656 = vmatpush1.bf16.msra.mxu0 %v3893
    %4657 = vmatprep.subr.bf16.mxu0 %v3901
    %4658 = vmatpush1.bf16.msra.mxu0 %v3900
    %4659 = vmatprep.subr.bf16.mxu0 %v3908
    %4660 = vmatpush1.bf16.msra.mxu0 %v3907
    %4661 = vmatprep.subr.bf16.mxu0 %v3915
    %4662 = vmatpush1.bf16.msra.mxu0 %v3914
    %4663 = vmatprep.subr.bf16.mxu0 %v3922
    %4664 = vmatpush1.bf16.msra.mxu0 %v3921
    %4665 = vmatprep.subr.bf16.mxu0 %v3929
    %4666 = vmatpush1.bf16.msra.mxu0 %v3928
    %4667 = vmatprep.subr.bf16.mxu0 %v3936
    %4668 = vmatpush1.bf16.msra.mxu0 %v3935
    %4669 = vmatprep.subr.bf16.mxu0 %v3943
    %4670 = vmatpush1.bf16.msra.mxu0 %v3942
    %4671 = vmatprep.mubr.bf16.mxu0 %v2592
    %4672 = vmatmul.mubr.bf16.gmra.mrb[0].mxu0 %v2591
    %v4673 = vpop.f32.mrb[0].mxu0
    %v4674 = vadd.f32 %v2937, %v4673
    %v4675 = vpop.f32.mrb[0].mxu0
    %v4676 = vadd.f32 %v2941, %v4675
    %v4677 = vpop.f32.mrb[0].mxu0
    %v4678 = vpop.f32.mrb[0].mxu0
    %4679 = vdwg.mxu0
    %4680 = vmatprep.subr.bf16.mxu0 %v3950
    %4681 = vmatpush1.bf16.msra.mxu0 %v3949
    %4682 = vmatprep.subr.bf16.mxu0 %v3957
    %4683 = vmatpush1.bf16.msra.mxu0 %v3956
    %4684 = vmatprep.subr.bf16.mxu0 %v3964
    %4685 = vmatpush1.bf16.msra.mxu0 %v3963
    %4686 = vmatprep.subr.bf16.mxu0 %v3971
    %4687 = vmatpush1.bf16.msra.mxu0 %v3970
    %4688 = vmatprep.subr.bf16.mxu0 %v3978
    %4689 = vmatpush1.bf16.msra.mxu0 %v3977
    %4690 = vmatprep.subr.bf16.mxu0 %v3985
    %4691 = vmatpush1.bf16.msra.mxu0 %v3984
    %4692 = vmatprep.subr.bf16.mxu0 %v3992
    %4693 = vmatpush1.bf16.msra.mxu0 %v3991
    %4694 = vmatprep.subr.bf16.mxu0 %v3999
    %4695 = vmatpush1.bf16.msra.mxu0 %v3998
    %4696 = vmatprep.subr.bf16.mxu0 %v4006
    %4697 = vmatpush1.bf16.msra.mxu0 %v4005
    %4698 = vmatprep.subr.bf16.mxu0 %v4013
    %4699 = vmatpush1.bf16.msra.mxu0 %v4012
    %4700 = vmatprep.subr.bf16.mxu0 %v4020
    %4701 = vmatpush1.bf16.msra.mxu0 %v4019
    %4702 = vmatprep.subr.bf16.mxu0 %v4027
    %4703 = vmatpush1.bf16.msra.mxu0 %v4026
    %4704 = vmatprep.subr.bf16.mxu0 %v4034
    %4705 = vmatpush1.bf16.msra.mxu0 %v4033
    %4706 = vmatprep.subr.bf16.mxu0 %v4041
    %4707 = vmatpush1.bf16.msra.mxu0 %v4040
    %4708 = vmatprep.subr.bf16.mxu0 %v4048
    %4709 = vmatpush1.bf16.msra.mxu0 %v4047
    %4710 = vmatprep.subr.bf16.mxu0 %v4055
    %4711 = vmatpush1.bf16.msra.mxu0 %v4054
    %4712 = vmatprep.mubr.bf16.mxu0 %v2594
    %4713 = vmatmul.mubr.bf16.gmra.mrb[0].mxu0 %v2593
    %v4714 = vpop.f32.mrb[0].mxu0
    %v4715 = vadd.f32 %v4674, %v4714
    %v4716 = vpop.f32.mrb[0].mxu0
    %v4717 = vadd.f32 %v4676, %v4716
    %v4718 = vpop.f32.mrb[0].mxu0
    %v4719 = vpop.f32.mrb[0].mxu0
    %4720 = vdwg.mxu0
    %4721 = vmatprep.subr.bf16.mxu0 %v4062
    %4722 = vmatpush1.bf16.msra.mxu0 %v4061
    %4723 = vmatprep.subr.bf16.mxu0 %v4069
    %4724 = vmatpush1.bf16.msra.mxu0 %v4068
    %4725 = vmatprep.subr.bf16.mxu0 %v4076
    %4726 = vmatpush1.bf16.msra.mxu0 %v4075
    %4727 = vmatprep.subr.bf16.mxu0 %v4083
    %4728 = vmatpush1.bf16.msra.mxu0 %v4082
    %4729 = vmatprep.subr.bf16.mxu0 %v4090
    %4730 = vmatpush1.bf16.msra.mxu0 %v4089
    %4731 = vmatprep.subr.bf16.mxu0 %v4097
    %4732 = vmatpush1.bf16.msra.mxu0 %v4096
    %4733 = vmatprep.subr.bf16.mxu0 %v4104
    %4734 = vmatpush1.bf16.msra.mxu0 %v4103
    %4735 = vmatprep.subr.bf16.mxu0 %v4111
    %4736 = vmatpush1.bf16.msra.mxu0 %v4110
    %4737 = vmatprep.subr.bf16.mxu0 0
    %4738 = vmatpush1.bf16.msra.mxu0 0
    %4739 = vmatprep.subr.bf16.mxu0 0
    %4740 = vmatpush1.bf16.msra.mxu0 0
    %4741 = vmatprep.subr.bf16.mxu0 0
    %4742 = vmatpush1.bf16.msra.mxu0 0
    %4743 = vmatprep.subr.bf16.mxu0 0
    %4744 = vmatpush1.bf16.msra.mxu0 0
    %4745 = vmatprep.subr.bf16.mxu0 0
    %4746 = vmatpush1.bf16.msra.mxu0 0
    %4747 = vmatprep.subr.bf16.mxu0 0
    %4748 = vmatpush1.bf16.msra.mxu0 0
    %4749 = vmatprep.subr.bf16.mxu0 0
    %4750 = vmatpush1.bf16.msra.mxu0 0
    %4751 = vmatprep.subr.bf16.mxu0 0
    %4752 = vmatpush1.bf16.msra.mxu0 0
    %4753 = vmatprep.mubr.bf16.mxu0 0
    %4754 = vmatmul.mubr.bf16.gmra.mrb[0].mxu0 %v2595
    %v4755 = vpop.f32.mrb[0].mxu0
    %v4756 = vadd.f32 %v4715, %v4755
    %v4757 = vpop.f32.mrb[0].mxu0
    %v4758 = vadd.f32 %v4717, %v4757
    %v4759 = vpop.f32.mrb[0].mxu0
    %v4760 = vpop.f32.mrb[0].mxu0
    %4761 = vdwg.mxu0
    %4762 = vmatprep.subr.bf16.mxu0 0
    %4763 = vmatpush1.bf16.msra.mxu0 %v3839
    %4764 = vmatprep.subr.bf16.mxu0 0
    %4765 = vmatpush1.bf16.msra.mxu0 %v3846
    %4766 = vmatprep.subr.bf16.mxu0 0
    %4767 = vmatpush1.bf16.msra.mxu0 %v3853
    %4768 = vmatprep.subr.bf16.mxu0 0
    %4769 = vmatpush1.bf16.msra.mxu0 %v3860
    %4770 = vmatprep.subr.bf16.mxu0 0
    %4771 = vmatpush1.bf16.msra.mxu0 %v3867
    %4772 = vmatprep.subr.bf16.mxu0 0
    %4773 = vmatpush1.bf16.msra.mxu0 %v3874
    %4774 = vmatprep.subr.bf16.mxu0 0
    %4775 = vmatpush1.bf16.msra.mxu0 %v3881
    %4776 = vmatprep.subr.bf16.mxu0 0
    %4777 = vmatpush1.bf16.msra.mxu0 %v3888
    %4778 = vmatprep.subr.bf16.mxu0 0
    %4779 = vmatpush1.bf16.msra.mxu0 %v3895
    %4780 = vmatprep.subr.bf16.mxu0 0
    %4781 = vmatpush1.bf16.msra.mxu0 %v3902
    %4782 = vmatprep.subr.bf16.mxu0 0
    %4783 = vmatpush1.bf16.msra.mxu0 %v3909
    %4784 = vmatprep.subr.bf16.mxu0 0
    %4785 = vmatpush1.bf16.msra.mxu0 %v3916
    %4786 = vmatprep.subr.bf16.mxu0 0
    %4787 = vmatpush1.bf16.msra.mxu0 %v3923
    %4788 = vmatprep.subr.bf16.mxu0 0
    %4789 = vmatpush1.bf16.msra.mxu0 %v3930
    %4790 = vmatprep.subr.bf16.mxu0 0
    %4791 = vmatpush1.bf16.msra.mxu0 %v3937
    %4792 = vmatprep.subr.bf16.mxu0 0
    %4793 = vmatpush1.bf16.msra.mxu0 %v3944
    %4794 = vmatprep.mubr.bf16.mxu0 %v2592
    %4795 = vmatmul.mubr.bf16.gmra.mrb[0].mxu0 %v2591
    %v4796 = vpop.f32.mrb[0].mxu0
    %v4797 = vadd.f32 %v2945, %v4796
    %v4798 = vpop.f32.mrb[0].mxu0
    %v4799 = vpop.f32.mrb[0].mxu0
    %v4800 = vpop.f32.mrb[0].mxu0
    %4801 = vdwg.mxu0
    %4802 = vmatprep.subr.bf16.mxu0 0
    %4803 = vmatpush1.bf16.msra.mxu0 %v3951
    %4804 = vmatprep.subr.bf16.mxu0 0
    %4805 = vmatpush1.bf16.msra.mxu0 %v3958
    %4806 = vmatprep.subr.bf16.mxu0 0
    %4807 = vmatpush1.bf16.msra.mxu0 %v3965
    %4808 = vmatprep.subr.bf16.mxu0 0
    %4809 = vmatpush1.bf16.msra.mxu0 %v3972
    %4810 = vmatprep.subr.bf16.mxu0 0
    %4811 = vmatpush1.bf16.msra.mxu0 %v3979
    %4812 = vmatprep.subr.bf16.mxu0 0
    %4813 = vmatpush1.bf16.msra.mxu0 %v3986
    %4814 = vmatprep.subr.bf16.mxu0 0
    %4815 = vmatpush1.bf16.msra.mxu0 %v3993
    %4816 = vmatprep.subr.bf16.mxu0 0
    %4817 = vmatpush1.bf16.msra.mxu0 %v4000
    %4818 = vmatprep.subr.bf16.mxu0 0
    %4819 = vmatpush1.bf16.msra.mxu0 %v4007
    %4820 = vmatprep.subr.bf16.mxu0 0
    %4821 = vmatpush1.bf16.msra.mxu0 %v4014
    %4822 = vmatprep.subr.bf16.mxu0 0
    %4823 = vmatpush1.bf16.msra.mxu0 %v4021
    %4824 = vmatprep.subr.bf16.mxu0 0
    %4825 = vmatpush1.bf16.msra.mxu0 %v4028
    %4826 = vmatprep.subr.bf16.mxu0 0
    %4827 = vmatpush1.bf16.msra.mxu0 %v4035
    %4828 = vmatprep.subr.bf16.mxu0 0
    %4829 = vmatpush1.bf16.msra.mxu0 %v4042
    %4830 = vmatprep.subr.bf16.mxu0 0
    %4831 = vmatpush1.bf16.msra.mxu0 %v4049
    %4832 = vmatprep.subr.bf16.mxu0 0
    %4833 = vmatpush1.bf16.msra.mxu0 %v4056
    %4834 = vmatprep.mubr.bf16.mxu0 %v2594
    %4835 = vmatmul.mubr.bf16.gmra.mrb[0].mxu0 %v2593
    %v4836 = vpop.f32.mrb[0].mxu0
    %v4837 = vadd.f32 %v4797, %v4836
    %v4838 = vpop.f32.mrb[0].mxu0
    %v4839 = vpop.f32.mrb[0].mxu0
    %v4840 = vpop.f32.mrb[0].mxu0
    %4841 = vdwg.mxu0
    %4842 = vmatprep.subr.bf16.mxu0 0
    %4843 = vmatpush1.bf16.msra.mxu0 %v4063
    %4844 = vmatprep.subr.bf16.mxu0 0
    %4845 = vmatpush1.bf16.msra.mxu0 %v4070
    %4846 = vmatprep.subr.bf16.mxu0 0
    %4847 = vmatpush1.bf16.msra.mxu0 %v4077
    %4848 = vmatprep.subr.bf16.mxu0 0
    %4849 = vmatpush1.bf16.msra.mxu0 %v4084
    %4850 = vmatprep.subr.bf16.mxu0 0
    %4851 = vmatpush1.bf16.msra.mxu0 %v4091
    %4852 = vmatprep.subr.bf16.mxu0 0
    %4853 = vmatpush1.bf16.msra.mxu0 %v4098
    %4854 = vmatprep.subr.bf16.mxu0 0
    %4855 = vmatpush1.bf16.msra.mxu0 %v4105
    %4856 = vmatprep.subr.bf16.mxu0 0
    %4857 = vmatpush1.bf16.msra.mxu0 %v4112
    %4858 = vmatprep.subr.bf16.mxu0 0
    %4859 = vmatpush1.bf16.msra.mxu0 0
    %4860 = vmatprep.subr.bf16.mxu0 0
    %4861 = vmatpush1.bf16.msra.mxu0 0
    %4862 = vmatprep.subr.bf16.mxu0 0
    %4863 = vmatpush1.bf16.msra.mxu0 0
    %4864 = vmatprep.subr.bf16.mxu0 0
    %4865 = vmatpush1.bf16.msra.mxu0 0
    %4866 = vmatprep.subr.bf16.mxu0 0
    %4867 = vmatpush1.bf16.msra.mxu0 0
    %4868 = vmatprep.subr.bf16.mxu0 0
    %4869 = vmatpush1.bf16.msra.mxu0 0
    %4870 = vmatprep.subr.bf16.mxu0 0
    %4871 = vmatpush1.bf16.msra.mxu0 0
    %4872 = vmatprep.subr.bf16.mxu0 0
    %4873 = vmatpush1.bf16.msra.mxu0 0
    %4874 = vmatprep.mubr.bf16.mxu0 0
    %4875 = vmatmul.mubr.bf16.gmra.mrb[0].mxu0 %v2595
    %v4876 = vpop.f32.mrb[0].mxu0
    %v4877 = vadd.f32 %v4837, %v4876
    %v4878 = vpop.f32.mrb[0].mxu0
    %v4879 = vpop.f32.mrb[0].mxu0
    %v4880 = vpop.f32.mrb[0].mxu0
    %4881 = vdwg.mxu0
    %v4882 = vmax.f32 %v4510, 0.0
    %v4883 = vmax.f32 %v4512, 0.0
    %v4884 = vmax.f32 %v4633, 0.0
    %v4885 = vmax.f32 %v4635, 0.0
    %v4886 = vmax.f32 %v4756, 0.0
    %v4887 = vmax.f32 %v4758, 0.0
    %v4888 = vmax.f32 %v4877, 0.0
    %v4889 = vpack.c.bf16 %v4882, %v4882
    %v4890 = vpack.c.bf16 %v4883, %v4883
    %v4891 = vpack.c.bf16 %v4884, %v4884
    %v4892 = vpack.c.bf16 %v4885, %v4885
    %v4893 = vpack.c.bf16 %v4886, %v4886
    %v4894 = vpack.c.bf16 %v4887, %v4887
    %v4895 = vpack.c.bf16 %v4888, %v4888
    %v4896 = vld [vmem:[#allocation10] sm:$0xff]
    %v4897 = vld [vmem:[#allocation10 + $0x8] sm:$0xff]
    %v4898 = vld [vmem:[#allocation10 + $0x10] sm:$0xff]
    %v4899 = vld [vmem:[#allocation10 + $0x18] sm:$0xff]
    %v4900 = vld [vmem:[#allocation10 + $0x20] sm:$0xff]
    %v4901 = vld [vmem:[#allocation10 + $0x28] sm:$0xff]
    %v4902 = vld [vmem:[#allocation10 + $0x30] sm:$0xff]
    %v4903 = vld [vmem:[#allocation10 + $0x38] sm:$0xff]
    %v4904 = vld [vmem:[#allocation10 + $0x40] sm:$0xff]
    %v4905 = vld [vmem:[#allocation10 + $0x48] sm:$0xff]
    %v4906 = vld [vmem:[#allocation10 + $0x50] sm:$0xff]
    %v4907 = vld [vmem:[#allocation10 + $0x58] sm:$0xff]
    %v4908 = vld [vmem:[#allocation10 + $0x60] sm:$0xff]
    %v4909 = vld [vmem:[#allocation10 + $0x68] sm:$0xff]
    %v4910 = vld [vmem:[#allocation10 + $0x70] sm:$0xff]
    %v4911 = vld [vmem:[#allocation10 + $0x78] sm:$0xff]
    %v4912 = vld [vmem:[#allocation10 + $0x80] sm:$0xff]
    %v4913 = vld [vmem:[#allocation10 + $0x88] sm:$0xff]
    %v4914 = vld [vmem:[#allocation10 + $0x90] sm:$0xff]
    %v4915 = vld [vmem:[#allocation10 + $0x98] sm:$0xff]
    %v4916 = vld [vmem:[#allocation10 + $0xa0] sm:$0xff]
    %v4917 = vld [vmem:[#allocation10 + $0xa8] sm:$0xff]
    %v4918 = vld [vmem:[#allocation10 + $0xb0] sm:$0xff]
    %v4919 = vld [vmem:[#allocation10 + $0xb8] sm:$0xff]
    %v4920 = vld [vmem:[#allocation10 + $0xc0] sm:$0xff]
    %v4921 = vld [vmem:[#allocation10 + $0xc8] sm:$0xff]
    %v4922 = vld [vmem:[#allocation10 + $0xd0] sm:$0xff]
    %v4923 = vld [vmem:[#allocation10 + $0xd8] sm:$0xff]
    %v4924 = vld [vmem:[#allocation10 + $0xe0] sm:$0xff]
    %v4925 = vld [vmem:[#allocation10 + $0xe8] sm:$0xff]
    %v4926 = vld [vmem:[#allocation10 + $0xf0] sm:$0xff]
    %v4927 = vld [vmem:[#allocation10 + $0xf8] sm:$0xff]
    %v4928 = vld [vmem:[#allocation10 + $0x100] sm:$0xff]
    %v4929 = vld [vmem:[#allocation10 + $0x108] sm:$0xff]
    %v4930 = vld [vmem:[#allocation10 + $0x110] sm:$0xff]
    %v4931 = vld [vmem:[#allocation10 + $0x118] sm:$0xff]
    %v4932 = vld [vmem:[#allocation10 + $0x120] sm:$0xff]
    %v4933 = vld [vmem:[#allocation10 + $0x128] sm:$0xff]
    %v4934 = vld [vmem:[#allocation10 + $0x130] sm:$0xff]
    %v4935 = vld [vmem:[#allocation10 + $0x138] sm:$0xff]
    %v4936 = vld [vmem:[#allocation10 + $0x140] sm:$0xff]
    %v4937 = vld [vmem:[#allocation10 + $0x148] sm:$0xff]
    %v4938 = vld [vmem:[#allocation10 + $0x150] sm:$0xff]
    %v4939 = vld [vmem:[#allocation10 + $0x158] sm:$0xff]
    %v4940 = vld [vmem:[#allocation10 + $0x160] sm:$0xff]
    %v4941 = vld [vmem:[#allocation10 + $0x168] sm:$0xff]
    %v4942 = vld [vmem:[#allocation10 + $0x170] sm:$0xff]
    %v4943 = vld [vmem:[#allocation10 + $0x178] sm:$0xff]
    %v4944 = vld [vmem:[#allocation10 + $0x180] sm:$0xff]
    %v4945 = vld [vmem:[#allocation10 + $0x188] sm:$0xff]
    %v4946 = vld [vmem:[#allocation10 + $0x190] sm:$0xff]
    %v4947 = vld [vmem:[#allocation10 + $0x198] sm:$0xff]
    %v4948 = vld [vmem:[#allocation10 + $0x1a0] sm:$0xff]
    %v4949 = vld [vmem:[#allocation10 + $0x1a8] sm:$0xff]
    %v4950 = vld [vmem:[#allocation10 + $0x1b0] sm:$0xff]
    %v4951 = vld [vmem:[#allocation10 + $0x1b8] sm:$0xff]
    %v4952 = vld [vmem:[#allocation10 + $0x1c0] sm:$0xff]
    %v4953 = vld [vmem:[#allocation10 + $0x1c8] sm:$0xff]
    %v4954 = vld [vmem:[#allocation10 + $0x1d0] sm:$0xff]
    %v4955 = vld [vmem:[#allocation10 + $0x1d8] sm:$0xff]
    %v4956 = vld [vmem:[#allocation10 + $0x1e0] sm:$0xff]
    %v4957 = vld [vmem:[#allocation10 + $0x1e8] sm:$0xff]
    %v4958 = vld [vmem:[#allocation10 + $0x1f0] sm:$0xff]
    %v4959 = vld [vmem:[#allocation10 + $0x1f8] sm:$0xff]
    %v4960 = vld [vmem:[#allocation10 + $0x200] sm:$0xff]
    %v4961 = vld [vmem:[#allocation10 + $0x208] sm:$0xff]
    %v4962 = vld [vmem:[#allocation10 + $0x210] sm:$0xff]
    %v4963 = vld [vmem:[#allocation10 + $0x218] sm:$0xff]
    %v4964 = vld [vmem:[#allocation10 + $0x220] sm:$0xff]
    %v4965 = vld [vmem:[#allocation10 + $0x228] sm:$0xff]
    %v4966 = vld [vmem:[#allocation10 + $0x230] sm:$0xff]
    %v4967 = vld [vmem:[#allocation10 + $0x238] sm:$0xff]
    %v4968 = vld [vmem:[#allocation10 + $0x240] sm:$0xff]
    %v4969 = vld [vmem:[#allocation10 + $0x248] sm:$0xff]
    %v4970 = vld [vmem:[#allocation10 + $0x250] sm:$0xff]
    %v4971 = vld [vmem:[#allocation10 + $0x258] sm:$0xff]
    %v4972 = vld [vmem:[#allocation10 + $0x260] sm:$0xff]
    %v4973 = vld [vmem:[#allocation10 + $0x268] sm:$0xff]
    %v4974 = vld [vmem:[#allocation10 + $0x270] sm:$0xff]
    %v4975 = vld [vmem:[#allocation10 + $0x278] sm:$0xff]
    %v4976 = vld [vmem:[#allocation10 + $0x280] sm:$0xff]
    %v4977 = vld [vmem:[#allocation10 + $0x288] sm:$0xff]
    %v4978 = vld [vmem:[#allocation10 + $0x290] sm:$0xff]
    %v4979 = vld [vmem:[#allocation10 + $0x298] sm:$0xff]
    %v4980 = vld [vmem:[#allocation10 + $0x2a0] sm:$0xff]
    %v4981 = vld [vmem:[#allocation10 + $0x2a8] sm:$0xff]
    %v4982 = vld [vmem:[#allocation10 + $0x2b0] sm:$0xff]
    %v4983 = vld [vmem:[#allocation10 + $0x2b8] sm:$0xff]
    %v4984 = vld [vmem:[#allocation10 + $0x2c0] sm:$0xff]
    %v4985 = vld [vmem:[#allocation10 + $0x2c8] sm:$0xff]
    %v4986 = vld [vmem:[#allocation10 + $0x2d0] sm:$0xff]
    %v4987 = vld [vmem:[#allocation10 + $0x2d8] sm:$0xff]
    %v4988 = vld [vmem:[#allocation10 + $0x2e0] sm:$0xff]
    %v4989 = vld [vmem:[#allocation10 + $0x2e8] sm:$0xff]
    %v4990 = vld [vmem:[#allocation10 + $0x2f0] sm:$0xff]
    %v4991 = vld [vmem:[#allocation10 + $0x2f8] sm:$0xff]
    %v4992 = vld [vmem:[#allocation10 + $0x300] sm:$0xff]
    %v4993 = vld [vmem:[#allocation10 + $0x308] sm:$0xff]
    %v4994 = vld [vmem:[#allocation10 + $0x310] sm:$0xff]
    %v4995 = vld [vmem:[#allocation10 + $0x318] sm:$0xff]
    %v4996 = vld [vmem:[#allocation10 + $0x320] sm:$0xff]
    %v4997 = vld [vmem:[#allocation10 + $0x328] sm:$0xff]
    %v4998 = vld [vmem:[#allocation10 + $0x330] sm:$0xff]
    %v4999 = vld [vmem:[#allocation10 + $0x338] sm:$0xff]
    %v5000 = vld [vmem:[#allocation10 + $0x340] sm:$0xff]
    %v5001 = vld [vmem:[#allocation10 + $0x348] sm:$0xff]
    %v5002 = vld [vmem:[#allocation10 + $0x350] sm:$0xff]
    %v5003 = vld [vmem:[#allocation10 + $0x358] sm:$0xff]
    %v5004 = vld [vmem:[#allocation10 + $0x360] sm:$0xff]
    %v5005 = vld [vmem:[#allocation10 + $0x368] sm:$0xff]
    %v5006 = vld [vmem:[#allocation10 + $0x370] sm:$0xff]
    %v5007 = vld [vmem:[#allocation10 + $0x378] sm:$0xff]
    %v5008 = vld [vmem:[#allocation11] sm:$0x3]
    %v5010 = vlaneseq
    %v5011 = vshrl.u32 %v5010, 7
    %v5012 = vsub.s32 0, %v5011
    %v5013 = vrot.slane %v5008, %v5012
    %v5014 = vlaneseq
    %v5015 = vshrl.u32 %v5014, 7
    %v5016 = vsub.s32 1, %v5015
    %v5017 = vrot.slane %v5008, %v5016
    %v5132 = vunpack.c.l.b16 %v4896
    %v5133 = vunpack.c.h.b16 %v4896
    %v5134 = vunpack.c.l.b16 %v4897
    %v5135 = vunpack.c.h.b16 %v4897
    %v5136 = vunpack.c.l.b16 %v4898
    %v5137 = vunpack.c.h.b16 %v4898
    %v5138 = vunpack.c.l.b16 %v4899
    %v5139 = vunpack.c.h.b16 %v4899
    %v5140 = vunpack.c.l.b16 %v4900
    %v5141 = vunpack.c.h.b16 %v4900
    %v5142 = vunpack.c.l.b16 %v4901
    %v5143 = vunpack.c.h.b16 %v4901
    %v5144 = vunpack.c.l.b16 %v4902
    %v5145 = vunpack.c.h.b16 %v4902
    %v5146 = vunpack.c.l.b16 %v4903
    %v5147 = vunpack.c.h.b16 %v4903
    %v5148 = vunpack.c.l.b16 %v4904
    %v5149 = vunpack.c.h.b16 %v4904
    %v5150 = vunpack.c.l.b16 %v4905
    %v5151 = vunpack.c.h.b16 %v4905
    %v5152 = vunpack.c.l.b16 %v4906
    %v5153 = vunpack.c.h.b16 %v4906
    %v5154 = vunpack.c.l.b16 %v4907
    %v5155 = vunpack.c.h.b16 %v4907
    %v5156 = vunpack.c.l.b16 %v4908
    %v5157 = vunpack.c.h.b16 %v4908
    %v5158 = vunpack.c.l.b16 %v4909
    %v5159 = vunpack.c.h.b16 %v4909
    %v5160 = vunpack.c.l.b16 %v4910
    %v5161 = vunpack.c.h.b16 %v4910
    %v5162 = vunpack.c.l.b16 %v4911
    %v5163 = vunpack.c.h.b16 %v4911
    %v5164 = vunpack.c.l.b16 %v4912
    %v5165 = vunpack.c.h.b16 %v4912
    %v5166 = vunpack.c.l.b16 %v4913
    %v5167 = vunpack.c.h.b16 %v4913
    %v5168 = vunpack.c.l.b16 %v4914
    %v5169 = vunpack.c.h.b16 %v4914
    %v5170 = vunpack.c.l.b16 %v4915
    %v5171 = vunpack.c.h.b16 %v4915
    %v5172 = vunpack.c.l.b16 %v4916
    %v5173 = vunpack.c.h.b16 %v4916
    %v5174 = vunpack.c.l.b16 %v4917
    %v5175 = vunpack.c.h.b16 %v4917
    %v5176 = vunpack.c.l.b16 %v4918
    %v5177 = vunpack.c.h.b16 %v4918
    %v5178 = vunpack.c.l.b16 %v4919
    %v5179 = vunpack.c.h.b16 %v4919
    %v5180 = vunpack.c.l.b16 %v4920
    %v5181 = vunpack.c.h.b16 %v4920
    %v5182 = vunpack.c.l.b16 %v4921
    %v5183 = vunpack.c.h.b16 %v4921
    %v5184 = vunpack.c.l.b16 %v4922
    %v5185 = vunpack.c.h.b16 %v4922
    %v5186 = vunpack.c.l.b16 %v4923
    %v5187 = vunpack.c.h.b16 %v4923
    %v5188 = vunpack.c.l.b16 %v4924
    %v5189 = vunpack.c.h.b16 %v4924
    %v5190 = vunpack.c.l.b16 %v4925
    %v5191 = vunpack.c.h.b16 %v4925
    %v5192 = vunpack.c.l.b16 %v4926
    %v5193 = vunpack.c.h.b16 %v4926
    %v5194 = vunpack.c.l.b16 %v4927
    %v5195 = vunpack.c.h.b16 %v4927
    %v5196 = vunpack.c.l.b16 %v4928
    %v5197 = vunpack.c.h.b16 %v4928
    %v5198 = vunpack.c.l.b16 %v4929
    %v5199 = vunpack.c.h.b16 %v4929
    %v5200 = vunpack.c.l.b16 %v4930
    %v5201 = vunpack.c.h.b16 %v4930
    %v5202 = vunpack.c.l.b16 %v4931
    %v5203 = vunpack.c.h.b16 %v4931
    %v5204 = vunpack.c.l.b16 %v4932
    %v5205 = vunpack.c.h.b16 %v4932
    %v5206 = vunpack.c.l.b16 %v4933
    %v5207 = vunpack.c.h.b16 %v4933
    %v5208 = vunpack.c.l.b16 %v4934
    %v5209 = vunpack.c.h.b16 %v4934
    %v5210 = vunpack.c.l.b16 %v4935
    %v5211 = vunpack.c.h.b16 %v4935
    %v5212 = vunpack.c.l.b16 %v4936
    %v5213 = vunpack.c.h.b16 %v4936
    %v5214 = vunpack.c.l.b16 %v4937
    %v5215 = vunpack.c.h.b16 %v4937
    %v5216 = vunpack.c.l.b16 %v4938
    %v5217 = vunpack.c.h.b16 %v4938
    %v5218 = vunpack.c.l.b16 %v4939
    %v5219 = vunpack.c.h.b16 %v4939
    %v5220 = vunpack.c.l.b16 %v4940
    %v5221 = vunpack.c.h.b16 %v4940
    %v5222 = vunpack.c.l.b16 %v4941
    %v5223 = vunpack.c.h.b16 %v4941
    %v5224 = vunpack.c.l.b16 %v4942
    %v5225 = vunpack.c.h.b16 %v4942
    %v5226 = vunpack.c.l.b16 %v4943
    %v5227 = vunpack.c.h.b16 %v4943
    %v5228 = vunpack.c.l.b16 %v4944
    %v5229 = vunpack.c.h.b16 %v4944
    %v5230 = vunpack.c.l.b16 %v4945
    %v5231 = vunpack.c.h.b16 %v4945
    %v5232 = vunpack.c.l.b16 %v4946
    %v5233 = vunpack.c.h.b16 %v4946
    %v5234 = vunpack.c.l.b16 %v4947
    %v5235 = vunpack.c.h.b16 %v4947
    %v5236 = vunpack.c.l.b16 %v4948
    %v5237 = vunpack.c.h.b16 %v4948
    %v5238 = vunpack.c.l.b16 %v4949
    %v5239 = vunpack.c.h.b16 %v4949
    %v5240 = vunpack.c.l.b16 %v4950
    %v5241 = vunpack.c.h.b16 %v4950
    %v5242 = vunpack.c.l.b16 %v4951
    %v5243 = vunpack.c.h.b16 %v4951
    %v5244 = vunpack.c.l.b16 %v4952
    %v5245 = vunpack.c.h.b16 %v4952
    %v5246 = vunpack.c.l.b16 %v4953
    %v5247 = vunpack.c.h.b16 %v4953
    %v5248 = vunpack.c.l.b16 %v4954
    %v5249 = vunpack.c.h.b16 %v4954
    %v5250 = vunpack.c.l.b16 %v4955
    %v5251 = vunpack.c.h.b16 %v4955
    %v5252 = vunpack.c.l.b16 %v4956
    %v5253 = vunpack.c.h.b16 %v4956
    %v5254 = vunpack.c.l.b16 %v4957
    %v5255 = vunpack.c.h.b16 %v4957
    %v5256 = vunpack.c.l.b16 %v4958
    %v5257 = vunpack.c.h.b16 %v4958
    %v5258 = vunpack.c.l.b16 %v4959
    %v5259 = vunpack.c.h.b16 %v4959
    %v5260 = vunpack.c.l.b16 %v4960
    %v5261 = vunpack.c.h.b16 %v4960
    %v5262 = vunpack.c.l.b16 %v4961
    %v5263 = vunpack.c.h.b16 %v4961
    %v5264 = vunpack.c.l.b16 %v4962
    %v5265 = vunpack.c.h.b16 %v4962
    %v5266 = vunpack.c.l.b16 %v4963
    %v5267 = vunpack.c.h.b16 %v4963
    %v5268 = vunpack.c.l.b16 %v4964
    %v5269 = vunpack.c.h.b16 %v4964
    %v5270 = vunpack.c.l.b16 %v4965
    %v5271 = vunpack.c.h.b16 %v4965
    %v5272 = vunpack.c.l.b16 %v4966
    %v5273 = vunpack.c.h.b16 %v4966
    %v5274 = vunpack.c.l.b16 %v4967
    %v5275 = vunpack.c.h.b16 %v4967
    %v5276 = vunpack.c.l.b16 %v4968
    %v5277 = vunpack.c.h.b16 %v4968
    %v5278 = vunpack.c.l.b16 %v4969
    %v5279 = vunpack.c.h.b16 %v4969
    %v5280 = vunpack.c.l.b16 %v4970
    %v5281 = vunpack.c.h.b16 %v4970
    %v5282 = vunpack.c.l.b16 %v4971
    %v5283 = vunpack.c.h.b16 %v4971
    %v5284 = vunpack.c.l.b16 %v4972
    %v5285 = vunpack.c.h.b16 %v4972
    %v5286 = vunpack.c.l.b16 %v4973
    %v5287 = vunpack.c.h.b16 %v4973
    %v5288 = vunpack.c.l.b16 %v4974
    %v5289 = vunpack.c.h.b16 %v4974
    %v5290 = vunpack.c.l.b16 %v4975
    %v5291 = vunpack.c.h.b16 %v4975
    %v5292 = vunpack.c.l.b16 %v4976
    %v5293 = vunpack.c.h.b16 %v4976
    %v5294 = vunpack.c.l.b16 %v4977
    %v5295 = vunpack.c.h.b16 %v4977
    %v5296 = vunpack.c.l.b16 %v4978
    %v5297 = vunpack.c.h.b16 %v4978
    %v5298 = vunpack.c.l.b16 %v4979
    %v5299 = vunpack.c.h.b16 %v4979
    %v5300 = vunpack.c.l.b16 %v4980
    %v5301 = vunpack.c.h.b16 %v4980
    %v5302 = vunpack.c.l.b16 %v4981
    %v5303 = vunpack.c.h.b16 %v4981
    %v5304 = vunpack.c.l.b16 %v4982
    %v5305 = vunpack.c.h.b16 %v4982
    %v5306 = vunpack.c.l.b16 %v4983
    %v5307 = vunpack.c.h.b16 %v4983
    %v5308 = vunpack.c.l.b16 %v4984
    %v5309 = vunpack.c.h.b16 %v4984
    %v5310 = vunpack.c.l.b16 %v4985
    %v5311 = vunpack.c.h.b16 %v4985
    %v5312 = vunpack.c.l.b16 %v4986
    %v5313 = vunpack.c.h.b16 %v4986
    %v5314 = vunpack.c.l.b16 %v4987
    %v5315 = vunpack.c.h.b16 %v4987
    %v5316 = vunpack.c.l.b16 %v4988
    %v5317 = vunpack.c.h.b16 %v4988
    %v5318 = vunpack.c.l.b16 %v4989
    %v5319 = vunpack.c.h.b16 %v4989
    %v5320 = vunpack.c.l.b16 %v4990
    %v5321 = vunpack.c.h.b16 %v4990
    %v5322 = vunpack.c.l.b16 %v4991
    %v5323 = vunpack.c.h.b16 %v4991
    %v5324 = vunpack.c.l.b16 %v4992
    %v5325 = vunpack.c.h.b16 %v4992
    %v5326 = vunpack.c.l.b16 %v4993
    %v5327 = vunpack.c.h.b16 %v4993
    %v5328 = vunpack.c.l.b16 %v4994
    %v5329 = vunpack.c.h.b16 %v4994
    %v5330 = vunpack.c.l.b16 %v4995
    %v5331 = vunpack.c.h.b16 %v4995
    %v5332 = vunpack.c.l.b16 %v4996
    %v5333 = vunpack.c.h.b16 %v4996
    %v5334 = vunpack.c.l.b16 %v4997
    %v5335 = vunpack.c.h.b16 %v4997
    %v5336 = vunpack.c.l.b16 %v4998
    %v5337 = vunpack.c.h.b16 %v4998
    %v5338 = vunpack.c.l.b16 %v4999
    %v5339 = vunpack.c.h.b16 %v4999
    %v5340 = vunpack.c.l.b16 %v5000
    %v5341 = vunpack.c.h.b16 %v5000
    %v5342 = vunpack.c.l.b16 %v5001
    %v5343 = vunpack.c.h.b16 %v5001
    %v5344 = vunpack.c.l.b16 %v5002
    %v5345 = vunpack.c.h.b16 %v5002
    %v5346 = vunpack.c.l.b16 %v5003
    %v5347 = vunpack.c.h.b16 %v5003
    %v5348 = vunpack.c.l.b16 %v5004
    %v5349 = vunpack.c.h.b16 %v5004
    %v5350 = vunpack.c.l.b16 %v5005
    %v5351 = vunpack.c.h.b16 %v5005
    %v5352 = vunpack.c.l.b16 %v5006
    %v5353 = vunpack.c.h.b16 %v5006
    %v5354 = vunpack.c.l.b16 %v5007
    %v5355 = vunpack.c.h.b16 %v5007
    %v5356 = vpack.c.b16 %v5134, %v5132
    %v5357 = vpack.c.b16 %v5135, %v5133
    %v5358 = vpack.c.b16 %v5138, %v5136
    %v5359 = vpack.c.b16 %v5139, %v5137
    %v5360 = vpack.c.b16 %v5142, %v5140
    %v5361 = vpack.c.b16 %v5143, %v5141
    %v5362 = vpack.c.b16 %v5146, %v5144
    %v5363 = vpack.c.b16 %v5147, %v5145
    %v5364 = vpack.c.b16 %v5150, %v5148
    %v5365 = vpack.c.b16 %v5151, %v5149
    %v5366 = vpack.c.b16 %v5154, %v5152
    %v5367 = vpack.c.b16 %v5155, %v5153
    %v5368 = vpack.c.b16 %v5158, %v5156
    %v5369 = vpack.c.b16 %v5159, %v5157
    %v5370 = vpack.c.b16 %v5162, %v5160
    %v5371 = vpack.c.b16 %v5163, %v5161
    %v5372 = vpack.c.b16 %v5166, %v5164
    %v5373 = vpack.c.b16 %v5167, %v5165
    %v5374 = vpack.c.b16 %v5170, %v5168
    %v5375 = vpack.c.b16 %v5171, %v5169
    %v5376 = vpack.c.b16 %v5174, %v5172
    %v5377 = vpack.c.b16 %v5175, %v5173
    %v5378 = vpack.c.b16 %v5178, %v5176
    %v5379 = vpack.c.b16 %v5179, %v5177
    %v5380 = vpack.c.b16 %v5182, %v5180
    %v5381 = vpack.c.b16 %v5183, %v5181
    %v5382 = vpack.c.b16 %v5186, %v5184
    %v5383 = vpack.c.b16 %v5187, %v5185
    %v5384 = vpack.c.b16 %v5190, %v5188
    %v5385 = vpack.c.b16 %v5191, %v5189
    %v5386 = vpack.c.b16 %v5194, %v5192
    %v5387 = vpack.c.b16 %v5195, %v5193
    %v5388 = vpack.c.b16 %v5198, %v5196
    %v5389 = vpack.c.b16 %v5199, %v5197
    %v5390 = vpack.c.b16 %v5202, %v5200
    %v5391 = vpack.c.b16 %v5203, %v5201
    %v5392 = vpack.c.b16 %v5206, %v5204
    %v5393 = vpack.c.b16 %v5207, %v5205
    %v5394 = vpack.c.b16 %v5210, %v5208
    %v5395 = vpack.c.b16 %v5211, %v5209
    %v5396 = vpack.c.b16 %v5214, %v5212
    %v5397 = vpack.c.b16 %v5215, %v5213
    %v5398 = vpack.c.b16 %v5218, %v5216
    %v5399 = vpack.c.b16 %v5219, %v5217
    %v5400 = vpack.c.b16 %v5222, %v5220
    %v5401 = vpack.c.b16 %v5223, %v5221
    %v5402 = vpack.c.b16 %v5226, %v5224
    %v5403 = vpack.c.b16 %v5227, %v5225
    %v5404 = vpack.c.b16 %v5230, %v5228
    %v5405 = vpack.c.b16 %v5231, %v5229
    %v5406 = vpack.c.b16 %v5234, %v5232
    %v5407 = vpack.c.b16 %v5235, %v5233
    %v5408 = vpack.c.b16 %v5238, %v5236
    %v5409 = vpack.c.b16 %v5239, %v5237
    %v5410 = vpack.c.b16 %v5242, %v5240
    %v5411 = vpack.c.b16 %v5243, %v5241
    %v5412 = vpack.c.b16 %v5246, %v5244
    %v5413 = vpack.c.b16 %v5247, %v5245
    %v5414 = vpack.c.b16 %v5250, %v5248
    %v5415 = vpack.c.b16 %v5251, %v5249
    %v5416 = vpack.c.b16 %v5254, %v5252
    %v5417 = vpack.c.b16 %v5255, %v5253
    %v5418 = vpack.c.b16 %v5258, %v5256
    %v5419 = vpack.c.b16 %v5259, %v5257
    %v5420 = vpack.c.b16 %v5262, %v5260
    %v5421 = vpack.c.b16 %v5263, %v5261
    %v5422 = vpack.c.b16 %v5266, %v5264
    %v5423 = vpack.c.b16 %v5267, %v5265
    %v5424 = vpack.c.b16 %v5270, %v5268
    %v5425 = vpack.c.b16 %v5271, %v5269
    %v5426 = vpack.c.b16 %v5274, %v5272
    %v5427 = vpack.c.b16 %v5275, %v5273
    %v5428 = vpack.c.b16 %v5278, %v5276
    %v5429 = vpack.c.b16 %v5279, %v5277
    %v5430 = vpack.c.b16 %v5282, %v5280
    %v5431 = vpack.c.b16 %v5283, %v5281
    %v5432 = vpack.c.b16 %v5286, %v5284
    %v5433 = vpack.c.b16 %v5287, %v5285
    %v5434 = vpack.c.b16 %v5290, %v5288
    %v5435 = vpack.c.b16 %v5291, %v5289
    %v5436 = vpack.c.b16 %v5294, %v5292
    %v5437 = vpack.c.b16 %v5295, %v5293
    %v5438 = vpack.c.b16 %v5298, %v5296
    %v5439 = vpack.c.b16 %v5299, %v5297
    %v5440 = vpack.c.b16 %v5302, %v5300
    %v5441 = vpack.c.b16 %v5303, %v5301
    %v5442 = vpack.c.b16 %v5306, %v5304
    %v5443 = vpack.c.b16 %v5307, %v5305
    %v5444 = vpack.c.b16 %v5310, %v5308
    %v5445 = vpack.c.b16 %v5311, %v5309
    %v5446 = vpack.c.b16 %v5314, %v5312
    %v5447 = vpack.c.b16 %v5315, %v5313
    %v5448 = vpack.c.b16 %v5318, %v5316
    %v5449 = vpack.c.b16 %v5319, %v5317
    %v5450 = vpack.c.b16 %v5322, %v5320
    %v5451 = vpack.c.b16 %v5323, %v5321
    %v5452 = vpack.c.b16 %v5326, %v5324
    %v5453 = vpack.c.b16 %v5327, %v5325
    %v5454 = vpack.c.b16 %v5330, %v5328
    %v5455 = vpack.c.b16 %v5331, %v5329
    %v5456 = vpack.c.b16 %v5334, %v5332
    %v5457 = vpack.c.b16 %v5335, %v5333
    %v5458 = vpack.c.b16 %v5338, %v5336
    %v5459 = vpack.c.b16 %v5339, %v5337
    %v5460 = vpack.c.b16 %v5342, %v5340
    %v5461 = vpack.c.b16 %v5343, %v5341
    %v5462 = vpack.c.b16 %v5346, %v5344
    %v5463 = vpack.c.b16 %v5347, %v5345
    %v5464 = vpack.c.b16 %v5350, %v5348
    %v5465 = vpack.c.b16 %v5351, %v5349
    %v5466 = vpack.c.b16 %v5354, %v5352
    %v5467 = vpack.c.b16 %v5355, %v5353
    %5580 = vmatprep.subr.bf16.mxu0 %v5357
    %5581 = vmatpush1.bf16.msra.mxu0 %v5356
    %5582 = vmatprep.subr.bf16.mxu0 %v5359
    %5583 = vmatpush1.bf16.msra.mxu0 %v5358
    %5584 = vmatprep.subr.bf16.mxu0 %v5361
    %5585 = vmatpush1.bf16.msra.mxu0 %v5360
    %5586 = vmatprep.subr.bf16.mxu0 %v5363
    %5587 = vmatpush1.bf16.msra.mxu0 %v5362
    %5588 = vmatprep.subr.bf16.mxu0 %v5365
    %5589 = vmatpush1.bf16.msra.mxu0 %v5364
    %5590 = vmatprep.subr.bf16.mxu0 %v5367
    %5591 = vmatpush1.bf16.msra.mxu0 %v5366
    %5592 = vmatprep.subr.bf16.mxu0 %v5369
    %5593 = vmatpush1.bf16.msra.mxu0 %v5368
    %5594 = vmatprep.subr.bf16.mxu0 %v5371
    %5595 = vmatpush1.bf16.msra.mxu0 %v5370
    %5596 = vmatprep.subr.bf16.mxu0 %v5373
    %5597 = vmatpush1.bf16.msra.mxu0 %v5372
    %5598 = vmatprep.subr.bf16.mxu0 %v5375
    %5599 = vmatpush1.bf16.msra.mxu0 %v5374
    %5600 = vmatprep.subr.bf16.mxu0 %v5377
    %5601 = vmatpush1.bf16.msra.mxu0 %v5376
    %5602 = vmatprep.subr.bf16.mxu0 %v5379
    %5603 = vmatpush1.bf16.msra.mxu0 %v5378
    %5604 = vmatprep.subr.bf16.mxu0 %v5381
    %5605 = vmatpush1.bf16.msra.mxu0 %v5380
    %5606 = vmatprep.subr.bf16.mxu0 %v5383
    %5607 = vmatpush1.bf16.msra.mxu0 %v5382
    %5608 = vmatprep.subr.bf16.mxu0 %v5385
    %5609 = vmatpush1.bf16.msra.mxu0 %v5384
    %5610 = vmatprep.subr.bf16.mxu0 %v5387
    %5611 = vmatpush1.bf16.msra.mxu0 %v5386
    %5612 = vmatprep.mubr.bf16.mxu0 %v4890
    %5613 = vmatmul.mubr.bf16.gmra.mrb[0].mxu0 %v4889
    %v5614 = vpop.f32.mrb[0].mxu0
    %v5615 = vadd.f32 %v5013, %v5614
    %v5616 = vpop.f32.mrb[0].mxu0
    %v5617 = vadd.f32 %v5017, %v5616
    %v5618 = vpop.f32.mrb[0].mxu0
    %v5619 = vpop.f32.mrb[0].mxu0
    %5620 = vdwg.mxu0
    %5621 = vmatprep.subr.bf16.mxu0 %v5389
    %5622 = vmatpush1.bf16.msra.mxu0 %v5388
    %5623 = vmatprep.subr.bf16.mxu0 %v5391
    %5624 = vmatpush1.bf16.msra.mxu0 %v5390
    %5625 = vmatprep.subr.bf16.mxu0 %v5393
    %5626 = vmatpush1.bf16.msra.mxu0 %v5392
    %5627 = vmatprep.subr.bf16.mxu0 %v5395
    %5628 = vmatpush1.bf16.msra.mxu0 %v5394
    %5629 = vmatprep.subr.bf16.mxu0 %v5397
    %5630 = vmatpush1.bf16.msra.mxu0 %v5396
    %5631 = vmatprep.subr.bf16.mxu0 %v5399
    %5632 = vmatpush1.bf16.msra.mxu0 %v5398
    %5633 = vmatprep.subr.bf16.mxu0 %v5401
    %5634 = vmatpush1.bf16.msra.mxu0 %v5400
    %5635 = vmatprep.subr.bf16.mxu0 %v5403
    %5636 = vmatpush1.bf16.msra.mxu0 %v5402
    %5637 = vmatprep.subr.bf16.mxu0 %v5405
    %5638 = vmatpush1.bf16.msra.mxu0 %v5404
    %5639 = vmatprep.subr.bf16.mxu0 %v5407
    %5640 = vmatpush1.bf16.msra.mxu0 %v5406
    %5641 = vmatprep.subr.bf16.mxu0 %v5409
    %5642 = vmatpush1.bf16.msra.mxu0 %v5408
    %5643 = vmatprep.subr.bf16.mxu0 %v5411
    %5644 = vmatpush1.bf16.msra.mxu0 %v5410
    %5645 = vmatprep.subr.bf16.mxu0 %v5413
    %5646 = vmatpush1.bf16.msra.mxu0 %v5412
    %5647 = vmatprep.subr.bf16.mxu0 %v5415
    %5648 = vmatpush1.bf16.msra.mxu0 %v5414
    %5649 = vmatprep.subr.bf16.mxu0 %v5417
    %5650 = vmatpush1.bf16.msra.mxu0 %v5416
    %5651 = vmatprep.subr.bf16.mxu0 %v5419
    %5652 = vmatpush1.bf16.msra.mxu0 %v5418
    %5653 = vmatprep.mubr.bf16.mxu0 %v4892
    %5654 = vmatmul.mubr.bf16.gmra.mrb[0].mxu0 %v4891
    %v5655 = vpop.f32.mrb[0].mxu0
    %v5656 = vadd.f32 %v5615, %v5655
    %v5657 = vpop.f32.mrb[0].mxu0
    %v5658 = vadd.f32 %v5617, %v5657
    %v5659 = vpop.f32.mrb[0].mxu0
    %v5660 = vpop.f32.mrb[0].mxu0
    %5661 = vdwg.mxu0
    %5662 = vmatprep.subr.bf16.mxu0 %v5421
    %5663 = vmatpush1.bf16.msra.mxu0 %v5420
    %5664 = vmatprep.subr.bf16.mxu0 %v5423
    %5665 = vmatpush1.bf16.msra.mxu0 %v5422
    %5666 = vmatprep.subr.bf16.mxu0 %v5425
    %5667 = vmatpush1.bf16.msra.mxu0 %v5424
    %5668 = vmatprep.subr.bf16.mxu0 %v5427
    %5669 = vmatpush1.bf16.msra.mxu0 %v5426
    %5670 = vmatprep.subr.bf16.mxu0 %v5429
    %5671 = vmatpush1.bf16.msra.mxu0 %v5428
    %5672 = vmatprep.subr.bf16.mxu0 %v5431
    %5673 = vmatpush1.bf16.msra.mxu0 %v5430
    %5674 = vmatprep.subr.bf16.mxu0 %v5433
    %5675 = vmatpush1.bf16.msra.mxu0 %v5432
    %5676 = vmatprep.subr.bf16.mxu0 %v5435
    %5677 = vmatpush1.bf16.msra.mxu0 %v5434
    %5678 = vmatprep.subr.bf16.mxu0 %v5437
    %5679 = vmatpush1.bf16.msra.mxu0 %v5436
    %5680 = vmatprep.subr.bf16.mxu0 %v5439
    %5681 = vmatpush1.bf16.msra.mxu0 %v5438
    %5682 = vmatprep.subr.bf16.mxu0 %v5441
    %5683 = vmatpush1.bf16.msra.mxu0 %v5440
    %5684 = vmatprep.subr.bf16.mxu0 %v5443
    %5685 = vmatpush1.bf16.msra.mxu0 %v5442
    %5686 = vmatprep.subr.bf16.mxu0 %v5445
    %5687 = vmatpush1.bf16.msra.mxu0 %v5444
    %5688 = vmatprep.subr.bf16.mxu0 %v5447
    %5689 = vmatpush1.bf16.msra.mxu0 %v5446
    %5690 = vmatprep.subr.bf16.mxu0 %v5449
    %5691 = vmatpush1.bf16.msra.mxu0 %v5448
    %5692 = vmatprep.subr.bf16.mxu0 %v5451
    %5693 = vmatpush1.bf16.msra.mxu0 %v5450
    %5694 = vmatprep.mubr.bf16.mxu0 %v4894
    %5695 = vmatmul.mubr.bf16.gmra.mrb[0].mxu0 %v4893
    %v5696 = vpop.f32.mrb[0].mxu0
    %v5697 = vadd.f32 %v5656, %v5696
    %v5698 = vpop.f32.mrb[0].mxu0
    %v5699 = vadd.f32 %v5658, %v5698
    %v5700 = vpop.f32.mrb[0].mxu0
    %v5701 = vpop.f32.mrb[0].mxu0
    %5702 = vdwg.mxu0
    %5703 = vmatprep.subr.bf16.mxu0 %v5453
    %5704 = vmatpush1.bf16.msra.mxu0 %v5452
    %5705 = vmatprep.subr.bf16.mxu0 %v5455
    %5706 = vmatpush1.bf16.msra.mxu0 %v5454
    %5707 = vmatprep.subr.bf16.mxu0 %v5457
    %5708 = vmatpush1.bf16.msra.mxu0 %v5456
    %5709 = vmatprep.subr.bf16.mxu0 %v5459
    %5710 = vmatpush1.bf16.msra.mxu0 %v5458
    %5711 = vmatprep.subr.bf16.mxu0 %v5461
    %5712 = vmatpush1.bf16.msra.mxu0 %v5460
    %5713 = vmatprep.subr.bf16.mxu0 %v5463
    %5714 = vmatpush1.bf16.msra.mxu0 %v5462
    %5715 = vmatprep.subr.bf16.mxu0 %v5465
    %5716 = vmatpush1.bf16.msra.mxu0 %v5464
    %5717 = vmatprep.subr.bf16.mxu0 %v5467
    %5718 = vmatpush1.bf16.msra.mxu0 %v5466
    %5719 = vmatprep.subr.bf16.mxu0 0
    %5720 = vmatpush1.bf16.msra.mxu0 0
    %5721 = vmatprep.subr.bf16.mxu0 0
    %5722 = vmatpush1.bf16.msra.mxu0 0
    %5723 = vmatprep.subr.bf16.mxu0 0
    %5724 = vmatpush1.bf16.msra.mxu0 0
    %5725 = vmatprep.subr.bf16.mxu0 0
    %5726 = vmatpush1.bf16.msra.mxu0 0
    %5727 = vmatprep.subr.bf16.mxu0 0
    %5728 = vmatpush1.bf16.msra.mxu0 0
    %5729 = vmatprep.subr.bf16.mxu0 0
    %5730 = vmatpush1.bf16.msra.mxu0 0
    %5731 = vmatprep.subr.bf16.mxu0 0
    %5732 = vmatpush1.bf16.msra.mxu0 0
    %5733 = vmatprep.subr.bf16.mxu0 0
    %5734 = vmatpush1.bf16.msra.mxu0 0
    %5735 = vmatprep.mubr.bf16.mxu0 0
    %5736 = vmatmul.mubr.bf16.gmra.mrb[0].mxu0 %v4895
    %v5737 = vpop.f32.mrb[0].mxu0
    %v5738 = vadd.f32 %v5697, %v5737
    %v5739 = vpop.f32.mrb[0].mxu0
    %v5740 = vadd.f32 %v5699, %v5739
    %v5741 = vpop.f32.mrb[0].mxu0
    %v5742 = vpop.f32.mrb[0].mxu0
    %5743 = vdwg.mxu0
    %v5744 = vmax.f32 %v5738, 0.0
    %v5745 = vmax.f32 %v5740, 0.0
    %v5746 = vpack.c.bf16 %v5744, %v5744
    %v5747 = vpack.c.bf16 %v5745, %v5745
    %v5748 = vld [vmem:[#allocation13] sm:$0xf]
    %v5749 = vld [vmem:[#allocation13 + $0x4] sm:$0xf]
    %v5750 = vld [vmem:[#allocation13 + $0x8] sm:$0xf]
    %v5751 = vld [vmem:[#allocation13 + $0xc] sm:$0xf]
    %v5752 = vld [vmem:[#allocation13 + $0x10] sm:$0xf]
    %v5753 = vld [vmem:[#allocation13 + $0x14] sm:$0xf]
    %v5754 = vld [vmem:[#allocation13 + $0x18] sm:$0xf]
    %v5755 = vld [vmem:[#allocation13 + $0x1c] sm:$0xf]
    %v5756 = vld [vmem:[#allocation13 + $0x20] sm:$0xf]
    %v5757 = vld [vmem:[#allocation13 + $0x24] sm:$0xf]
    %v5758 = vld [vmem:[#allocation13 + $0x28] sm:$0xf]
    %v5759 = vld [vmem:[#allocation13 + $0x2c] sm:$0xf]
    %v5760 = vld [vmem:[#allocation13 + $0x30] sm:$0xf]
    %v5761 = vld [vmem:[#allocation13 + $0x34] sm:$0xf]
    %v5762 = vld [vmem:[#allocation13 + $0x38] sm:$0xf]
    %v5763 = vld [vmem:[#allocation13 + $0x3c] sm:$0xf]
    %v5764 = vld [vmem:[#allocation13 + $0x40] sm:$0xf]
    %v5765 = vld [vmem:[#allocation13 + $0x44] sm:$0xf]
    %v5766 = vld [vmem:[#allocation13 + $0x48] sm:$0xf]
    %v5767 = vld [vmem:[#allocation13 + $0x4c] sm:$0xf]
    %v5768 = vld [vmem:[#allocation13 + $0x50] sm:$0xf]
    %v5769 = vld [vmem:[#allocation13 + $0x54] sm:$0xf]
    %v5770 = vld [vmem:[#allocation13 + $0x58] sm:$0xf]
    %v5771 = vld [vmem:[#allocation13 + $0x5c] sm:$0xf]
    %v5772 = vld [vmem:[#allocation13 + $0x60] sm:$0xf]
    %v5773 = vld [vmem:[#allocation13 + $0x64] sm:$0xf]
    %v5774 = vld [vmem:[#allocation13 + $0x68] sm:$0xf]
    %v5775 = vld [vmem:[#allocation13 + $0x6c] sm:$0xf]
    %v5776 = vld [vmem:[#allocation13 + $0x70] sm:$0xf]
    %v5777 = vld [vmem:[#allocation13 + $0x74] sm:$0xf]
    %v5778 = vld [vmem:[#allocation13 + $0x78] sm:$0xf]
    %v5779 = vld [vmem:[#allocation13 + $0x7c] sm:$0xf]
    %v5780 = vld [vmem:[#allocation14] sm:$0x1]
    %v5782 = vlaneseq
    %v5783 = vshrl.u32 %v5782, 7
    %v5784 = vsub.s32 0, %v5783
    %v5785 = vrot.slane %v5780, %v5784
    %v5819 = vunpack.c.l.b16 %v5748
    %v5820 = vunpack.c.l.b16 %v5749
    %v5821 = vunpack.c.l.b16 %v5750
    %v5822 = vunpack.c.l.b16 %v5751
    %v5823 = vunpack.c.l.b16 %v5752
    %v5824 = vunpack.c.l.b16 %v5753
    %v5825 = vunpack.c.l.b16 %v5754
    %v5826 = vunpack.c.l.b16 %v5755
    %v5827 = vunpack.c.l.b16 %v5756
    %v5828 = vunpack.c.l.b16 %v5757
    %v5829 = vunpack.c.l.b16 %v5758
    %v5830 = vunpack.c.l.b16 %v5759
    %v5831 = vunpack.c.l.b16 %v5760
    %v5832 = vunpack.c.l.b16 %v5761
    %v5833 = vunpack.c.l.b16 %v5762
    %v5834 = vunpack.c.l.b16 %v5763
    %v5835 = vunpack.c.l.b16 %v5764
    %v5836 = vunpack.c.l.b16 %v5765
    %v5837 = vunpack.c.l.b16 %v5766
    %v5838 = vunpack.c.l.b16 %v5767
    %v5839 = vunpack.c.l.b16 %v5768
    %v5840 = vunpack.c.l.b16 %v5769
    %v5841 = vunpack.c.l.b16 %v5770
    %v5842 = vunpack.c.l.b16 %v5771
    %v5843 = vunpack.c.l.b16 %v5772
    %v5844 = vunpack.c.l.b16 %v5773
    %v5845 = vunpack.c.l.b16 %v5774
    %v5846 = vunpack.c.l.b16 %v5775
    %v5847 = vunpack.c.l.b16 %v5776
    %v5848 = vunpack.c.l.b16 %v5777
    %v5849 = vunpack.c.l.b16 %v5778
    %v5850 = vunpack.c.l.b16 %v5779
    %v5851 = vpack.c.b16 %v5820, %v5819
    %v5852 = vpack.c.b16 %v5822, %v5821
    %v5853 = vpack.c.b16 %v5824, %v5823
    %v5854 = vpack.c.b16 %v5826, %v5825
    %v5855 = vpack.c.b16 %v5828, %v5827
    %v5856 = vpack.c.b16 %v5830, %v5829
    %v5857 = vpack.c.b16 %v5832, %v5831
    %v5858 = vpack.c.b16 %v5834, %v5833
    %v5859 = vpack.c.b16 %v5836, %v5835
    %v5860 = vpack.c.b16 %v5838, %v5837
    %v5861 = vpack.c.b16 %v5840, %v5839
    %v5862 = vpack.c.b16 %v5842, %v5841
    %v5863 = vpack.c.b16 %v5844, %v5843
    %v5864 = vpack.c.b16 %v5846, %v5845
    %v5865 = vpack.c.b16 %v5848, %v5847
    %v5866 = vpack.c.b16 %v5850, %v5849
    %5883 = vmatprep.subr.bf16.mxu0 0
    %5884 = vmatpush1.bf16.msra.mxu0 %v5851
    %5885 = vmatprep.subr.bf16.mxu0 0
    %5886 = vmatpush1.bf16.msra.mxu0 %v5852
    %5887 = vmatprep.subr.bf16.mxu0 0
    %5888 = vmatpush1.bf16.msra.mxu0 %v5853
    %5889 = vmatprep.subr.bf16.mxu0 0
    %5890 = vmatpush1.bf16.msra.mxu0 %v5854
    %5891 = vmatprep.subr.bf16.mxu0 0
    %5892 = vmatpush1.bf16.msra.mxu0 %v5855
    %5893 = vmatprep.subr.bf16.mxu0 0
    %5894 = vmatpush1.bf16.msra.mxu0 %v5856
    %5895 = vmatprep.subr.bf16.mxu0 0
    %5896 = vmatpush1.bf16.msra.mxu0 %v5857
    %5897 = vmatprep.subr.bf16.mxu0 0
    %5898 = vmatpush1.bf16.msra.mxu0 %v5858
    %5899 = vmatprep.subr.bf16.mxu0 0
    %5900 = vmatpush1.bf16.msra.mxu0 %v5859
    %5901 = vmatprep.subr.bf16.mxu0 0
    %5902 = vmatpush1.bf16.msra.mxu0 %v5860
    %5903 = vmatprep.subr.bf16.mxu0 0
    %5904 = vmatpush1.bf16.msra.mxu0 %v5861
    %5905 = vmatprep.subr.bf16.mxu0 0
    %5906 = vmatpush1.bf16.msra.mxu0 %v5862
    %5907 = vmatprep.subr.bf16.mxu0 0
    %5908 = vmatpush1.bf16.msra.mxu0 %v5863
    %5909 = vmatprep.subr.bf16.mxu0 0
    %5910 = vmatpush1.bf16.msra.mxu0 %v5864
    %5911 = vmatprep.subr.bf16.mxu0 0
    %5912 = vmatpush1.bf16.msra.mxu0 %v5865
    %5913 = vmatprep.subr.bf16.mxu0 0
    %5914 = vmatpush1.bf16.msra.mxu0 %v5866
    %5915 = vmatprep.mubr.bf16.mxu0 %v5747
    %5916 = vmatmul.mubr.bf16.gmra.mrb[0].mxu0 %v5746
    %v5917 = vpop.f32.mrb[0].mxu0
    %v5918 = vadd.f32 %v5785, %v5917
    %v5919 = vpop.f32.mrb[0].mxu0
    %v5920 = vpop.f32.mrb[0].mxu0
    %v5921 = vpop.f32.mrb[0].mxu0
    %5922 = vdwg.mxu0
    %v5923 = vmax.f32 %v5918, 0.0
    %v5924 = vpack.c.bf16 %v5923, %v5923
    %v5925 = vld [vmem:[#allocation16] sm:$0xf]
    %v5926 = vld [vmem:[#allocation16 + $0x4] sm:$0xf]
    %v5927 = vld [vmem:[#allocation16 + $0x8] sm:$0xf]
    %v5928 = vld [vmem:[#allocation16 + $0xc] sm:$0xf]
    %v5929 = vld [vmem:[#allocation16 + $0x10] sm:$0xf]
    %v5930 = vld [vmem:[#allocation16 + $0x14] sm:$0xf]
    %v5931 = vld [vmem:[#allocation16 + $0x18] sm:$0xf]
    %v5932 = vld [vmem:[#allocation16 + $0x1c] sm:$0xf]
    %v5933 = vld [vmem:[#allocation16 + $0x20] sm:$0xf]
    %v5934 = vld [vmem:[#allocation16 + $0x24] sm:$0xf]
    %v5935 = vld [vmem:[#allocation16 + $0x28] sm:$0xf]
    %v5936 = vld [vmem:[#allocation16 + $0x2c] sm:$0xf]
    %v5937 = vld [vmem:[#allocation16 + $0x30] sm:$0xf]
    %v5938 = vld [vmem:[#allocation16 + $0x34] sm:$0xf]
    %v5939 = vld [vmem:[#allocation16 + $0x38] sm:$0xf]
    %v5940 = vld [vmem:[#allocation16 + $0x3c] sm:$0xf]
    %v5941 = vld [vmem:[#allocation17] sm:$0x1]
    %v5943 = vlaneseq
    %v5944 = vshrl.u32 %v5943, 7
    %v5945 = vsub.s32 0, %v5944
    %v5946 = vrot.slane %v5941, %v5945
    %v5964 = vunpack.c.l.b16 %v5925
    %v5965 = vunpack.c.l.b16 %v5926
    %v5966 = vunpack.c.l.b16 %v5927
    %v5967 = vunpack.c.l.b16 %v5928
    %v5968 = vunpack.c.l.b16 %v5929
    %v5969 = vunpack.c.l.b16 %v5930
    %v5970 = vunpack.c.l.b16 %v5931
    %v5971 = vunpack.c.l.b16 %v5932
    %v5972 = vunpack.c.l.b16 %v5933
    %v5973 = vunpack.c.l.b16 %v5934
    %v5974 = vunpack.c.l.b16 %v5935
    %v5975 = vunpack.c.l.b16 %v5936
    %v5976 = vunpack.c.l.b16 %v5937
    %v5977 = vunpack.c.l.b16 %v5938
    %v5978 = vunpack.c.l.b16 %v5939
    %v5979 = vunpack.c.l.b16 %v5940
    %v5980 = vpack.c.b16 %v5965, %v5964
    %v5981 = vpack.c.b16 %v5967, %v5966
    %v5982 = vpack.c.b16 %v5969, %v5968
    %v5983 = vpack.c.b16 %v5971, %v5970
    %v5984 = vpack.c.b16 %v5973, %v5972
    %v5985 = vpack.c.b16 %v5975, %v5974
    %v5986 = vpack.c.b16 %v5977, %v5976
    %v5987 = vpack.c.b16 %v5979, %v5978
    %5996 = vmatprep.subr.bf16.mxu0 0
    %5997 = vmatpush1.bf16.msra.mxu0 %v5980
    %5998 = vmatprep.subr.bf16.mxu0 0
    %5999 = vmatpush1.bf16.msra.mxu0 %v5981
    %6000 = vmatprep.subr.bf16.mxu0 0
    %6001 = vmatpush1.bf16.msra.mxu0 %v5982
    %6002 = vmatprep.subr.bf16.mxu0 0
    %6003 = vmatpush1.bf16.msra.mxu0 %v5983
    %6004 = vmatprep.subr.bf16.mxu0 0
    %6005 = vmatpush1.bf16.msra.mxu0 %v5984
    %6006 = vmatprep.subr.bf16.mxu0 0
    %6007 = vmatpush1.bf16.msra.mxu0 %v5985
    %6008 = vmatprep.subr.bf16.mxu0 0
    %6009 = vmatpush1.bf16.msra.mxu0 %v5986
    %6010 = vmatprep.subr.bf16.mxu0 0
    %6011 = vmatpush1.bf16.msra.mxu0 %v5987
    %6012 = vmatprep.subr.bf16.mxu0 0
    %6013 = vmatpush1.bf16.msra.mxu0 0
    %6014 = vmatprep.subr.bf16.mxu0 0
    %6015 = vmatpush1.bf16.msra.mxu0 0
    %6016 = vmatprep.subr.bf16.mxu0 0
    %6017 = vmatpush1.bf16.msra.mxu0 0
    %6018 = vmatprep.subr.bf16.mxu0 0
    %6019 = vmatpush1.bf16.msra.mxu0 0
    %6020 = vmatprep.subr.bf16.mxu0 0
    %6021 = vmatpush1.bf16.msra.mxu0 0
    %6022 = vmatprep.subr.bf16.mxu0 0
    %6023 = vmatpush1.bf16.msra.mxu0 0
    %6024 = vmatprep.subr.bf16.mxu0 0
    %6025 = vmatpush1.bf16.msra.mxu0 0
    %6026 = vmatprep.subr.bf16.mxu0 0
    %6027 = vmatpush1.bf16.msra.mxu0 0
    %6028 = vmatprep.mubr.bf16.mxu0 0
    %6029 = vmatmul.mubr.bf16.gmra.mrb[0].mxu0 %v5924
    %v6030 = vpop.f32.mrb[0].mxu0
    %v6031 = vadd.f32 %v5946, %v6030
    %v6032 = vpop.f32.mrb[0].mxu0
    %v6033 = vpop.f32.mrb[0].mxu0
    %v6034 = vpop.f32.mrb[0].mxu0
    %6035 = vdwg.mxu0
    %v6036 = vmax.f32 %v6031, 0.0
    %v6037 = vpack.c.bf16 %v6036, %v6036
    %v6038 = vld [vmem:[#allocation19] sm:$0xf]
    %v6039 = vld [vmem:[#allocation19 + $0x4] sm:$0xf]
    %v6040 = vld [vmem:[#allocation19 + $0x8] sm:$0xf]
    %v6041 = vld [vmem:[#allocation19 + $0xc] sm:$0xf]
    %v6042 = vld [vmem:[#allocation19 + $0x10] sm:$0xf]
    %v6043 = vld [vmem:[#allocation19 + $0x14] sm:$0xf]
    %v6044 = vld [vmem:[#allocation19 + $0x18] sm:$0xf]
    %v6045 = vld [vmem:[#allocation19 + $0x1c] sm:$0xf]
    %v6046 = vld [vmem:[#allocation19 + $0x20] sm:$0xf]
    %v6047 = vld [vmem:[#allocation19 + $0x24] sm:$0xf]
    %v6048 = vld [vmem:[#allocation19 + $0x28] sm:$0xf]
    %v6049 = vld [vmem:[#allocation19 + $0x2c] sm:$0xf]
    %v6050 = vld [vmem:[#allocation19 + $0x30] sm:$0xf]
    %v6051 = vld [vmem:[#allocation19 + $0x34] sm:$0xf]
    %v6052 = vld [vmem:[#allocation19 + $0x38] sm:$0xf]
    %v6053 = vld [vmem:[#allocation19 + $0x3c] sm:$0xf]
    %v6054 = vld [vmem:[#allocation20] sm:$0x1]
    %v6056 = vlaneseq
    %v6057 = vshrl.u32 %v6056, 7
    %v6058 = vsub.s32 0, %v6057
    %v6059 = vrot.slane %v6054, %v6058
    %v6077 = vunpack.c.l.b16 %v6038
    %v6078 = vunpack.c.l.b16 %v6039
    %v6079 = vunpack.c.l.b16 %v6040
    %v6080 = vunpack.c.l.b16 %v6041
    %v6081 = vunpack.c.l.b16 %v6042
    %v6082 = vunpack.c.l.b16 %v6043
    %v6083 = vunpack.c.l.b16 %v6044
    %v6084 = vunpack.c.l.b16 %v6045
    %v6085 = vunpack.c.l.b16 %v6046
    %v6086 = vunpack.c.l.b16 %v6047
    %v6087 = vunpack.c.l.b16 %v6048
    %v6088 = vunpack.c.l.b16 %v6049
    %v6089 = vunpack.c.l.b16 %v6050
    %v6090 = vunpack.c.l.b16 %v6051
    %v6091 = vunpack.c.l.b16 %v6052
    %v6092 = vunpack.c.l.b16 %v6053
    %v6093 = vpack.c.b16 %v6078, %v6077
    %v6094 = vpack.c.b16 %v6080, %v6079
    %v6095 = vpack.c.b16 %v6082, %v6081
    %v6096 = vpack.c.b16 %v6084, %v6083
    %v6097 = vpack.c.b16 %v6086, %v6085
    %v6098 = vpack.c.b16 %v6088, %v6087
    %v6099 = vpack.c.b16 %v6090, %v6089
    %v6100 = vpack.c.b16 %v6092, %v6091
    %6109 = vmatprep.subr.bf16.mxu0 0
    %6110 = vmatpush1.bf16.msra.mxu0 %v6093
    %6111 = vmatprep.subr.bf16.mxu0 0
    %6112 = vmatpush1.bf16.msra.mxu0 %v6094
    %6113 = vmatprep.subr.bf16.mxu0 0
    %6114 = vmatpush1.bf16.msra.mxu0 %v6095
    %6115 = vmatprep.subr.bf16.mxu0 0
    %6116 = vmatpush1.bf16.msra.mxu0 %v6096
    %6117 = vmatprep.subr.bf16.mxu0 0
    %6118 = vmatpush1.bf16.msra.mxu0 %v6097
    %6119 = vmatprep.subr.bf16.mxu0 0
    %6120 = vmatpush1.bf16.msra.mxu0 %v6098
    %6121 = vmatprep.subr.bf16.mxu0 0
    %6122 = vmatpush1.bf16.msra.mxu0 %v6099
    %6123 = vmatprep.subr.bf16.mxu0 0
    %6124 = vmatpush1.bf16.msra.mxu0 %v6100
    %6125 = vmatprep.subr.bf16.mxu0 0
    %6126 = vmatpush1.bf16.msra.mxu0 0
    %6127 = vmatprep.subr.bf16.mxu0 0
    %6128 = vmatpush1.bf16.msra.mxu0 0
    %6129 = vmatprep.subr.bf16.mxu0 0
    %6130 = vmatpush1.bf16.msra.mxu0 0
    %6131 = vmatprep.subr.bf16.mxu0 0
    %6132 = vmatpush1.bf16.msra.mxu0 0
    %6133 = vmatprep.subr.bf16.mxu0 0
    %6134 = vmatpush1.bf16.msra.mxu0 0
    %6135 = vmatprep.subr.bf16.mxu0 0
    %6136 = vmatpush1.bf16.msra.mxu0 0
    %6137 = vmatprep.subr.bf16.mxu0 0
    %6138 = vmatpush1.bf16.msra.mxu0 0
    %6139 = vmatprep.subr.bf16.mxu0 0
    %6140 = vmatpush1.bf16.msra.mxu0 0
    %6141 = vmatprep.mubr.bf16.mxu0 0
    %6142 = vmatmul.mubr.bf16.gmra.mrb[0].mxu0 %v6037
    %v6143 = vpop.f32.mrb[0].mxu0
    %v6144 = vadd.f32 %v6059, %v6143
    %v6145 = vpop.f32.mrb[0].mxu0
    %v6146 = vpop.f32.mrb[0].mxu0
    %v6147 = vpop.f32.mrb[0].mxu0
    %6148 = vdwg.mxu0
    %v6149 = vmax.f32 %v6144, 0.0
    %v6150 = vpack.c.bf16 %v6149, %v6149
    %v6151 = vld [vmem:[#allocation22] sm:$0xf]
    %v6152 = vld [vmem:[#allocation22 + $0x4] sm:$0xf]
    %v6153 = vld [vmem:[#allocation22 + $0x8] sm:$0xf]
    %v6154 = vld [vmem:[#allocation22 + $0xc] sm:$0xf]
    %v6155 = vld [vmem:[#allocation22 + $0x10] sm:$0xf]
    %v6156 = vld [vmem:[#allocation22 + $0x14] sm:$0xf]
    %v6157 = vld [vmem:[#allocation22 + $0x18] sm:$0xf]
    %v6158 = vld [vmem:[#allocation22 + $0x1c] sm:$0xf]
    %v6159 = vld [vmem:[#allocation22 + $0x20] sm:$0xf]
    %v6160 = vld [vmem:[#allocation22 + $0x24] sm:$0xf]
    %v6161 = vld [vmem:[#allocation22 + $0x28] sm:$0xf]
    %v6162 = vld [vmem:[#allocation22 + $0x2c] sm:$0xf]
    %v6163 = vld [vmem:[#allocation22 + $0x30] sm:$0xf]
    %v6164 = vld [vmem:[#allocation22 + $0x34] sm:$0xf]
    %v6165 = vld [vmem:[#allocation22 + $0x38] sm:$0xf]
    %v6166 = vld [vmem:[#allocation22 + $0x3c] sm:$0xf]
    %v6167 = vld [vmem:[#allocation23] sm:$0x1]
    %v6169 = vlaneseq
    %v6170 = vshrl.u32 %v6169, 7
    %v6171 = vsub.s32 0, %v6170
    %v6172 = vrot.slane %v6167, %v6171
    %v6190 = vunpack.c.l.b16 %v6151
    %v6191 = vunpack.c.l.b16 %v6152
    %v6192 = vunpack.c.l.b16 %v6153
    %v6193 = vunpack.c.l.b16 %v6154
    %v6194 = vunpack.c.l.b16 %v6155
    %v6195 = vunpack.c.l.b16 %v6156
    %v6196 = vunpack.c.l.b16 %v6157
    %v6197 = vunpack.c.l.b16 %v6158
    %v6198 = vunpack.c.l.b16 %v6159
    %v6199 = vunpack.c.l.b16 %v6160
    %v6200 = vunpack.c.l.b16 %v6161
    %v6201 = vunpack.c.l.b16 %v6162
    %v6202 = vunpack.c.l.b16 %v6163
    %v6203 = vunpack.c.l.b16 %v6164
    %v6204 = vunpack.c.l.b16 %v6165
    %v6205 = vunpack.c.l.b16 %v6166
    %v6206 = vpack.c.b16 %v6191, %v6190
    %v6207 = vpack.c.b16 %v6193, %v6192
    %v6208 = vpack.c.b16 %v6195, %v6194
    %v6209 = vpack.c.b16 %v6197, %v6196
    %v6210 = vpack.c.b16 %v6199, %v6198
    %v6211 = vpack.c.b16 %v6201, %v6200
    %v6212 = vpack.c.b16 %v6203, %v6202
    %v6213 = vpack.c.b16 %v6205, %v6204
    %6222 = vmatprep.subr.bf16.mxu0 0
    %6223 = vmatpush1.bf16.msra.mxu0 %v6206
    %6224 = vmatprep.subr.bf16.mxu0 0
    %6225 = vmatpush1.bf16.msra.mxu0 %v6207
    %6226 = vmatprep.subr.bf16.mxu0 0
    %6227 = vmatpush1.bf16.msra.mxu0 %v6208
    %6228 = vmatprep.subr.bf16.mxu0 0
    %6229 = vmatpush1.bf16.msra.mxu0 %v6209
    %6230 = vmatprep.subr.bf16.mxu0 0
    %6231 = vmatpush1.bf16.msra.mxu0 %v6210
    %6232 = vmatprep.subr.bf16.mxu0 0
    %6233 = vmatpush1.bf16.msra.mxu0 %v6211
    %6234 = vmatprep.subr.bf16.mxu0 0
    %6235 = vmatpush1.bf16.msra.mxu0 %v6212
    %6236 = vmatprep.subr.bf16.mxu0 0
    %6237 = vmatpush1.bf16.msra.mxu0 %v6213
    %6238 = vmatprep.subr.bf16.mxu0 0
    %6239 = vmatpush1.bf16.msra.mxu0 0
    %6240 = vmatprep.subr.bf16.mxu0 0
    %6241 = vmatpush1.bf16.msra.mxu0 0
    %6242 = vmatprep.subr.bf16.mxu0 0
    %6243 = vmatpush1.bf16.msra.mxu0 0
    %6244 = vmatprep.subr.bf16.mxu0 0
    %6245 = vmatpush1.bf16.msra.mxu0 0
    %6246 = vmatprep.subr.bf16.mxu0 0
    %6247 = vmatpush1.bf16.msra.mxu0 0
    %6248 = vmatprep.subr.bf16.mxu0 0
    %6249 = vmatpush1.bf16.msra.mxu0 0
    %6250 = vmatprep.subr.bf16.mxu0 0
    %6251 = vmatpush1.bf16.msra.mxu0 0
    %6252 = vmatprep.subr.bf16.mxu0 0
    %6253 = vmatpush1.bf16.msra.mxu0 0
    %6254 = vmatprep.mubr.bf16.mxu0 0
    %6255 = vmatmul.mubr.bf16.gmra.mrb[0].mxu0 %v6150
    %v6256 = vpop.f32.mrb[0].mxu0
    %v6257 = vadd.f32 %v6172, %v6256
    %v6258 = vpop.f32.mrb[0].mxu0
    %v6259 = vpop.f32.mrb[0].mxu0
    %v6260 = vpop.f32.mrb[0].mxu0
    %6261 = vdwg.mxu0
    %6262 = vst [vmem:[#allocation25] sm:$0x3] %v6257
    // Predicated region
    $region118: #{_lambda_.1} parent=1 // pred_check
      _
    $region119: #{_lambda_.1} parent=1 // pred_check_branch
      %6264 = sbr.rel (0) target = $region121
    $region120: #{_lambda_.1} parent=1 // pred_region
      %s6266 = ssub.s32 32, 32
      %6267 = vsyncadd [#allocation4], %s6266
      %s6269 = sshll.u32 [#allocation25], 4
      %s6270 = int_to_ptr.vmem [resolvable:$true] %s6269
      %6272 = dma.vmem_to_hbm [thread:$0]  %s6270, 32, %s15, [#allocation4]
    $region121: #{_lambda_.1} parent=1 // pred_fallthru
      _
    // Predicated region
    $region122: #{_lambda_.1} parent=1 // pred_check
      _
    $region123: #{_lambda_.1} parent=1 // pred_check_branch
      %6274 = sbr.rel (0) target = $region125
    $region124: #{_lambda_.1} parent=1 // pred_region
      %6275 = dma.done [#allocation4], 32
    $region125: #{_lambda_.1} parent=1 // pred_fallthru
      _
    %6276 = vsyncpa [#allocation3], 1
    %6277 = vsyncpa [#allocation6], 1
    %6278 = vsyncpa [#allocation9], 1
    %6279 = vsyncpa [#allocation12], 1
    %6280 = vsyncpa [#allocation15], 1
    %6281 = vsyncpa [#allocation18], 1
    %6282 = vsyncpa [#allocation21], 1
    %6283 = vsyncpa [#allocation24], 1
    %6284 = vsyncpa [#allocation4], 1

</llo_original>
